<compile_context>
chip_gen: v7x
topology: tpu7x:2x2x1
jax: 0.10.0
libtpu: 0.0.40
codegen_flags: <defaults>
</compile_context>

<pallas_src>
import jax
import jax.numpy as jnp
from jax.experimental import pallas as pl
from jax.experimental.pallas import tpu as pltpu


# --------------------------------------------------------------------------------------
# Kernel
# --------------------------------------------------------------------------------------
def lstm_emb_kernel(x_ref, h0vec_ref, w_ih_ref, w_hhfc_ref, bias_ref, w_emb_hbm,
                    out_ref, gx_scr, w_buf, dma_sem):
    """All small operands VMEM-resident; w_emb streamed from HBM in K-chunks.

    x_ref      : (T*Bp, I)            time-major, batch-padded inputs
    h0vec_ref  : (Bp, Ep)             embedding vector (batch- and K-padded)
    w_ih_ref   : (I, 4*Hp)            input -> gates (per-gate lane-padded)
    w_hhfc_ref : (Hp, 4*Hp + Op)      [ W_hh | W_fc ]
    bias_ref   : (1, Hp + 4*Hp + Op)  [ b_emb | b_ih+b_hh | b_fc ]
    w_emb_hbm  : (Ep, Hp)             embedding projection, left in HBM (pl.ANY)
    out_ref    : (Bp, Op)
    gx_scr     : (T*Bp, 4*Hp)         VMEM scratch: hoisted input projection
    w_buf      : (2, CK, Hp)          VMEM double buffer for w_emb K-chunks
    dma_sem    : DMA semaphores (2,)
    """
    Bp = h0vec_ref.shape[0]
    Ep = h0vec_ref.shape[1]
    CK = w_buf.shape[1]
    Hp = w_buf.shape[2]
    Op = out_ref.shape[1]
    T = x_ref.shape[0] // Bp
    NC = Ep // CK

    def start_chunk(kc, slot):
        pltpu.make_async_copy(w_emb_hbm.at[pl.ds(kc * CK, CK), :],
                              w_buf.at[slot], dma_sem.at[slot]).start()

    def wait_chunk(slot):
        pltpu.make_async_copy(w_emb_hbm.at[pl.ds(0, CK), :],
                              w_buf.at[slot], dma_sem.at[slot]).wait()

    # Kick off the first w_emb chunk immediately; the input projection below (and the
    # second chunk's DMA) overlap with it.
    start_chunk(0, 0)

    # Hoisted input projection for every time step at once: (T*Bp, I) @ (I, 4*Hp) + b.
    gx_scr[...] = (jnp.dot(x_ref[...], w_ih_ref[...],
                           preferred_element_type=jnp.float32)
                   + bias_ref[:, Hp:5 * Hp])

    # h0 = h0_vec @ w_emb + b_emb, K-chunked and double-buffered (DMA overlaps matmul).
    h = jnp.zeros((Bp, Hp), jnp.float32) + bias_ref[:, 0:Hp]
    for kc in range(NC):
        slot = kc & 1
        if kc + 1 < NC:
            start_chunk(kc + 1, 1 - slot)
        wait_chunk(slot)
        lhs = h0vec_ref[:, kc * CK:(kc + 1) * CK].astype(w_buf.dtype)
        h = h + jnp.dot(lhs, w_buf[slot], preferred_element_type=jnp.float32)

    # LSTM recurrence, fully unrolled (static T).  Gate order i, f, g, o (PyTorch).
    # Padded lanes stay exactly 0 throughout (see module docstring).
    # TODO(synk): hold W_hh in the MXU across the T steps via pltpu.matmul_push_rhs /
    # matmul_acc_lhs / matmul_pop (and accumulate onto gx in the MRB on v7x) instead of
    # re-streaming the (Hp, 4*Hp) RHS every step.
    w_hh = w_hhfc_ref[:, 0:4 * Hp]
    c = jnp.zeros_like(h)
    for t in range(T):
        gates = gx_scr[t * Bp:(t + 1) * Bp, :] + jnp.dot(
            h, w_hh, preferred_element_type=jnp.float32)
        i_g = 0.5 * jnp.tanh(0.5 * gates[:, 0 * Hp:1 * Hp]) + 0.5   # sigmoid via 1 tanh
        f_g = 0.5 * jnp.tanh(0.5 * gates[:, 1 * Hp:2 * Hp]) + 0.5
        g_g = jnp.tanh(gates[:, 2 * Hp:3 * Hp])
        o_g = 0.5 * jnp.tanh(0.5 * gates[:, 3 * Hp:4 * Hp]) + 0.5
        c = f_g * c + i_g * g_g
        h = o_g * jnp.tanh(c)

    # Final fc on the last hidden state; (Bp, Op) is a lane-dense, unmasked store.
    out_ref[...] = (jnp.dot(h, w_hhfc_ref[:, 4 * Hp:4 * Hp + Op],
                            preferred_element_type=jnp.float32)
                    + bias_ref[:, 5 * Hp:5 * Hp + Op])


# --------------------------------------------------------------------------------------
# One-time (init-time) parameter padding / packing + per-call wrapper
# --------------------------------------------------------------------------------------
def _round_up(n, m):
    return ((n + m - 1) // m) * m


def _pad_gate_cols(w, H, Hp):
    """Pad each of the 4 gate blocks (width H) along the last axis to width Hp."""
    pad = [(0, 0)] * (w.ndim - 1) + [(0, Hp - H)]
    blocks = [jnp.pad(w[..., g * H:(g + 1) * H], pad) for g in range(4)]
    return jnp.concatenate(blocks, axis=-1)


def prepare_params(params, emb_dtype=jnp.float32):
    """Init-time padding / packing into the kernel layout (hoisted off the call path)."""
    E, H = params["w_emb"].shape
    O = params["w_fc"].shape[1]
    Hp = _round_up(H, 128)                  # hidden padded to a full lane group
    Op = _round_up(O, 128)                  # output padded to a full lane group
    CK = _round_up(pl.cdiv(E, 4), 128)      # w_emb K-chunk (~4 chunks, lane/sublane aligned)
    NC = pl.cdiv(E, CK)
    Ep = NC * CK

    w_emb = jnp.pad(params["w_emb"], ((0, Ep - E), (0, Hp - H))).astype(emb_dtype)
    w_ih = _pad_gate_cols(params["w_ih"], H, Hp)                                 # (I, 4Hp)
    w_hh = jnp.pad(_pad_gate_cols(params["w_hh"], H, Hp), ((0, Hp - H), (0, 0)))  # (Hp, 4Hp)
    w_fc = jnp.pad(params["w_fc"], ((0, Hp - H), (0, Op - O)))                   # (Hp, Op)
    w_hhfc = jnp.concatenate([w_hh, w_fc], axis=1)                               # (Hp, 4Hp+Op)
    bias = jnp.concatenate([jnp.pad(params["b_emb"], ((0, 0), (0, Hp - H))),
                            _pad_gate_cols(params["b"], H, Hp),
                            jnp.pad(params["b_fc"], ((0, 0), (0, Op - O)))],
                           axis=1)                                               # (1, Hp+4Hp+Op)
    return {"w_emb": w_emb, "w_ih": w_ih, "w_hhfc": w_hhfc, "bias": bias,
            "dims": {"H": H, "O": O, "E": E, "Ep": Ep, "Hp": Hp, "Op": Op, "CK": CK}}


def lstm_with_embedding(x, h0_vec, prep):
    """x: (B, T, input_size) batch_first; h0_vec: (B, emb_dim); prep from prepare_params."""
    d = prep["dims"]
    Hp, Op, Ep, CK, O = d["Hp"], d["Op"], d["Ep"], d["CK"], d["O"]
    B, T, I = x.shape
    Bp = _round_up(B, 8)

    # Per-call activation prep (a few KiB at most): batch-pad, time-major, flatten.
    h0p = jnp.pad(h0_vec.astype(jnp.float32),
                  ((0, Bp - B), (0, Ep - h0_vec.shape[1])))          # (Bp, Ep)
    x_tm = jnp.transpose(x.astype(jnp.float32), (1, 0, 2))           # (T, B, I)
    x2d = jnp.pad(x_tm, ((0, 0), (0, Bp - B), (0, 0))).reshape(T * Bp, I)

    emb_dtype = prep["w_emb"].dtype
    f32b = jnp.dtype(jnp.float32).itemsize
    flops = (2 * Bp * Ep * Hp + 2 * T * Bp * I * 4 * Hp
             + 2 * T * Bp * Hp * 4 * Hp + 2 * Bp * Hp * Op)
    bytes_accessed = (prep["w_emb"].size * jnp.dtype(emb_dtype).itemsize
                      + (prep["w_ih"].size + prep["w_hhfc"].size + prep["bias"].size) * f32b
                      + (x2d.size + h0p.size + Bp * Op) * f32b)

    vmem = pl.BlockSpec(memory_space=pltpu.MemorySpace.VMEM)
    out_p = pl.pallas_call(
        lstm_emb_kernel,
        out_shape=jax.ShapeDtypeStruct((Bp, Op), jnp.float32),
        in_specs=[vmem, vmem, vmem, vmem, vmem,
                  pl.BlockSpec(memory_space=pl.ANY)],       # w_emb stays in HBM
        out_specs=vmem,
        scratch_shapes=[
            pltpu.VMEM((T * Bp, 4 * Hp), jnp.float32),      # hoisted input projection
            pltpu.VMEM((2, CK, Hp), emb_dtype),             # w_emb chunk double buffer
            pltpu.SemaphoreType.DMA((2,)),
        ],
        cost_estimate=pl.CostEstimate(flops=flops,
                                      transcendentals=5 * T * Bp * Hp,
                                      bytes_accessed=bytes_accessed),
    )(x2d, h0p, prep["w_ih"], prep["w_hhfc"], prep["bias"], prep["w_emb"])

    return out_p[:B, :O]


# --------------------------------------------------------------------------------------
# Pure-JAX reference (identical semantics) and deterministic params
# --------------------------------------------------------------------------------------
def reference(x, h0_vec, params):
    H = params["w_hh"].shape[0]
    h = h0_vec @ params["w_emb"] + params["b_emb"]
    c = jnp.zeros_like(h)
    T = x.shape[1]
    for t in range(T):
        gates = x[:, t, :] @ params["w_ih"] + h @ params["w_hh"] + params["b"]
        i_g = jax.nn.sigmoid(gates[:, 0 * H:1 * H])
        f_g = jax.nn.sigmoid(gates[:, 1 * H:2 * H])
        g_g = jnp.tanh(gates[:, 2 * H:3 * H])
        o_g = jax.nn.sigmoid(gates[:, 3 * H:4 * H])
        c = f_g * c + i_g * g_g
        h = o_g * jnp.tanh(c)
    return h @ params["w_fc"] + params["b_fc"]


def init_params(key, input_size=2, hidden_size=32, output_size=2, emb_dim=1536):
    """Synthetic parameters stored pre-transposed for (M,K)@(K,N) matmuls."""
    ks = jax.random.split(key, 8)
    k_lstm = 1.0 / jnp.sqrt(hidden_size)
    k_emb = 1.0 / jnp.sqrt(emb_dim)

    def u(k, shape, bound):
        return jax.random.uniform(k, shape, jnp.float32, -bound, bound)

    w_ih = u(ks[0], (input_size, 4 * hidden_size), k_lstm)
    w_hh = u(ks[1], (hidden_size, 4 * hidden_size), k_lstm)
    b_ih = u(ks[2], (1, 4 * hidden_size), k_lstm)
    b_hh = u(ks[3], (1, 4 * hidden_size), k_lstm)
    w_emb = u(ks[4], (emb_dim, hidden_size), k_emb)
    b_emb = u(ks[5], (1, hidden_size), k_emb)
    w_fc = u(ks[6], (hidden_size, output_size), k_lstm)
    b_fc = u(ks[7], (1, output_size), k_lstm)

    return {
        "w_ih": w_ih, "w_hh": w_hh, "b": b_ih + b_hh,
        "w_emb": w_emb, "b_emb": b_emb,
        "w_fc": w_fc, "b_fc": b_fc,
    }


if __name__ == "__main__":
    B, T, INPUT, HIDDEN, OUT, EMB = 2, 8, 2, 32, 2, 1536

    key = jax.random.PRNGKey(0)
    k_x, k_h, k_p = jax.random.split(key, 3)
    x = jax.random.normal(k_x, (B, T, INPUT), jnp.float32)     # batch_first, like PyTorch
    h0_vec = jax.random.normal(k_h, (B, EMB), jnp.float32)
    params = init_params(k_p, INPUT, HIDDEN, OUT, EMB)
    y_ref = reference(x, h0_vec, params)

    # f32 parameter path: exact module semantics, strict tolerance.
    prep = prepare_params(params)                              # one-time padding/packing
    y = jax.block_until_ready(lstm_with_embedding(x, h0_vec, prep))
    assert y.shape == (B, OUT)
    assert jnp.allclose(y, y_ref, atol=1e-4, rtol=1e-4), (y, y_ref)

    # bf16 w_emb path: halves the dominant HBM transfer (f32 accumulation; loose check).
    prep16 = prepare_params(params, emb_dtype=jnp.bfloat16)
    y16 = jax.block_until_ready(lstm_with_embedding(x, h0_vec, prep16))
    assert float(jnp.max(jnp.abs(y16 - y_ref))) < 5e-2, (y16, y_ref)

    print("KERNEL_OK")
</pallas_src>

<mosaic_0001>
module attributes {stable_mosaic.version = 11 : i64} {
  func.func @lstm_emb_kernel(%arg0: memref<64x2xf32, #tpu.memory_space<vmem>>, %arg1: memref<8x1536xf32, #tpu.memory_space<vmem>>, %arg2: memref<2x512xf32, #tpu.memory_space<vmem>>, %arg3: memref<128x640xf32, #tpu.memory_space<vmem>>, %arg4: memref<1x768xf32, #tpu.memory_space<vmem>>, %arg5: memref<1536x128xf32, #tpu.memory_space<any>>, %arg6: memref<8x128xf32, #tpu.memory_space<vmem>>, %arg7: memref<64x512xf32, #tpu.memory_space<vmem>>, %arg8: memref<2x384x128xf32, #tpu.memory_space<vmem>>, %arg9: memref<2x!tpu.dma_semaphore, #tpu.memory_space<semaphore_mem>>) attributes {dimension_semantics = [], scalar_prefetch = 0 : i64, scratch_operands = 3 : i64, tpu.core_type = #tpu.core_type<tc>} {
    %c0_i32 = arith.constant 0 : i32
    %c0_i32_0 = arith.constant 0 : i32
    %c0_i32_1 = arith.constant 0 : i32
    %c0_i32_2 = arith.constant 0 : i32
    %0 = tpu.memref_slice %arg5[%c0_i32_1, %c0_i32_2] : memref<1536x128xf32, #tpu.memory_space<any>> -> memref<384x128xf32, #tpu.memory_space<any>>
    %c0_i32_3 = arith.constant 0 : i32
    %c0_i32_4 = arith.constant 0 : i32
    %1 = tpu.memref_slice %arg8[%c0_i32, %c0_i32_3, %c0_i32_4] : memref<2x384x128xf32, #tpu.memory_space<vmem>> -> memref<1x384x128xf32, #tpu.memory_space<vmem>>
    %2 = tpu.memref_squeeze %1 : memref<1x384x128xf32, #tpu.memory_space<vmem>> -> memref<384x128xf32, #tpu.memory_space<vmem>>
    %3 = tpu.memref_slice %arg9[%c0_i32_0] : memref<2x!tpu.dma_semaphore, #tpu.memory_space<semaphore_mem>> -> memref<1x!tpu.dma_semaphore, #tpu.memory_space<semaphore_mem>>
    %4 = tpu.memref_squeeze %3 : memref<1x!tpu.dma_semaphore, #tpu.memory_space<semaphore_mem>> -> memref<!tpu.dma_semaphore, #tpu.memory_space<semaphore_mem>>
    tpu.enqueue_dma source(%0 : memref<384x128xf32, #tpu.memory_space<any>>) target(%2 : memref<384x128xf32, #tpu.memory_space<vmem>>) target_semaphore(%4 : memref<!tpu.dma_semaphore, #tpu.memory_space<semaphore_mem>>)
    %c0 = arith.constant 0 : index
    %c0_5 = arith.constant 0 : index
    %5 = vector.load %arg0[%c0, %c0_5] : memref<64x2xf32, #tpu.memory_space<vmem>>, vector<64x2xf32>
    %c0_6 = arith.constant 0 : index
    %c0_7 = arith.constant 0 : index
    %6 = vector.load %arg2[%c0_6, %c0_7] : memref<2x512xf32, #tpu.memory_space<vmem>>, vector<2x512xf32>
    %cst = arith.constant dense<0.000000e+00> : vector<64x512xf32>
    %7 = tpu.matmul %5, %6, %cst {dimension_numbers = #tpu.dot_dimension_numbers<[1], [0], [0], [1], [0, 0, 1, 1], [], []>} : vector<64x2xf32>, vector<2x512xf32>, vector<64x512xf32> -> vector<64x512xf32>
    %c0_8 = arith.constant 0 : index
    %c128 = arith.constant 128 : index
    %8 = vector.load %arg4[%c0_8, %c128] : memref<1x768xf32, #tpu.memory_space<vmem>>, vector<1x512xf32>
    %9 = vector.broadcast %8 : vector<1x512xf32> to vector<64x512xf32>
    %10 = arith.addf %7, %9 : vector<64x512xf32>
    %c0_9 = arith.constant 0 : index
    %c0_10 = arith.constant 0 : index
    %11 = vector.load %arg7[%c0_9, %c0_10] : memref<64x512xf32, #tpu.memory_space<vmem>>, vector<64x512xf32>
    tpu.vector_store %arg7[%c0_9, %c0_10], %10 {strides = array<i32>} : memref<64x512xf32, #tpu.memory_space<vmem>>, vector<64x512xf32>,
    %cst_11 = arith.constant 0.000000e+00 : f32
    %12 = vector.broadcast %cst_11 : f32 to vector<8x128xf32>
    %c0_12 = arith.constant 0 : index
    %c0_13 = arith.constant 0 : index
    %13 = vector.load %arg4[%c0_12, %c0_13] : memref<1x768xf32, #tpu.memory_space<vmem>>, vector<1x128xf32>
    %14 = vector.broadcast %13 : vector<1x128xf32> to vector<8x128xf32>
    %15 = arith.addf %12, %14 : vector<8x128xf32>
    %c1_i32 = arith.constant 1 : i32
    %c1_i32_14 = arith.constant 1 : i32
    %c384_i32 = arith.constant 384 : i32
    %c0_i32_15 = arith.constant 0 : i32
    %16 = tpu.memref_slice %arg5[%c384_i32, %c0_i32_15] : memref<1536x128xf32, #tpu.memory_space<any>> -> memref<384x128xf32, #tpu.memory_space<any>>
    %c0_i32_16 = arith.constant 0 : i32
    %c0_i32_17 = arith.constant 0 : i32
    %17 = tpu.memref_slice %arg8[%c1_i32, %c0_i32_16, %c0_i32_17] : memref<2x384x128xf32, #tpu.memory_space<vmem>> -> memref<1x384x128xf32, #tpu.memory_space<vmem>>
    %18 = tpu.memref_squeeze %17 : memref<1x384x128xf32, #tpu.memory_space<vmem>> -> memref<384x128xf32, #tpu.memory_space<vmem>>
    %19 = tpu.memref_slice %arg9[%c1_i32_14] : memref<2x!tpu.dma_semaphore, #tpu.memory_space<semaphore_mem>> -> memref<1x!tpu.dma_semaphore, #tpu.memory_space<semaphore_mem>>
    %20 = tpu.memref_squeeze %19 : memref<1x!tpu.dma_semaphore, #tpu.memory_space<semaphore_mem>> -> memref<!tpu.dma_semaphore, #tpu.memory_space<semaphore_mem>>
    tpu.enqueue_dma source(%16 : memref<384x128xf32, #tpu.memory_space<any>>) target(%18 : memref<384x128xf32, #tpu.memory_space<vmem>>) target_semaphore(%20 : memref<!tpu.dma_semaphore, #tpu.memory_space<semaphore_mem>>)
    %c0_i32_18 = arith.constant 0 : i32
    %c0_i32_19 = arith.constant 0 : i32
    %c0_i32_20 = arith.constant 0 : i32
    %c0_i32_21 = arith.constant 0 : i32
    %21 = tpu.memref_slice %arg5[%c0_i32_20, %c0_i32_21] : memref<1536x128xf32, #tpu.memory_space<any>> -> memref<384x128xf32, #tpu.memory_space<any>>
    %c0_i32_22 = arith.constant 0 : i32
    %c0_i32_23 = arith.constant 0 : i32
    %22 = tpu.memref_slice %arg8[%c0_i32_18, %c0_i32_22, %c0_i32_23] : memref<2x384x128xf32, #tpu.memory_space<vmem>> -> memref<1x384x128xf32, #tpu.memory_space<vmem>>
    %23 = tpu.memref_squeeze %22 : memref<1x384x128xf32, #tpu.memory_space<vmem>> -> memref<384x128xf32, #tpu.memory_space<vmem>>
    %24 = tpu.memref_slice %arg9[%c0_i32_19] : memref<2x!tpu.dma_semaphore, #tpu.memory_space<semaphore_mem>> -> memref<1x!tpu.dma_semaphore, #tpu.memory_space<semaphore_mem>>
    %25 = tpu.memref_squeeze %24 : memref<1x!tpu.dma_semaphore, #tpu.memory_space<semaphore_mem>> -> memref<!tpu.dma_semaphore, #tpu.memory_space<semaphore_mem>>
    tpu.wait_dma2 semaphore(%25 : memref<!tpu.dma_semaphore, #tpu.memory_space<semaphore_mem>>) src(%21 : memref<384x128xf32, #tpu.memory_space<any>>) dst(%23 : memref<384x128xf32, #tpu.memory_space<vmem>>)
    %c0_24 = arith.constant 0 : index
    %c0_25 = arith.constant 0 : index
    %26 = vector.load %arg1[%c0_24, %c0_25] : memref<8x1536xf32, #tpu.memory_space<vmem>>, vector<8x384xf32>
    %c0_26 = arith.constant 0 : index
    %c0_27 = arith.constant 0 : index
    %c0_28 = arith.constant 0 : index
    %27 = vector.load %arg8[%c0_26, %c0_27, %c0_28] : memref<2x384x128xf32, #tpu.memory_space<vmem>>, vector<1x384x128xf32>
    %28 = vector.shape_cast %27 : vector<1x384x128xf32> to vector<384x128xf32>
    %cst_29 = arith.constant dense<0.000000e+00> : vector<8x128xf32>
    %29 = tpu.matmul %26, %28, %cst_29 {dimension_numbers = #tpu.dot_dimension_numbers<[1], [0], [0], [1], [0, 0, 1, 1], [], []>} : vector<8x384xf32>, vector<384x128xf32>, vector<8x128xf32> -> vector<8x128xf32>
    %30 = arith.addf %15, %29 : vector<8x128xf32>
    %c0_i32_30 = arith.constant 0 : i32
    %c0_i32_31 = arith.constant 0 : i32
    %c768_i32 = arith.constant 768 : i32
    %c0_i32_32 = arith.constant 0 : i32
    %31 = tpu.memref_slice %arg5[%c768_i32, %c0_i32_32] : memref<1536x128xf32, #tpu.memory_space<any>> -> memref<384x128xf32, #tpu.memory_space<any>>
    %c0_i32_33 = arith.constant 0 : i32
    %c0_i32_34 = arith.constant 0 : i32
    %32 = tpu.memref_slice %arg8[%c0_i32_30, %c0_i32_33, %c0_i32_34] : memref<2x384x128xf32, #tpu.memory_space<vmem>> -> memref<1x384x128xf32, #tpu.memory_space<vmem>>
    %33 = tpu.memref_squeeze %32 : memref<1x384x128xf32, #tpu.memory_space<vmem>> -> memref<384x128xf32, #tpu.memory_space<vmem>>
    %34 = tpu.memref_slice %arg9[%c0_i32_31] : memref<2x!tpu.dma_semaphore, #tpu.memory_space<semaphore_mem>> -> memref<1x!tpu.dma_semaphore, #tpu.memory_space<semaphore_mem>>
    %35 = tpu.memref_squeeze %34 : memref<1x!tpu.dma_semaphore, #tpu.memory_space<semaphore_mem>> -> memref<!tpu.dma_semaphore, #tpu.memory_space<semaphore_mem>>
    tpu.enqueue_dma source(%31 : memref<384x128xf32, #tpu.memory_space<any>>) target(%33 : memref<384x128xf32, #tpu.memory_space<vmem>>) target_semaphore(%35 : memref<!tpu.dma_semaphore, #tpu.memory_space<semaphore_mem>>)
    %c1_i32_35 = arith.constant 1 : i32
    %c1_i32_36 = arith.constant 1 : i32
    %c0_i32_37 = arith.constant 0 : i32
    %c0_i32_38 = arith.constant 0 : i32
    %36 = tpu.memref_slice %arg5[%c0_i32_37, %c0_i32_38] : memref<1536x128xf32, #tpu.memory_space<any>> -> memref<384x128xf32, #tpu.memory_space<any>>
    %c0_i32_39 = arith.constant 0 : i32
    %c0_i32_40 = arith.constant 0 : i32
    %37 = tpu.memref_slice %arg8[%c1_i32_35, %c0_i32_39, %c0_i32_40] : memref<2x384x128xf32, #tpu.memory_space<vmem>> -> memref<1x384x128xf32, #tpu.memory_space<vmem>>
    %38 = tpu.memref_squeeze %37 : memref<1x384x128xf32, #tpu.memory_space<vmem>> -> memref<384x128xf32, #tpu.memory_space<vmem>>
    %39 = tpu.memref_slice %arg9[%c1_i32_36] : memref<2x!tpu.dma_semaphore, #tpu.memory_space<semaphore_mem>> -> memref<1x!tpu.dma_semaphore, #tpu.memory_space<semaphore_mem>>
    %40 = tpu.memref_squeeze %39 : memref<1x!tpu.dma_semaphore, #tpu.memory_space<semaphore_mem>> -> memref<!tpu.dma_semaphore, #tpu.memory_space<semaphore_mem>>
    tpu.wait_dma2 semaphore(%40 : memref<!tpu.dma_semaphore, #tpu.memory_space<semaphore_mem>>) src(%36 : memref<384x128xf32, #tpu.memory_space<any>>) dst(%38 : memref<384x128xf32, #tpu.memory_space<vmem>>)
    %c0_41 = arith.constant 0 : index
    %c384 = arith.constant 384 : index
    %41 = vector.load %arg1[%c0_41, %c384] : memref<8x1536xf32, #tpu.memory_space<vmem>>, vector<8x384xf32>
    %c1 = arith.constant 1 : index
    %c0_42 = arith.constant 0 : index
    %c0_43 = arith.constant 0 : index
    %42 = vector.load %arg8[%c1, %c0_42, %c0_43] : memref<2x384x128xf32, #tpu.memory_space<vmem>>, vector<1x384x128xf32>
    %43 = vector.shape_cast %42 : vector<1x384x128xf32> to vector<384x128xf32>
    %cst_44 = arith.constant dense<0.000000e+00> : vector<8x128xf32>
    %44 = tpu.matmul %41, %43, %cst_44 {dimension_numbers = #tpu.dot_dimension_numbers<[1], [0], [0], [1], [0, 0, 1, 1], [], []>} : vector<8x384xf32>, vector<384x128xf32>, vector<8x128xf32> -> vector<8x128xf32>
    %45 = arith.addf %30, %44 : vector<8x128xf32>
    %c1_i32_45 = arith.constant 1 : i32
    %c1_i32_46 = arith.constant 1 : i32
    %c1152_i32 = arith.constant 1152 : i32
    %c0_i32_47 = arith.constant 0 : i32
    %46 = tpu.memref_slice %arg5[%c1152_i32, %c0_i32_47] : memref<1536x128xf32, #tpu.memory_space<any>> -> memref<384x128xf32, #tpu.memory_space<any>>
    %c0_i32_48 = arith.constant 0 : i32
    %c0_i32_49 = arith.constant 0 : i32
    %47 = tpu.memref_slice %arg8[%c1_i32_45, %c0_i32_48, %c0_i32_49] : memref<2x384x128xf32, #tpu.memory_space<vmem>> -> memref<1x384x128xf32, #tpu.memory_space<vmem>>
    %48 = tpu.memref_squeeze %47 : memref<1x384x128xf32, #tpu.memory_space<vmem>> -> memref<384x128xf32, #tpu.memory_space<vmem>>
    %49 = tpu.memref_slice %arg9[%c1_i32_46] : memref<2x!tpu.dma_semaphore, #tpu.memory_space<semaphore_mem>> -> memref<1x!tpu.dma_semaphore, #tpu.memory_space<semaphore_mem>>
    %50 = tpu.memref_squeeze %49 : memref<1x!tpu.dma_semaphore, #tpu.memory_space<semaphore_mem>> -> memref<!tpu.dma_semaphore, #tpu.memory_space<semaphore_mem>>
    tpu.enqueue_dma source(%46 : memref<384x128xf32, #tpu.memory_space<any>>) target(%48 : memref<384x128xf32, #tpu.memory_space<vmem>>) target_semaphore(%50 : memref<!tpu.dma_semaphore, #tpu.memory_space<semaphore_mem>>)
    %c0_i32_50 = arith.constant 0 : i32
    %c0_i32_51 = arith.constant 0 : i32
    %c0_i32_52 = arith.constant 0 : i32
    %c0_i32_53 = arith.constant 0 : i32
    %51 = tpu.memref_slice %arg5[%c0_i32_52, %c0_i32_53] : memref<1536x128xf32, #tpu.memory_space<any>> -> memref<384x128xf32, #tpu.memory_space<any>>
    %c0_i32_54 = arith.constant 0 : i32
    %c0_i32_55 = arith.constant 0 : i32
    %52 = tpu.memref_slice %arg8[%c0_i32_50, %c0_i32_54, %c0_i32_55] : memref<2x384x128xf32, #tpu.memory_space<vmem>> -> memref<1x384x128xf32, #tpu.memory_space<vmem>>
    %53 = tpu.memref_squeeze %52 : memref<1x384x128xf32, #tpu.memory_space<vmem>> -> memref<384x128xf32, #tpu.memory_space<vmem>>
    %54 = tpu.memref_slice %arg9[%c0_i32_51] : memref<2x!tpu.dma_semaphore, #tpu.memory_space<semaphore_mem>> -> memref<1x!tpu.dma_semaphore, #tpu.memory_space<semaphore_mem>>
    %55 = tpu.memref_squeeze %54 : memref<1x!tpu.dma_semaphore, #tpu.memory_space<semaphore_mem>> -> memref<!tpu.dma_semaphore, #tpu.memory_space<semaphore_mem>>
    tpu.wait_dma2 semaphore(%55 : memref<!tpu.dma_semaphore, #tpu.memory_space<semaphore_mem>>) src(%51 : memref<384x128xf32, #tpu.memory_space<any>>) dst(%53 : memref<384x128xf32, #tpu.memory_space<vmem>>)
    %c0_56 = arith.constant 0 : index
    %c768 = arith.constant 768 : index
    %56 = vector.load %arg1[%c0_56, %c768] : memref<8x1536xf32, #tpu.memory_space<vmem>>, vector<8x384xf32>
    %c0_57 = arith.constant 0 : index
    %c0_58 = arith.constant 0 : index
    %c0_59 = arith.constant 0 : index
    %57 = vector.load %arg8[%c0_57, %c0_58, %c0_59] : memref<2x384x128xf32, #tpu.memory_space<vmem>>, vector<1x384x128xf32>
    %58 = vector.shape_cast %57 : vector<1x384x128xf32> to vector<384x128xf32>
    %cst_60 = arith.constant dense<0.000000e+00> : vector<8x128xf32>
    %59 = tpu.matmul %56, %58, %cst_60 {dimension_numbers = #tpu.dot_dimension_numbers<[1], [0], [0], [1], [0, 0, 1, 1], [], []>} : vector<8x384xf32>, vector<384x128xf32>, vector<8x128xf32> -> vector<8x128xf32>
    %60 = arith.addf %45, %59 : vector<8x128xf32>
    %c1_i32_61 = arith.constant 1 : i32
    %c1_i32_62 = arith.constant 1 : i32
    %c0_i32_63 = arith.constant 0 : i32
    %c0_i32_64 = arith.constant 0 : i32
    %61 = tpu.memref_slice %arg5[%c0_i32_63, %c0_i32_64] : memref<1536x128xf32, #tpu.memory_space<any>> -> memref<384x128xf32, #tpu.memory_space<any>>
    %c0_i32_65 = arith.constant 0 : i32
    %c0_i32_66 = arith.constant 0 : i32
    %62 = tpu.memref_slice %arg8[%c1_i32_61, %c0_i32_65, %c0_i32_66] : memref<2x384x128xf32, #tpu.memory_space<vmem>> -> memref<1x384x128xf32, #tpu.memory_space<vmem>>
    %63 = tpu.memref_squeeze %62 : memref<1x384x128xf32, #tpu.memory_space<vmem>> -> memref<384x128xf32, #tpu.memory_space<vmem>>
    %64 = tpu.memref_slice %arg9[%c1_i32_62] : memref<2x!tpu.dma_semaphore, #tpu.memory_space<semaphore_mem>> -> memref<1x!tpu.dma_semaphore, #tpu.memory_space<semaphore_mem>>
    %65 = tpu.memref_squeeze %64 : memref<1x!tpu.dma_semaphore, #tpu.memory_space<semaphore_mem>> -> memref<!tpu.dma_semaphore, #tpu.memory_space<semaphore_mem>>
    tpu.wait_dma2 semaphore(%65 : memref<!tpu.dma_semaphore, #tpu.memory_space<semaphore_mem>>) src(%61 : memref<384x128xf32, #tpu.memory_space<any>>) dst(%63 : memref<384x128xf32, #tpu.memory_space<vmem>>)
    %c0_67 = arith.constant 0 : index
    %c1152 = arith.constant 1152 : index
    %66 = vector.load %arg1[%c0_67, %c1152] : memref<8x1536xf32, #tpu.memory_space<vmem>>, vector<8x384xf32>
    %c1_68 = arith.constant 1 : index
    %c0_69 = arith.constant 0 : index
    %c0_70 = arith.constant 0 : index
    %67 = vector.load %arg8[%c1_68, %c0_69, %c0_70] : memref<2x384x128xf32, #tpu.memory_space<vmem>>, vector<1x384x128xf32>
    %68 = vector.shape_cast %67 : vector<1x384x128xf32> to vector<384x128xf32>
    %cst_71 = arith.constant dense<0.000000e+00> : vector<8x128xf32>
    %69 = tpu.matmul %66, %68, %cst_71 {dimension_numbers = #tpu.dot_dimension_numbers<[1], [0], [0], [1], [0, 0, 1, 1], [], []>} : vector<8x384xf32>, vector<384x128xf32>, vector<8x128xf32> -> vector<8x128xf32>
    %70 = arith.addf %60, %69 : vector<8x128xf32>
    %c0_72 = arith.constant 0 : index
    %c0_73 = arith.constant 0 : index
    %71 = vector.load %arg3[%c0_72, %c0_73] : memref<128x640xf32, #tpu.memory_space<vmem>>, vector<128x512xf32>
    %cst_74 = arith.constant 0.000000e+00 : f32
    %72 = vector.broadcast %cst_74 : f32 to vector<8x128xf32>
    %c0_75 = arith.constant 0 : index
    %c0_76 = arith.constant 0 : index
    %73 = vector.load %arg7[%c0_75, %c0_76] : memref<64x512xf32, #tpu.memory_space<vmem>>, vector<8x512xf32>
    %cst_77 = arith.constant dense<0.000000e+00> : vector<8x512xf32>
    %74 = tpu.matmul %70, %71, %cst_77 {dimension_numbers = #tpu.dot_dimension_numbers<[1], [0], [0], [1], [0, 0, 1, 1], [], []>} : vector<8x128xf32>, vector<128x512xf32>, vector<8x512xf32> -> vector<8x512xf32>
    %75 = arith.addf %73, %74 : vector<8x512xf32>
    %76 = vector.extract_strided_slice %75 {offsets = [0, 0], sizes = [8, 128], strides = [1, 1]} : vector<8x512xf32> to vector<8x128xf32>
    %cst_78 = arith.constant 5.000000e-01 : f32
    %77 = vector.broadcast %cst_78 : f32 to vector<8x128xf32>
    %78 = arith.mulf %77, %76 : vector<8x128xf32>
    %79 = math.tanh %78 : vector<8x128xf32>
    %cst_79 = arith.constant 5.000000e-01 : f32
    %80 = vector.broadcast %cst_79 : f32 to vector<8x128xf32>
    %81 = arith.mulf %80, %79 : vector<8x128xf32>
    %cst_80 = arith.constant 5.000000e-01 : f32
    %82 = vector.broadcast %cst_80 : f32 to vector<8x128xf32>
    %83 = arith.addf %81, %82 : vector<8x128xf32>
    %84 = vector.extract_strided_slice %75 {offsets = [0, 128], sizes = [8, 128], strides = [1, 1]} : vector<8x512xf32> to vector<8x128xf32>
    %cst_81 = arith.constant 5.000000e-01 : f32
    %85 = vector.broadcast %cst_81 : f32 to vector<8x128xf32>
    %86 = arith.mulf %85, %84 : vector<8x128xf32>
    %87 = math.tanh %86 : vector<8x128xf32>
    %cst_82 = arith.constant 5.000000e-01 : f32
    %88 = vector.broadcast %cst_82 : f32 to vector<8x128xf32>
    %89 = arith.mulf %88, %87 : vector<8x128xf32>
    %cst_83 = arith.constant 5.000000e-01 : f32
    %90 = vector.broadcast %cst_83 : f32 to vector<8x128xf32>
    %91 = arith.addf %89, %90 : vector<8x128xf32>
    %92 = vector.extract_strided_slice %75 {offsets = [0, 256], sizes = [8, 128], strides = [1, 1]} : vector<8x512xf32> to vector<8x128xf32>
    %93 = math.tanh %92 : vector<8x128xf32>
    %94 = vector.extract_strided_slice %75 {offsets = [0, 384], sizes = [8, 128], strides = [1, 1]} : vector<8x512xf32> to vector<8x128xf32>
    %cst_84 = arith.constant 5.000000e-01 : f32
    %95 = vector.broadcast %cst_84 : f32 to vector<8x128xf32>
    %96 = arith.mulf %95, %94 : vector<8x128xf32>
    %97 = math.tanh %96 : vector<8x128xf32>
    %cst_85 = arith.constant 5.000000e-01 : f32
    %98 = vector.broadcast %cst_85 : f32 to vector<8x128xf32>
    %99 = arith.mulf %98, %97 : vector<8x128xf32>
    %cst_86 = arith.constant 5.000000e-01 : f32
    %100 = vector.broadcast %cst_86 : f32 to vector<8x128xf32>
    %101 = arith.addf %99, %100 : vector<8x128xf32>
    %102 = arith.mulf %91, %72 : vector<8x128xf32>
    %103 = arith.mulf %83, %93 : vector<8x128xf32>
    %104 = arith.addf %102, %103 : vector<8x128xf32>
    %105 = math.tanh %104 : vector<8x128xf32>
    %106 = arith.mulf %101, %105 : vector<8x128xf32>
    %c8 = arith.constant 8 : index
    %c0_87 = arith.constant 0 : index
    %107 = vector.load %arg7[%c8, %c0_87] : memref<64x512xf32, #tpu.memory_space<vmem>>, vector<8x512xf32>
    %cst_88 = arith.constant dense<0.000000e+00> : vector<8x512xf32>
    %108 = tpu.matmul %106, %71, %cst_88 {dimension_numbers = #tpu.dot_dimension_numbers<[1], [0], [0], [1], [0, 0, 1, 1], [], []>} : vector<8x128xf32>, vector<128x512xf32>, vector<8x512xf32> -> vector<8x512xf32>
    %109 = arith.addf %107, %108 : vector<8x512xf32>
    %110 = vector.extract_strided_slice %109 {offsets = [0, 0], sizes = [8, 128], strides = [1, 1]} : vector<8x512xf32> to vector<8x128xf32>
    %cst_89 = arith.constant 5.000000e-01 : f32
    %111 = vector.broadcast %cst_89 : f32 to vector<8x128xf32>
    %112 = arith.mulf %111, %110 : vector<8x128xf32>
    %113 = math.tanh %112 : vector<8x128xf32>
    %cst_90 = arith.constant 5.000000e-01 : f32
    %114 = vector.broadcast %cst_90 : f32 to vector<8x128xf32>
    %115 = arith.mulf %114, %113 : vector<8x128xf32>
    %cst_91 = arith.constant 5.000000e-01 : f32
    %116 = vector.broadcast %cst_91 : f32 to vector<8x128xf32>
    %117 = arith.addf %115, %116 : vector<8x128xf32>
    %118 = vector.extract_strided_slice %109 {offsets = [0, 128], sizes = [8, 128], strides = [1, 1]} : vector<8x512xf32> to vector<8x128xf32>
    %cst_92 = arith.constant 5.000000e-01 : f32
    %119 = vector.broadcast %cst_92 : f32 to vector<8x128xf32>
    %120 = arith.mulf %119, %118 : vector<8x128xf32>
    %121 = math.tanh %120 : vector<8x128xf32>
    %cst_93 = arith.constant 5.000000e-01 : f32
    %122 = vector.broadcast %cst_93 : f32 to vector<8x128xf32>
    %123 = arith.mulf %122, %121 : vector<8x128xf32>
    %cst_94 = arith.constant 5.000000e-01 : f32
    %124 = vector.broadcast %cst_94 : f32 to vector<8x128xf32>
    %125 = arith.addf %123, %124 : vector<8x128xf32>
    %126 = vector.extract_strided_slice %109 {offsets = [0, 256], sizes = [8, 128], strides = [1, 1]} : vector<8x512xf32> to vector<8x128xf32>
    %127 = math.tanh %126 : vector<8x128xf32>
    %128 = vector.extract_strided_slice %109 {offsets = [0, 384], sizes = [8, 128], strides = [1, 1]} : vector<8x512xf32> to vector<8x128xf32>
    %cst_95 = arith.constant 5.000000e-01 : f32
    %129 = vector.broadcast %cst_95 : f32 to vector<8x128xf32>
    %130 = arith.mulf %129, %128 : vector<8x128xf32>
    %131 = math.tanh %130 : vector<8x128xf32>
    %cst_96 = arith.constant 5.000000e-01 : f32
    %132 = vector.broadcast %cst_96 : f32 to vector<8x128xf32>
    %133 = arith.mulf %132, %131 : vector<8x128xf32>
    %cst_97 = arith.constant 5.000000e-01 : f32
    %134 = vector.broadcast %cst_97 : f32 to vector<8x128xf32>
    %135 = arith.addf %133, %134 : vector<8x128xf32>
    %136 = arith.mulf %125, %104 : vector<8x128xf32>
    %137 = arith.mulf %117, %127 : vector<8x128xf32>
    %138 = arith.addf %136, %137 : vector<8x128xf32>
    %139 = math.tanh %138 : vector<8x128xf32>
    %140 = arith.mulf %135, %139 : vector<8x128xf32>
    %c16 = arith.constant 16 : index
    %c0_98 = arith.constant 0 : index
    %141 = vector.load %arg7[%c16, %c0_98] : memref<64x512xf32, #tpu.memory_space<vmem>>, vector<8x512xf32>
    %cst_99 = arith.constant dense<0.000000e+00> : vector<8x512xf32>
    %142 = tpu.matmul %140, %71, %cst_99 {dimension_numbers = #tpu.dot_dimension_numbers<[1], [0], [0], [1], [0, 0, 1, 1], [], []>} : vector<8x128xf32>, vector<128x512xf32>, vector<8x512xf32> -> vector<8x512xf32>
    %143 = arith.addf %141, %142 : vector<8x512xf32>
    %144 = vector.extract_strided_slice %143 {offsets = [0, 0], sizes = [8, 128], strides = [1, 1]} : vector<8x512xf32> to vector<8x128xf32>
    %cst_100 = arith.constant 5.000000e-01 : f32
    %145 = vector.broadcast %cst_100 : f32 to vector<8x128xf32>
    %146 = arith.mulf %145, %144 : vector<8x128xf32>
    %147 = math.tanh %146 : vector<8x128xf32>
    %cst_101 = arith.constant 5.000000e-01 : f32
    %148 = vector.broadcast %cst_101 : f32 to vector<8x128xf32>
    %149 = arith.mulf %148, %147 : vector<8x128xf32>
    %cst_102 = arith.constant 5.000000e-01 : f32
    %150 = vector.broadcast %cst_102 : f32 to vector<8x128xf32>
    %151 = arith.addf %149, %150 : vector<8x128xf32>
    %152 = vector.extract_strided_slice %143 {offsets = [0, 128], sizes = [8, 128], strides = [1, 1]} : vector<8x512xf32> to vector<8x128xf32>
    %cst_103 = arith.constant 5.000000e-01 : f32
    %153 = vector.broadcast %cst_103 : f32 to vector<8x128xf32>
    %154 = arith.mulf %153, %152 : vector<8x128xf32>
    %155 = math.tanh %154 : vector<8x128xf32>
    %cst_104 = arith.constant 5.000000e-01 : f32
    %156 = vector.broadcast %cst_104 : f32 to vector<8x128xf32>
    %157 = arith.mulf %156, %155 : vector<8x128xf32>
    %cst_105 = arith.constant 5.000000e-01 : f32
    %158 = vector.broadcast %cst_105 : f32 to vector<8x128xf32>
    %159 = arith.addf %157, %158 : vector<8x128xf32>
    %160 = vector.extract_strided_slice %143 {offsets = [0, 256], sizes = [8, 128], strides = [1, 1]} : vector<8x512xf32> to vector<8x128xf32>
    %161 = math.tanh %160 : vector<8x128xf32>
    %162 = vector.extract_strided_slice %143 {offsets = [0, 384], sizes = [8, 128], strides = [1, 1]} : vector<8x512xf32> to vector<8x128xf32>
    %cst_106 = arith.constant 5.000000e-01 : f32
    %163 = vector.broadcast %cst_106 : f32 to vector<8x128xf32>
    %164 = arith.mulf %163, %162 : vector<8x128xf32>
    %165 = math.tanh %164 : vector<8x128xf32>
    %cst_107 = arith.constant 5.000000e-01 : f32
    %166 = vector.broadcast %cst_107 : f32 to vector<8x128xf32>
    %167 = arith.mulf %166, %165 : vector<8x128xf32>
    %cst_108 = arith.constant 5.000000e-01 : f32
    %168 = vector.broadcast %cst_108 : f32 to vector<8x128xf32>
    %169 = arith.addf %167, %168 : vector<8x128xf32>
    %170 = arith.mulf %159, %138 : vector<8x128xf32>
    %171 = arith.mulf %151, %161 : vector<8x128xf32>
    %172 = arith.addf %170, %171 : vector<8x128xf32>
    %173 = math.tanh %172 : vector<8x128xf32>
    %174 = arith.mulf %169, %173 : vector<8x128xf32>
    %c24 = arith.constant 24 : index
    %c0_109 = arith.constant 0 : index
    %175 = vector.load %arg7[%c24, %c0_109] : memref<64x512xf32, #tpu.memory_space<vmem>>, vector<8x512xf32>
    %cst_110 = arith.constant dense<0.000000e+00> : vector<8x512xf32>
    %176 = tpu.matmul %174, %71, %cst_110 {dimension_numbers = #tpu.dot_dimension_numbers<[1], [0], [0], [1], [0, 0, 1, 1], [], []>} : vector<8x128xf32>, vector<128x512xf32>, vector<8x512xf32> -> vector<8x512xf32>
    %177 = arith.addf %175, %176 : vector<8x512xf32>
    %178 = vector.extract_strided_slice %177 {offsets = [0, 0], sizes = [8, 128], strides = [1, 1]} : vector<8x512xf32> to vector<8x128xf32>
    %cst_111 = arith.constant 5.000000e-01 : f32
    %179 = vector.broadcast %cst_111 : f32 to vector<8x128xf32>
    %180 = arith.mulf %179, %178 : vector<8x128xf32>
    %181 = math.tanh %180 : vector<8x128xf32>
    %cst_112 = arith.constant 5.000000e-01 : f32
    %182 = vector.broadcast %cst_112 : f32 to vector<8x128xf32>
    %183 = arith.mulf %182, %181 : vector<8x128xf32>
    %cst_113 = arith.constant 5.000000e-01 : f32
    %184 = vector.broadcast %cst_113 : f32 to vector<8x128xf32>
    %185 = arith.addf %183, %184 : vector<8x128xf32>
    %186 = vector.extract_strided_slice %177 {offsets = [0, 128], sizes = [8, 128], strides = [1, 1]} : vector<8x512xf32> to vector<8x128xf32>
    %cst_114 = arith.constant 5.000000e-01 : f32
    %187 = vector.broadcast %cst_114 : f32 to vector<8x128xf32>
    %188 = arith.mulf %187, %186 : vector<8x128xf32>
    %189 = math.tanh %188 : vector<8x128xf32>
    %cst_115 = arith.constant 5.000000e-01 : f32
    %190 = vector.broadcast %cst_115 : f32 to vector<8x128xf32>
    %191 = arith.mulf %190, %189 : vector<8x128xf32>
    %cst_116 = arith.constant 5.000000e-01 : f32
    %192 = vector.broadcast %cst_116 : f32 to vector<8x128xf32>
    %193 = arith.addf %191, %192 : vector<8x128xf32>
    %194 = vector.extract_strided_slice %177 {offsets = [0, 256], sizes = [8, 128], strides = [1, 1]} : vector<8x512xf32> to vector<8x128xf32>
    %195 = math.tanh %194 : vector<8x128xf32>
    %196 = vector.extract_strided_slice %177 {offsets = [0, 384], sizes = [8, 128], strides = [1, 1]} : vector<8x512xf32> to vector<8x128xf32>
    %cst_117 = arith.constant 5.000000e-01 : f32
    %197 = vector.broadcast %cst_117 : f32 to vector<8x128xf32>
    %198 = arith.mulf %197, %196 : vector<8x128xf32>
    %199 = math.tanh %198 : vector<8x128xf32>
    %cst_118 = arith.constant 5.000000e-01 : f32
    %200 = vector.broadcast %cst_118 : f32 to vector<8x128xf32>
    %201 = arith.mulf %200, %199 : vector<8x128xf32>
    %cst_119 = arith.constant 5.000000e-01 : f32
    %202 = vector.broadcast %cst_119 : f32 to vector<8x128xf32>
    %203 = arith.addf %201, %202 : vector<8x128xf32>
    %204 = arith.mulf %193, %172 : vector<8x128xf32>
    %205 = arith.mulf %185, %195 : vector<8x128xf32>
    %206 = arith.addf %204, %205 : vector<8x128xf32>
    %207 = math.tanh %206 : vector<8x128xf32>
    %208 = arith.mulf %203, %207 : vector<8x128xf32>
    %c32 = arith.constant 32 : index
    %c0_120 = arith.constant 0 : index
    %209 = vector.load %arg7[%c32, %c0_120] : memref<64x512xf32, #tpu.memory_space<vmem>>, vector<8x512xf32>
    %cst_121 = arith.constant dense<0.000000e+00> : vector<8x512xf32>
    %210 = tpu.matmul %208, %71, %cst_121 {dimension_numbers = #tpu.dot_dimension_numbers<[1], [0], [0], [1], [0, 0, 1, 1], [], []>} : vector<8x128xf32>, vector<128x512xf32>, vector<8x512xf32> -> vector<8x512xf32>
    %211 = arith.addf %209, %210 : vector<8x512xf32>
    %212 = vector.extract_strided_slice %211 {offsets = [0, 0], sizes = [8, 128], strides = [1, 1]} : vector<8x512xf32> to vector<8x128xf32>
    %cst_122 = arith.constant 5.000000e-01 : f32
    %213 = vector.broadcast %cst_122 : f32 to vector<8x128xf32>
    %214 = arith.mulf %213, %212 : vector<8x128xf32>
    %215 = math.tanh %214 : vector<8x128xf32>
    %cst_123 = arith.constant 5.000000e-01 : f32
    %216 = vector.broadcast %cst_123 : f32 to vector<8x128xf32>
    %217 = arith.mulf %216, %215 : vector<8x128xf32>
    %cst_124 = arith.constant 5.000000e-01 : f32
    %218 = vector.broadcast %cst_124 : f32 to vector<8x128xf32>
    %219 = arith.addf %217, %218 : vector<8x128xf32>
    %220 = vector.extract_strided_slice %211 {offsets = [0, 128], sizes = [8, 128], strides = [1, 1]} : vector<8x512xf32> to vector<8x128xf32>
    %cst_125 = arith.constant 5.000000e-01 : f32
    %221 = vector.broadcast %cst_125 : f32 to vector<8x128xf32>
    %222 = arith.mulf %221, %220 : vector<8x128xf32>
    %223 = math.tanh %222 : vector<8x128xf32>
    %cst_126 = arith.constant 5.000000e-01 : f32
    %224 = vector.broadcast %cst_126 : f32 to vector<8x128xf32>
    %225 = arith.mulf %224, %223 : vector<8x128xf32>
    %cst_127 = arith.constant 5.000000e-01 : f32
    %226 = vector.broadcast %cst_127 : f32 to vector<8x128xf32>
    %227 = arith.addf %225, %226 : vector<8x128xf32>
    %228 = vector.extract_strided_slice %211 {offsets = [0, 256], sizes = [8, 128], strides = [1, 1]} : vector<8x512xf32> to vector<8x128xf32>
    %229 = math.tanh %228 : vector<8x128xf32>
    %230 = vector.extract_strided_slice %211 {offsets = [0, 384], sizes = [8, 128], strides = [1, 1]} : vector<8x512xf32> to vector<8x128xf32>
    %cst_128 = arith.constant 5.000000e-01 : f32
    %231 = vector.broadcast %cst_128 : f32 to vector<8x128xf32>
    %232 = arith.mulf %231, %230 : vector<8x128xf32>
    %233 = math.tanh %232 : vector<8x128xf32>
    %cst_129 = arith.constant 5.000000e-01 : f32
    %234 = vector.broadcast %cst_129 : f32 to vector<8x128xf32>
    %235 = arith.mulf %234, %233 : vector<8x128xf32>
    %cst_130 = arith.constant 5.000000e-01 : f32
    %236 = vector.broadcast %cst_130 : f32 to vector<8x128xf32>
    %237 = arith.addf %235, %236 : vector<8x128xf32>
    %238 = arith.mulf %227, %206 : vector<8x128xf32>
    %239 = arith.mulf %219, %229 : vector<8x128xf32>
    %240 = arith.addf %238, %239 : vector<8x128xf32>
    %241 = math.tanh %240 : vector<8x128xf32>
    %242 = arith.mulf %237, %241 : vector<8x128xf32>
    %c40 = arith.constant 40 : index
    %c0_131 = arith.constant 0 : index
    %243 = vector.load %arg7[%c40, %c0_131] : memref<64x512xf32, #tpu.memory_space<vmem>>, vector<8x512xf32>
    %cst_132 = arith.constant dense<0.000000e+00> : vector<8x512xf32>
    %244 = tpu.matmul %242, %71, %cst_132 {dimension_numbers = #tpu.dot_dimension_numbers<[1], [0], [0], [1], [0, 0, 1, 1], [], []>} : vector<8x128xf32>, vector<128x512xf32>, vector<8x512xf32> -> vector<8x512xf32>
    %245 = arith.addf %243, %244 : vector<8x512xf32>
    %246 = vector.extract_strided_slice %245 {offsets = [0, 0], sizes = [8, 128], strides = [1, 1]} : vector<8x512xf32> to vector<8x128xf32>
    %cst_133 = arith.constant 5.000000e-01 : f32
    %247 = vector.broadcast %cst_133 : f32 to vector<8x128xf32>
    %248 = arith.mulf %247, %246 : vector<8x128xf32>
    %249 = math.tanh %248 : vector<8x128xf32>
    %cst_134 = arith.constant 5.000000e-01 : f32
    %250 = vector.broadcast %cst_134 : f32 to vector<8x128xf32>
    %251 = arith.mulf %250, %249 : vector<8x128xf32>
    %cst_135 = arith.constant 5.000000e-01 : f32
    %252 = vector.broadcast %cst_135 : f32 to vector<8x128xf32>
    %253 = arith.addf %251, %252 : vector<8x128xf32>
    %254 = vector.extract_strided_slice %245 {offsets = [0, 128], sizes = [8, 128], strides = [1, 1]} : vector<8x512xf32> to vector<8x128xf32>
    %cst_136 = arith.constant 5.000000e-01 : f32
    %255 = vector.broadcast %cst_136 : f32 to vector<8x128xf32>
    %256 = arith.mulf %255, %254 : vector<8x128xf32>
    %257 = math.tanh %256 : vector<8x128xf32>
    %cst_137 = arith.constant 5.000000e-01 : f32
    %258 = vector.broadcast %cst_137 : f32 to vector<8x128xf32>
    %259 = arith.mulf %258, %257 : vector<8x128xf32>
    %cst_138 = arith.constant 5.000000e-01 : f32
    %260 = vector.broadcast %cst_138 : f32 to vector<8x128xf32>
    %261 = arith.addf %259, %260 : vector<8x128xf32>
    %262 = vector.extract_strided_slice %245 {offsets = [0, 256], sizes = [8, 128], strides = [1, 1]} : vector<8x512xf32> to vector<8x128xf32>
    %263 = math.tanh %262 : vector<8x128xf32>
    %264 = vector.extract_strided_slice %245 {offsets = [0, 384], sizes = [8, 128], strides = [1, 1]} : vector<8x512xf32> to vector<8x128xf32>
    %cst_139 = arith.constant 5.000000e-01 : f32
    %265 = vector.broadcast %cst_139 : f32 to vector<8x128xf32>
    %266 = arith.mulf %265, %264 : vector<8x128xf32>
    %267 = math.tanh %266 : vector<8x128xf32>
    %cst_140 = arith.constant 5.000000e-01 : f32
    %268 = vector.broadcast %cst_140 : f32 to vector<8x128xf32>
    %269 = arith.mulf %268, %267 : vector<8x128xf32>
    %cst_141 = arith.constant 5.000000e-01 : f32
    %270 = vector.broadcast %cst_141 : f32 to vector<8x128xf32>
    %271 = arith.addf %269, %270 : vector<8x128xf32>
    %272 = arith.mulf %261, %240 : vector<8x128xf32>
    %273 = arith.mulf %253, %263 : vector<8x128xf32>
    %274 = arith.addf %272, %273 : vector<8x128xf32>
    %275 = math.tanh %274 : vector<8x128xf32>
    %276 = arith.mulf %271, %275 : vector<8x128xf32>
    %c48 = arith.constant 48 : index
    %c0_142 = arith.constant 0 : index
    %277 = vector.load %arg7[%c48, %c0_142] : memref<64x512xf32, #tpu.memory_space<vmem>>, vector<8x512xf32>
    %cst_143 = arith.constant dense<0.000000e+00> : vector<8x512xf32>
    %278 = tpu.matmul %276, %71, %cst_143 {dimension_numbers = #tpu.dot_dimension_numbers<[1], [0], [0], [1], [0, 0, 1, 1], [], []>} : vector<8x128xf32>, vector<128x512xf32>, vector<8x512xf32> -> vector<8x512xf32>
    %279 = arith.addf %277, %278 : vector<8x512xf32>
    %280 = vector.extract_strided_slice %279 {offsets = [0, 0], sizes = [8, 128], strides = [1, 1]} : vector<8x512xf32> to vector<8x128xf32>
    %cst_144 = arith.constant 5.000000e-01 : f32
    %281 = vector.broadcast %cst_144 : f32 to vector<8x128xf32>
    %282 = arith.mulf %281, %280 : vector<8x128xf32>
    %283 = math.tanh %282 : vector<8x128xf32>
    %cst_145 = arith.constant 5.000000e-01 : f32
    %284 = vector.broadcast %cst_145 : f32 to vector<8x128xf32>
    %285 = arith.mulf %284, %283 : vector<8x128xf32>
    %cst_146 = arith.constant 5.000000e-01 : f32
    %286 = vector.broadcast %cst_146 : f32 to vector<8x128xf32>
    %287 = arith.addf %285, %286 : vector<8x128xf32>
    %288 = vector.extract_strided_slice %279 {offsets = [0, 128], sizes = [8, 128], strides = [1, 1]} : vector<8x512xf32> to vector<8x128xf32>
    %cst_147 = arith.constant 5.000000e-01 : f32
    %289 = vector.broadcast %cst_147 : f32 to vector<8x128xf32>
    %290 = arith.mulf %289, %288 : vector<8x128xf32>
    %291 = math.tanh %290 : vector<8x128xf32>
    %cst_148 = arith.constant 5.000000e-01 : f32
    %292 = vector.broadcast %cst_148 : f32 to vector<8x128xf32>
    %293 = arith.mulf %292, %291 : vector<8x128xf32>
    %cst_149 = arith.constant 5.000000e-01 : f32
    %294 = vector.broadcast %cst_149 : f32 to vector<8x128xf32>
    %295 = arith.addf %293, %294 : vector<8x128xf32>
    %296 = vector.extract_strided_slice %279 {offsets = [0, 256], sizes = [8, 128], strides = [1, 1]} : vector<8x512xf32> to vector<8x128xf32>
    %297 = math.tanh %296 : vector<8x128xf32>
    %298 = vector.extract_strided_slice %279 {offsets = [0, 384], sizes = [8, 128], strides = [1, 1]} : vector<8x512xf32> to vector<8x128xf32>
    %cst_150 = arith.constant 5.000000e-01 : f32
    %299 = vector.broadcast %cst_150 : f32 to vector<8x128xf32>
    %300 = arith.mulf %299, %298 : vector<8x128xf32>
    %301 = math.tanh %300 : vector<8x128xf32>
    %cst_151 = arith.constant 5.000000e-01 : f32
    %302 = vector.broadcast %cst_151 : f32 to vector<8x128xf32>
    %303 = arith.mulf %302, %301 : vector<8x128xf32>
    %cst_152 = arith.constant 5.000000e-01 : f32
    %304 = vector.broadcast %cst_152 : f32 to vector<8x128xf32>
    %305 = arith.addf %303, %304 : vector<8x128xf32>
    %306 = arith.mulf %295, %274 : vector<8x128xf32>
    %307 = arith.mulf %287, %297 : vector<8x128xf32>
    %308 = arith.addf %306, %307 : vector<8x128xf32>
    %309 = math.tanh %308 : vector<8x128xf32>
    %310 = arith.mulf %305, %309 : vector<8x128xf32>
    %c56 = arith.constant 56 : index
    %c0_153 = arith.constant 0 : index
    %311 = vector.load %arg7[%c56, %c0_153] : memref<64x512xf32, #tpu.memory_space<vmem>>, vector<8x512xf32>
    %cst_154 = arith.constant dense<0.000000e+00> : vector<8x512xf32>
    %312 = tpu.matmul %310, %71, %cst_154 {dimension_numbers = #tpu.dot_dimension_numbers<[1], [0], [0], [1], [0, 0, 1, 1], [], []>} : vector<8x128xf32>, vector<128x512xf32>, vector<8x512xf32> -> vector<8x512xf32>
    %313 = arith.addf %311, %312 : vector<8x512xf32>
    %314 = vector.extract_strided_slice %313 {offsets = [0, 0], sizes = [8, 128], strides = [1, 1]} : vector<8x512xf32> to vector<8x128xf32>
    %cst_155 = arith.constant 5.000000e-01 : f32
    %315 = vector.broadcast %cst_155 : f32 to vector<8x128xf32>
    %316 = arith.mulf %315, %314 : vector<8x128xf32>
    %317 = math.tanh %316 : vector<8x128xf32>
    %cst_156 = arith.constant 5.000000e-01 : f32
    %318 = vector.broadcast %cst_156 : f32 to vector<8x128xf32>
    %319 = arith.mulf %318, %317 : vector<8x128xf32>
    %cst_157 = arith.constant 5.000000e-01 : f32
    %320 = vector.broadcast %cst_157 : f32 to vector<8x128xf32>
    %321 = arith.addf %319, %320 : vector<8x128xf32>
    %322 = vector.extract_strided_slice %313 {offsets = [0, 128], sizes = [8, 128], strides = [1, 1]} : vector<8x512xf32> to vector<8x128xf32>
    %cst_158 = arith.constant 5.000000e-01 : f32
    %323 = vector.broadcast %cst_158 : f32 to vector<8x128xf32>
    %324 = arith.mulf %323, %322 : vector<8x128xf32>
    %325 = math.tanh %324 : vector<8x128xf32>
    %cst_159 = arith.constant 5.000000e-01 : f32
    %326 = vector.broadcast %cst_159 : f32 to vector<8x128xf32>
    %327 = arith.mulf %326, %325 : vector<8x128xf32>
    %cst_160 = arith.constant 5.000000e-01 : f32
    %328 = vector.broadcast %cst_160 : f32 to vector<8x128xf32>
    %329 = arith.addf %327, %328 : vector<8x128xf32>
    %330 = vector.extract_strided_slice %313 {offsets = [0, 256], sizes = [8, 128], strides = [1, 1]} : vector<8x512xf32> to vector<8x128xf32>
    %331 = math.tanh %330 : vector<8x128xf32>
    %332 = vector.extract_strided_slice %313 {offsets = [0, 384], sizes = [8, 128], strides = [1, 1]} : vector<8x512xf32> to vector<8x128xf32>
    %cst_161 = arith.constant 5.000000e-01 : f32
    %333 = vector.broadcast %cst_161 : f32 to vector<8x128xf32>
    %334 = arith.mulf %333, %332 : vector<8x128xf32>
    %335 = math.tanh %334 : vector<8x128xf32>
    %cst_162 = arith.constant 5.000000e-01 : f32
    %336 = vector.broadcast %cst_162 : f32 to vector<8x128xf32>
    %337 = arith.mulf %336, %335 : vector<8x128xf32>
    %cst_163 = arith.constant 5.000000e-01 : f32
    %338 = vector.broadcast %cst_163 : f32 to vector<8x128xf32>
    %339 = arith.addf %337, %338 : vector<8x128xf32>
    %340 = arith.mulf %329, %308 : vector<8x128xf32>
    %341 = arith.mulf %321, %331 : vector<8x128xf32>
    %342 = arith.addf %340, %341 : vector<8x128xf32>
    %343 = math.tanh %342 : vector<8x128xf32>
    %344 = arith.mulf %339, %343 : vector<8x128xf32>
    %c0_164 = arith.constant 0 : index
    %c512 = arith.constant 512 : index
    %345 = vector.load %arg3[%c0_164, %c512] : memref<128x640xf32, #tpu.memory_space<vmem>>, vector<128x128xf32>
    %cst_165 = arith.constant dense<0.000000e+00> : vector<8x128xf32>
    %346 = tpu.matmul %344, %345, %cst_165 {dimension_numbers = #tpu.dot_dimension_numbers<[1], [0], [0], [1], [0, 0, 1, 1], [], []>} : vector<8x128xf32>, vector<128x128xf32>, vector<8x128xf32> -> vector<8x128xf32>
    %c0_166 = arith.constant 0 : index
    %c640 = arith.constant 640 : index
    %347 = vector.load %arg4[%c0_166, %c640] : memref<1x768xf32, #tpu.memory_space<vmem>>, vector<1x128xf32>
    %348 = vector.broadcast %347 : vector<1x128xf32> to vector<8x128xf32>
    %349 = arith.addf %346, %348 : vector<8x128xf32>
    %c0_167 = arith.constant 0 : index
    %c0_168 = arith.constant 0 : index
    %350 = vector.load %arg6[%c0_167, %c0_168] : memref<8x128xf32, #tpu.memory_space<vmem>>, vector<8x128xf32>
    tpu.vector_store %arg6[%c0_167, %c0_168], %349 {strides = array<i32>} : memref<8x128xf32, #tpu.memory_space<vmem>>, vector<8x128xf32>,
    return
  }
}

</mosaic_0001>

<llo_original>
// kernel: tpu_custom_call.1
$region0: #{tpu_custom_call.1}
  #allocation0 [shape = 'u32[]', space=smem, size = 0x4, offset = 0x4, fixed_abs, tag = 'smem constant byte address 0x4 - core index']
  #allocation1 [shape = 'u32[144,128]{1,0:T(1,128)}', space=vmem, size = 0x12000, scoped, tag = 'internal scratch']
  #allocation2 [shape = 'f32[64,512]{1,0:T(8,128)}', space=vmem, size = 0x20000, scoped, tag = 'scratch operand']
  #allocation3 [shape = 'f32[2,384,128]{2,1,0:T(8,128)}', space=vmem, size = 0x60000, scoped, tag = 'scratch operand']
  #allocation4 [shape = 's32[2]{0}', space=sflag, size = 0x8, scoped, tag = 'scratch operand']
  #allocation11 [shape = 's32[]', space=sflag, size = 0x4, offset = 0, fixed_abs, tag = 'sflag constant byte address 0x0 - dummy sync flag']
  #allocation12 [shape = 's32[]', space=sflag, size = 0x4, offset = 0, fixed_abs, tag = 'sflag constant byte address 0x0 - dummy sync flag']
  #allocation13 [shape = 'u32[]', space=smem, size = 0x4, offset = 0x44, fixed_abs, tag = 'smem constant byte address 0x44 - assertion arg 0']
  #allocation14 [shape = 'u32[]', space=smem, size = 0x4, offset = 0x48, fixed_abs, tag = 'smem constant byte address 0x48 - assertion arg 1']
  #allocation15 [shape = 's32[]', space=sflag, size = 0x4, offset = 0, fixed_abs, tag = 'sflag constant byte address 0x0 - dummy sync flag']
  #allocation16 [shape = 's32[]', space=sflag, size = 0x4, offset = 0, fixed_abs, tag = 'sflag constant byte address 0x0 - dummy sync flag']
  #allocation17 [shape = 's32[]', space=sflag, size = 0x4, offset = 0, fixed_abs, tag = 'sflag constant byte address 0x0 - dummy sync flag']
  #allocation18 [shape = 's32[]', space=sflag, size = 0x4, offset = 0, fixed_abs, tag = 'sflag constant byte address 0x0 - dummy sync flag']
  #allocation19 [shape = 's32[]', space=sflag, size = 0x4, offset = 0, fixed_abs, tag = 'sflag constant byte address 0x0 - dummy sync flag']
  #allocation20 [shape = 's32[]', space=sflag, size = 0x4, offset = 0, fixed_abs, tag = 'sflag constant byte address 0x0 - dummy sync flag']
  %s0 = inlined_call_operand.vmem [shape: f32[64,2], index: 0, kind: input, shape index: {}]
  %s1 = inlined_call_operand.hbm [shape: f32[8,1536], index: 1, kind: input, shape index: {}]
  %s2 = inlined_call_operand.vmem [shape: f32[2,512], index: 2, kind: input, shape index: {}]
  %s3 = inlined_call_operand.hbm [shape: f32[128,640], index: 3, kind: input, shape index: {}]
  %s4 = inlined_call_operand.vmem [shape: f32[1,768], index: 4, kind: input, shape index: {}]
  %s5 = inlined_call_operand.hbm [shape: f32[1536,128], index: 5, kind: input, shape index: {}]
  %s6 = inlined_call_operand.hbm [shape: f32[8,128], index: 6, kind: output, shape index: {}]
  %s7 = sld [smem:[#allocation0]]
  $region54: #{tpu_custom_call.1} parent=0
    _
  %s9 = ssub.s32 1, %s7
  %s10 = scalar_select 0, %s9, %s7
  $region1: #{tpu_custom_call.1} parent=0
    #allocation5 [shape = 'u8[49152]{0}', space=vmem, size = 0xc000, scoped, tag = 'input window, operand 1, single buffered']
    #allocation6 [shape = 's32[1]{0}', space=sflag, size = 0x4, scoped, tag = 'scoped memory for tpu_custom_call.1']
    #allocation7 [shape = 's32[1]{0}', space=sflag, size = 0x4, scoped, tag = 'scoped memory for tpu_custom_call.1']
    #allocation8 [shape = 'u8[327680]{0}', space=vmem, size = 0x50000, scoped, tag = 'input window, operand 3, single buffered']
    #allocation9 [shape = 's32[1]{0}', space=sflag, size = 0x4, scoped, tag = 'scoped memory for tpu_custom_call.1']
    #allocation10 [shape = 'u8[4096]{0}', space=vmem, size = 0x1000, scoped, tag = 'output window, operand 0, single buffered']
    %11 = vsyncpa [#allocation6], 0
    %12 = vsyncpa [#allocation9], 0
    %13 = vsyncpa [#allocation7], 0
    // Predicated region
    $region2: #{tpu_custom_call.1} parent=1 // pred_check
      _
    $region3: #{tpu_custom_call.1} parent=1 // pred_check_branch
      %15 = sbr.rel (0) target = $region5
    $region4: #{tpu_custom_call.1} parent=1 // pred_region
      _
    $region5: #{tpu_custom_call.1} parent=1 // pred_fallthru
      _
    // Predicated region
    $region6: #{tpu_custom_call.1} parent=1 // pred_check
      _
    $region7: #{tpu_custom_call.1} parent=1 // pred_check_branch
      %17 = sbr.rel (0) target = $region9
    $region8: #{tpu_custom_call.1} parent=1 // pred_region
      %s19 = ssub.s32 1536, 1536
      %20 = vsyncadd [#allocation6], %s19
      %s22 = sshll.u32 [#allocation5], 4
      %s23 = int_to_ptr.vmem [resolvable:$true] %s22
      %25 = dma.hbm_to_vmem [thread:$0]  %s1, 1536, %s23, [#allocation6]
    $region9: #{tpu_custom_call.1} parent=1 // pred_fallthru
      _
    // Predicated region
    $region10: #{tpu_custom_call.1} parent=1 // pred_check
      _
    $region11: #{tpu_custom_call.1} parent=1 // pred_check_branch
      %27 = sbr.rel (0) target = $region13
    $region12: #{tpu_custom_call.1} parent=1 // pred_region
      _
    $region13: #{tpu_custom_call.1} parent=1 // pred_fallthru
      _
    // Predicated region
    $region14: #{tpu_custom_call.1} parent=1 // pred_check
      _
    $region15: #{tpu_custom_call.1} parent=1 // pred_check_branch
      %29 = sbr.rel (0) target = $region17
    $region16: #{tpu_custom_call.1} parent=1 // pred_region
      %s31 = ssub.s32 10240, 10240
      %32 = vsyncadd [#allocation9], %s31
      %s33 = sshll.u32 [#allocation8], 4
      %s34 = int_to_ptr.vmem [resolvable:$true] %s33
      %39 = dma.hbm_to_vmem [thread:$0]  %s3, 10240, %s34, [#allocation9], 640, 640, 40
    $region17: #{tpu_custom_call.1} parent=1 // pred_fallthru
      _
    // Predicated region
    $region18: #{tpu_custom_call.1} parent=1 // pred_check
      _
    $region19: #{tpu_custom_call.1} parent=1 // pred_check_branch
      %41 = sbr.rel (0) target = $region21
    $region20: #{tpu_custom_call.1} parent=1 // pred_region
      _
    $region21: #{tpu_custom_call.1} parent=1 // pred_fallthru
      _
    // Predicated region
    $region22: #{tpu_custom_call.1} parent=1 // pred_check
      _
    $region23: #{tpu_custom_call.1} parent=1 // pred_check_branch
      %43 = sbr.rel (0) target = $region25
    $region24: #{tpu_custom_call.1} parent=1 // pred_region
      %44 = dma.done [#allocation6], 1536
    $region25: #{tpu_custom_call.1} parent=1 // pred_fallthru
      _
    // Predicated region
    $region26: #{tpu_custom_call.1} parent=1 // pred_check
      _
    $region27: #{tpu_custom_call.1} parent=1 // pred_check_branch
      %46 = sbr.rel (0) target = $region29
    $region28: #{tpu_custom_call.1} parent=1 // pred_region
      %47 = dma.done [#allocation9], 10240
    $region29: #{tpu_custom_call.1} parent=1 // pred_fallthru
      _
    // Predicated region
    $region30: #{tpu_custom_call.1} parent=1 // pred_check
      _
    $region31: #{tpu_custom_call.1} parent=1 // pred_check_branch
      %49 = sbr.rel target = $region33
    $region32: #{tpu_custom_call.1} parent=1 // pred_region
      %50 = sst [smem:[#allocation13]] [#allocation12]
      %51 = sst [smem:[#allocation14]] [#allocation11]
    $region33: #{tpu_custom_call.1} parent=1 // pred_fallthru
      _
    %53 = shalt.err (0)
    %s55 = sshll.u32 [#allocation3], 4
    %s56 = int_to_ptr.vmem [resolvable:$true] %s55
    %58 = dma.hbm_to_vmem [thread:$0]  %s5, 6144, %s56, [#allocation4]
    %v59 = vld [vmem:[%s0] sm:$0xff]
    %v60 = vld [vmem:[%s0 + $0x8] sm:$0xff]
    %v61 = vld [vmem:[%s0 + $0x10] sm:$0xff]
    %v62 = vld [vmem:[%s0 + $0x18] sm:$0xff]
    %v63 = vld [vmem:[%s0 + $0x20] sm:$0xff]
    %v64 = vld [vmem:[%s0 + $0x28] sm:$0xff]
    %v65 = vld [vmem:[%s0 + $0x30] sm:$0xff]
    %v66 = vld [vmem:[%s0 + $0x38] sm:$0xff]
    %v67 = vld [vmem:[%s2] sm:$0xff]
    %v68 = vld [vmem:[%s4 + $0x1] sm:$0xf]
    %v70 = vlaneseq
    %v71 = vshrl.u32 %v70, 7
    %v72 = vsub.s32 0, %v71
    %v73 = vrot.slane %v68, %v72
    %v74 = vlaneseq
    %v75 = vshrl.u32 %v74, 7
    %v76 = vsub.s32 1, %v75
    %v77 = vrot.slane %v68, %v76
    %v78 = vlaneseq
    %v79 = vshrl.u32 %v78, 7
    %v80 = vsub.s32 2, %v79
    %v81 = vrot.slane %v68, %v80
    %v82 = vlaneseq
    %v83 = vshrl.u32 %v82, 7
    %v84 = vsub.s32 3, %v83
    %v85 = vrot.slane %v68, %v84
    %v91 = vcombine.high %v67, %v67
    %v93 = vunpack.c.l.s4 1983009808
    %v94 = vunpack.c.0.s8 %v93
    %v95 = vlaneseq
    %v96 = vshrl.u32 %v95, 7
    %v97 = vsub.s32 %v94, %v96
    %v98 = vrot.slane %v67, %v97
    %v100 = vunpack.c.l.s4 1983009808
    %v101 = vunpack.c.0.s8 %v100
    %v102 = vlaneseq
    %v103 = vshrl.u32 %v102, 7
    %v104 = vsub.s32 %v101, %v103
    %v105 = vrot.slane %v91, %v104
    %v106 = vcombine.high %v98, %v98
    %v107 = vcombine.high %v105, %v105
    %vm108 = vcmask 15360
    %v110 = vsel %vm108, %v59, 0
    %v113 = vsel %vm108, %v60, 0
    %v116 = vsel %vm108, %v61, 0
    %v119 = vsel %vm108, %v62, 0
    %v122 = vsel %vm108, %v63, 0
    %v125 = vsel %vm108, %v64, 0
    %v128 = vsel %vm108, %v65, 0
    %v131 = vsel %vm108, %v66, 0
    %vm133 = vcmask 1041408
    %v134 = vsel %vm133, %v98, 0
    %v136 = vsel %vm133, %v106, 0
    %v138 = vsel %vm133, %v105, 0
    %v140 = vsel %vm133, %v107, 0
    %142 = vmatprep.subr.mxu0 %v136
    %143 = vmatpush1.msra.mxu0 %v134
    %144 = vmatprep.subr.mxu0 0.0
    %145 = vmatpush1.msra.mxu0 0.0
    %146 = vmatprep.subr.mxu0 0.0
    %147 = vmatpush1.msra.mxu0 0.0
    %148 = vmatprep.subr.mxu0 0.0
    %149 = vmatpush1.msra.mxu0 0.0
    %150 = vmatprep.subr.mxu0 0.0
    %151 = vmatpush1.msra.mxu0 0.0
    %152 = vmatprep.subr.mxu0 0.0
    %153 = vmatpush1.msra.mxu0 0.0
    %154 = vmatprep.subr.mxu0 0.0
    %155 = vmatpush1.msra.mxu0 0.0
    %156 = vmatprep.subr.mxu0 0.0
    %157 = vmatpush1.msra.mxu0 0.0
    %158 = vmatprep.subr.mxu0 0.0
    %159 = vmatpush1.msra.mxu0 0.0
    %160 = vmatprep.subr.mxu0 0.0
    %161 = vmatpush1.msra.mxu0 0.0
    %162 = vmatprep.subr.mxu0 0.0
    %163 = vmatpush1.msra.mxu0 0.0
    %164 = vmatprep.subr.mxu0 0.0
    %165 = vmatpush1.msra.mxu0 0.0
    %166 = vmatprep.subr.mxu0 0.0
    %167 = vmatpush1.msra.mxu0 0.0
    %168 = vmatprep.subr.mxu0 0.0
    %169 = vmatpush1.msra.mxu0 0.0
    %170 = vmatprep.subr.mxu0 0.0
    %171 = vmatpush1.msra.mxu0 0.0
    %172 = vmatprep.subr.mxu0 0.0
    %173 = vmatpush1.msra.mxu0 0.0
    %174 = vmatprep.subr.mxu0 0.0
    %175 = vmatpush1.msra.mxu0 0.0
    %176 = vmatprep.subr.mxu0 0.0
    %177 = vmatpush1.msra.mxu0 0.0
    %178 = vmatprep.subr.mxu0 0.0
    %179 = vmatpush1.msra.mxu0 0.0
    %180 = vmatprep.subr.mxu0 0.0
    %181 = vmatpush1.msra.mxu0 0.0
    %182 = vmatprep.subr.mxu0 0.0
    %183 = vmatpush1.msra.mxu0 0.0
    %184 = vmatprep.subr.mxu0 0.0
    %185 = vmatpush1.msra.mxu0 0.0
    %186 = vmatprep.subr.mxu0 0.0
    %187 = vmatpush1.msra.mxu0 0.0
    %188 = vmatprep.subr.mxu0 0.0
    %189 = vmatpush1.msra.mxu0 0.0
    %190 = vmatprep.subr.mxu0 0.0
    %191 = vmatpush1.msra.mxu0 0.0
    %192 = vmatprep.subr.mxu0 0.0
    %193 = vmatpush1.msra.mxu0 0.0
    %194 = vmatprep.subr.mxu0 0.0
    %195 = vmatpush1.msra.mxu0 0.0
    %196 = vmatprep.subr.mxu0 0.0
    %197 = vmatpush1.msra.mxu0 0.0
    %198 = vmatprep.subr.mxu0 0.0
    %199 = vmatpush1.msra.mxu0 0.0
    %200 = vmatprep.subr.mxu0 0.0
    %201 = vmatpush1.msra.mxu0 0.0
    %202 = vmatprep.subr.mxu0 0.0
    %203 = vmatpush1.msra.mxu0 0.0
    %204 = vmatprep.subr.mxu0 0.0
    %205 = vmatpush1.msra.mxu0 0.0
    %206 = vmatprep.mubr.f32.mxu0 0.0
    %207 = vmatmul.mubr.f32.gmra.mrb[0].mxu0 %v110
    %v208 = vpop.f32.mrb[0].mxu0
    %v209 = vadd.f32 %v73, %v208
    %v210 = vpop.f32.mrb[0].mxu0
    %v211 = vadd.f32 %v77, %v210
    %212 = vmatprep.mubr.f32.mxu0 0.0
    %213 = vmatmul.mubr.f32.gmra.mrb[0].mxu0 %v113
    %v214 = vpop.f32.mrb[0].mxu0
    %v215 = vadd.f32 %v73, %v214
    %v216 = vpop.f32.mrb[0].mxu0
    %v217 = vadd.f32 %v77, %v216
    %218 = vmatprep.mubr.f32.mxu0 0.0
    %219 = vmatmul.mubr.f32.gmra.mrb[0].mxu0 %v116
    %v220 = vpop.f32.mrb[0].mxu0
    %v221 = vadd.f32 %v73, %v220
    %v222 = vpop.f32.mrb[0].mxu0
    %v223 = vadd.f32 %v77, %v222
    %224 = vmatprep.mubr.f32.mxu0 0.0
    %225 = vmatmul.mubr.f32.gmra.mrb[0].mxu0 %v119
    %v226 = vpop.f32.mrb[0].mxu0
    %v227 = vadd.f32 %v73, %v226
    %v228 = vpop.f32.mrb[0].mxu0
    %v229 = vadd.f32 %v77, %v228
    %230 = vmatprep.mubr.f32.mxu0 0.0
    %231 = vmatmul.mubr.f32.gmra.mrb[0].mxu0 %v122
    %v232 = vpop.f32.mrb[0].mxu0
    %v233 = vadd.f32 %v73, %v232
    %v234 = vpop.f32.mrb[0].mxu0
    %v235 = vadd.f32 %v77, %v234
    %236 = vmatprep.mubr.f32.mxu0 0.0
    %237 = vmatmul.mubr.f32.gmra.mrb[0].mxu0 %v125
    %v238 = vpop.f32.mrb[0].mxu0
    %v239 = vadd.f32 %v73, %v238
    %v240 = vpop.f32.mrb[0].mxu0
    %v241 = vadd.f32 %v77, %v240
    %242 = vmatprep.mubr.f32.mxu0 0.0
    %243 = vmatmul.mubr.f32.gmra.mrb[0].mxu0 %v128
    %v244 = vpop.f32.mrb[0].mxu0
    %v245 = vadd.f32 %v73, %v244
    %v246 = vpop.f32.mrb[0].mxu0
    %v247 = vadd.f32 %v77, %v246
    %248 = vmatprep.mubr.f32.mxu0 0.0
    %249 = vmatmul.mubr.f32.gmra.mrb[0].mxu0 %v131
    %v250 = vpop.f32.mrb[0].mxu0
    %v251 = vadd.f32 %v73, %v250
    %v252 = vpop.f32.mrb[0].mxu0
    %v253 = vadd.f32 %v77, %v252
    %254 = vdwg.mxu0
    %255 = vmatprep.subr.mxu0 %v140
    %256 = vmatpush1.msra.mxu0 %v138
    %257 = vmatprep.subr.mxu0 0.0
    %258 = vmatpush1.msra.mxu0 0.0
    %259 = vmatprep.subr.mxu0 0.0
    %260 = vmatpush1.msra.mxu0 0.0
    %261 = vmatprep.subr.mxu0 0.0
    %262 = vmatpush1.msra.mxu0 0.0
    %263 = vmatprep.subr.mxu0 0.0
    %264 = vmatpush1.msra.mxu0 0.0
    %265 = vmatprep.subr.mxu0 0.0
    %266 = vmatpush1.msra.mxu0 0.0
    %267 = vmatprep.subr.mxu0 0.0
    %268 = vmatpush1.msra.mxu0 0.0
    %269 = vmatprep.subr.mxu0 0.0
    %270 = vmatpush1.msra.mxu0 0.0
    %271 = vmatprep.subr.mxu0 0.0
    %272 = vmatpush1.msra.mxu0 0.0
    %273 = vmatprep.subr.mxu0 0.0
    %274 = vmatpush1.msra.mxu0 0.0
    %275 = vmatprep.subr.mxu0 0.0
    %276 = vmatpush1.msra.mxu0 0.0
    %277 = vmatprep.subr.mxu0 0.0
    %278 = vmatpush1.msra.mxu0 0.0
    %279 = vmatprep.subr.mxu0 0.0
    %280 = vmatpush1.msra.mxu0 0.0
    %281 = vmatprep.subr.mxu0 0.0
    %282 = vmatpush1.msra.mxu0 0.0
    %283 = vmatprep.subr.mxu0 0.0
    %284 = vmatpush1.msra.mxu0 0.0
    %285 = vmatprep.subr.mxu0 0.0
    %286 = vmatpush1.msra.mxu0 0.0
    %287 = vmatprep.subr.mxu0 0.0
    %288 = vmatpush1.msra.mxu0 0.0
    %289 = vmatprep.subr.mxu0 0.0
    %290 = vmatpush1.msra.mxu0 0.0
    %291 = vmatprep.subr.mxu0 0.0
    %292 = vmatpush1.msra.mxu0 0.0
    %293 = vmatprep.subr.mxu0 0.0
    %294 = vmatpush1.msra.mxu0 0.0
    %295 = vmatprep.subr.mxu0 0.0
    %296 = vmatpush1.msra.mxu0 0.0
    %297 = vmatprep.subr.mxu0 0.0
    %298 = vmatpush1.msra.mxu0 0.0
    %299 = vmatprep.subr.mxu0 0.0
    %300 = vmatpush1.msra.mxu0 0.0
    %301 = vmatprep.subr.mxu0 0.0
    %302 = vmatpush1.msra.mxu0 0.0
    %303 = vmatprep.subr.mxu0 0.0
    %304 = vmatpush1.msra.mxu0 0.0
    %305 = vmatprep.subr.mxu0 0.0
    %306 = vmatpush1.msra.mxu0 0.0
    %307 = vmatprep.subr.mxu0 0.0
    %308 = vmatpush1.msra.mxu0 0.0
    %309 = vmatprep.subr.mxu0 0.0
    %310 = vmatpush1.msra.mxu0 0.0
    %311 = vmatprep.subr.mxu0 0.0
    %312 = vmatpush1.msra.mxu0 0.0
    %313 = vmatprep.subr.mxu0 0.0
    %314 = vmatpush1.msra.mxu0 0.0
    %315 = vmatprep.subr.mxu0 0.0
    %316 = vmatpush1.msra.mxu0 0.0
    %317 = vmatprep.subr.mxu0 0.0
    %318 = vmatpush1.msra.mxu0 0.0
    %319 = vmatprep.mubr.f32.mxu0 0.0
    %320 = vmatmul.mubr.f32.gmra.mrb[0].mxu0 %v110
    %v321 = vpop.f32.mrb[0].mxu0
    %v322 = vadd.f32 %v81, %v321
    %v323 = vpop.f32.mrb[0].mxu0
    %v324 = vadd.f32 %v85, %v323
    %325 = vmatprep.mubr.f32.mxu0 0.0
    %326 = vmatmul.mubr.f32.gmra.mrb[0].mxu0 %v113
    %v327 = vpop.f32.mrb[0].mxu0
    %v328 = vadd.f32 %v81, %v327
    %v329 = vpop.f32.mrb[0].mxu0
    %v330 = vadd.f32 %v85, %v329
    %331 = vmatprep.mubr.f32.mxu0 0.0
    %332 = vmatmul.mubr.f32.gmra.mrb[0].mxu0 %v116
    %v333 = vpop.f32.mrb[0].mxu0
    %v334 = vadd.f32 %v81, %v333
    %v335 = vpop.f32.mrb[0].mxu0
    %v336 = vadd.f32 %v85, %v335
    %337 = vmatprep.mubr.f32.mxu0 0.0
    %338 = vmatmul.mubr.f32.gmra.mrb[0].mxu0 %v119
    %v339 = vpop.f32.mrb[0].mxu0
    %v340 = vadd.f32 %v81, %v339
    %v341 = vpop.f32.mrb[0].mxu0
    %v342 = vadd.f32 %v85, %v341
    %343 = vmatprep.mubr.f32.mxu0 0.0
    %344 = vmatmul.mubr.f32.gmra.mrb[0].mxu0 %v122
    %v345 = vpop.f32.mrb[0].mxu0
    %v346 = vadd.f32 %v81, %v345
    %v347 = vpop.f32.mrb[0].mxu0
    %v348 = vadd.f32 %v85, %v347
    %349 = vmatprep.mubr.f32.mxu0 0.0
    %350 = vmatmul.mubr.f32.gmra.mrb[0].mxu0 %v125
    %v351 = vpop.f32.mrb[0].mxu0
    %v352 = vadd.f32 %v81, %v351
    %v353 = vpop.f32.mrb[0].mxu0
    %v354 = vadd.f32 %v85, %v353
    %355 = vmatprep.mubr.f32.mxu0 0.0
    %356 = vmatmul.mubr.f32.gmra.mrb[0].mxu0 %v128
    %v357 = vpop.f32.mrb[0].mxu0
    %v358 = vadd.f32 %v81, %v357
    %v359 = vpop.f32.mrb[0].mxu0
    %v360 = vadd.f32 %v85, %v359
    %361 = vmatprep.mubr.f32.mxu0 0.0
    %362 = vmatmul.mubr.f32.gmra.mrb[0].mxu0 %v131
    %v363 = vpop.f32.mrb[0].mxu0
    %v364 = vadd.f32 %v81, %v363
    %v365 = vpop.f32.mrb[0].mxu0
    %v366 = vadd.f32 %v85, %v365
    %367 = vdwg.mxu0
    %368 = vst [vmem:[#allocation2] sm:$0xff] %v209
    %369 = vst [vmem:[#allocation2 + $0x8] sm:$0xff] %v211
    %370 = vst [vmem:[#allocation2 + $0x10] sm:$0xff] %v322
    %371 = vst [vmem:[#allocation2 + $0x18] sm:$0xff] %v324
    %372 = vst [vmem:[#allocation2 + $0x20] sm:$0xff] %v215
    %373 = vst [vmem:[#allocation2 + $0x28] sm:$0xff] %v217
    %374 = vst [vmem:[#allocation2 + $0x30] sm:$0xff] %v328
    %375 = vst [vmem:[#allocation2 + $0x38] sm:$0xff] %v330
    %376 = vst [vmem:[#allocation2 + $0x40] sm:$0xff] %v221
    %377 = vst [vmem:[#allocation2 + $0x48] sm:$0xff] %v223
    %378 = vst [vmem:[#allocation2 + $0x50] sm:$0xff] %v334
    %379 = vst [vmem:[#allocation2 + $0x58] sm:$0xff] %v336
    %380 = vst [vmem:[#allocation2 + $0x60] sm:$0xff] %v227
    %381 = vst [vmem:[#allocation2 + $0x68] sm:$0xff] %v229
    %382 = vst [vmem:[#allocation2 + $0x70] sm:$0xff] %v340
    %383 = vst [vmem:[#allocation2 + $0x78] sm:$0xff] %v342
    %384 = vst [vmem:[#allocation2 + $0x80] sm:$0xff] %v233
    %385 = vst [vmem:[#allocation2 + $0x88] sm:$0xff] %v235
    %386 = vst [vmem:[#allocation2 + $0x90] sm:$0xff] %v346
    %387 = vst [vmem:[#allocation2 + $0x98] sm:$0xff] %v348
    %388 = vst [vmem:[#allocation2 + $0xa0] sm:$0xff] %v239
    %389 = vst [vmem:[#allocation2 + $0xa8] sm:$0xff] %v241
    %390 = vst [vmem:[#allocation2 + $0xb0] sm:$0xff] %v352
    %391 = vst [vmem:[#allocation2 + $0xb8] sm:$0xff] %v354
    %392 = vst [vmem:[#allocation2 + $0xc0] sm:$0xff] %v245
    %393 = vst [vmem:[#allocation2 + $0xc8] sm:$0xff] %v247
    %394 = vst [vmem:[#allocation2 + $0xd0] sm:$0xff] %v358
    %395 = vst [vmem:[#allocation2 + $0xd8] sm:$0xff] %v360
    %396 = vst [vmem:[#allocation2 + $0xe0] sm:$0xff] %v251
    %397 = vst [vmem:[#allocation2 + $0xe8] sm:$0xff] %v253
    %398 = vst [vmem:[#allocation2 + $0xf0] sm:$0xff] %v364
    %399 = vst [vmem:[#allocation2 + $0xf8] sm:$0xff] %v366
    %v400 = vld [vmem:[%s4] sm:$0x1]
    %v402 = vlaneseq
    %v403 = vshrl.u32 %v402, 7
    %v404 = vsub.s32 0, %v403
    %v405 = vrot.slane %v400, %v404
    %v407 = vadd.f32 %v405, 0.0
    %s408 = scalar_lea.hbm %s5, 6144
    %s409 = scalar_lea.vmem [#allocation3], 384
    %s410 = scalar_lea.sflag [#allocation4], 1
    // Predicated region
    $region34: #{tpu_custom_call.1} parent=1 // pred_check
      _
    $region35: #{tpu_custom_call.1} parent=1 // pred_check_branch
      %412 = sbr.rel target = $region37
    $region36: #{tpu_custom_call.1} parent=1 // pred_region
      %413 = sst [smem:[#allocation13]] [#allocation16]
      %414 = sst [smem:[#allocation14]] [#allocation15]
    $region37: #{tpu_custom_call.1} parent=1 // pred_fallthru
      _
    %416 = shalt.err (0)
    %s418 = sshll.u32 %s409, 4
    %s419 = int_to_ptr.vmem [resolvable:$true] %s418
    %421 = dma.hbm_to_vmem [thread:$0]  %s408, 6144, %s419, %s410
    %s422 = smul.u32 384, 1
    %s423 = sshll.u32 %s422, 4
    %424 = dma.done [#allocation4], %s423
    %v425 = vld [vmem:[#allocation5] sm:$0xff]
    %v426 = vld [vmem:[#allocation5 + $0x8] sm:$0xff]
    %v427 = vld [vmem:[#allocation5 + $0x10] sm:$0xff]
    %v428 = vld [vmem:[#allocation3] sm:$0xff]
    %v429 = vld [vmem:[#allocation3 + $0x8] sm:$0xff]
    %v430 = vld [vmem:[#allocation3 + $0x10] sm:$0xff]
    %v431 = vld [vmem:[#allocation3 + $0x18] sm:$0xff]
    %v432 = vld [vmem:[#allocation3 + $0x20] sm:$0xff]
    %v433 = vld [vmem:[#allocation3 + $0x28] sm:$0xff]
    %v434 = vld [vmem:[#allocation3 + $0x30] sm:$0xff]
    %v435 = vld [vmem:[#allocation3 + $0x38] sm:$0xff]
    %v436 = vld [vmem:[#allocation3 + $0x40] sm:$0xff]
    %v437 = vld [vmem:[#allocation3 + $0x48] sm:$0xff]
    %v438 = vld [vmem:[#allocation3 + $0x50] sm:$0xff]
    %v439 = vld [vmem:[#allocation3 + $0x58] sm:$0xff]
    %v440 = vld [vmem:[#allocation3 + $0x60] sm:$0xff]
    %v441 = vld [vmem:[#allocation3 + $0x68] sm:$0xff]
    %v442 = vld [vmem:[#allocation3 + $0x70] sm:$0xff]
    %v443 = vld [vmem:[#allocation3 + $0x78] sm:$0xff]
    %v444 = vld [vmem:[#allocation3 + $0x80] sm:$0xff]
    %v445 = vld [vmem:[#allocation3 + $0x88] sm:$0xff]
    %v446 = vld [vmem:[#allocation3 + $0x90] sm:$0xff]
    %v447 = vld [vmem:[#allocation3 + $0x98] sm:$0xff]
    %v448 = vld [vmem:[#allocation3 + $0xa0] sm:$0xff]
    %v449 = vld [vmem:[#allocation3 + $0xa8] sm:$0xff]
    %v450 = vld [vmem:[#allocation3 + $0xb0] sm:$0xff]
    %v451 = vld [vmem:[#allocation3 + $0xb8] sm:$0xff]
    %v452 = vld [vmem:[#allocation3 + $0xc0] sm:$0xff]
    %v453 = vld [vmem:[#allocation3 + $0xc8] sm:$0xff]
    %v454 = vld [vmem:[#allocation3 + $0xd0] sm:$0xff]
    %v455 = vld [vmem:[#allocation3 + $0xd8] sm:$0xff]
    %v456 = vld [vmem:[#allocation3 + $0xe0] sm:$0xff]
    %v457 = vld [vmem:[#allocation3 + $0xe8] sm:$0xff]
    %v458 = vld [vmem:[#allocation3 + $0xf0] sm:$0xff]
    %v459 = vld [vmem:[#allocation3 + $0xf8] sm:$0xff]
    %v460 = vld [vmem:[#allocation3 + $0x100] sm:$0xff]
    %v461 = vld [vmem:[#allocation3 + $0x108] sm:$0xff]
    %v462 = vld [vmem:[#allocation3 + $0x110] sm:$0xff]
    %v463 = vld [vmem:[#allocation3 + $0x118] sm:$0xff]
    %v464 = vld [vmem:[#allocation3 + $0x120] sm:$0xff]
    %v465 = vld [vmem:[#allocation3 + $0x128] sm:$0xff]
    %v466 = vld [vmem:[#allocation3 + $0x130] sm:$0xff]
    %v467 = vld [vmem:[#allocation3 + $0x138] sm:$0xff]
    %v468 = vld [vmem:[#allocation3 + $0x140] sm:$0xff]
    %v469 = vld [vmem:[#allocation3 + $0x148] sm:$0xff]
    %v470 = vld [vmem:[#allocation3 + $0x150] sm:$0xff]
    %v471 = vld [vmem:[#allocation3 + $0x158] sm:$0xff]
    %v472 = vld [vmem:[#allocation3 + $0x160] sm:$0xff]
    %v473 = vld [vmem:[#allocation3 + $0x168] sm:$0xff]
    %v474 = vld [vmem:[#allocation3 + $0x170] sm:$0xff]
    %v475 = vld [vmem:[#allocation3 + $0x178] sm:$0xff]
    %476 = vmatprep.subr.mxu0 0.0
    %477 = vmatpush1.msra.mxu0 %v428
    %478 = vmatprep.subr.mxu0 0.0
    %479 = vmatpush1.msra.mxu0 %v429
    %480 = vmatprep.subr.mxu0 0.0
    %481 = vmatpush1.msra.mxu0 %v430
    %482 = vmatprep.subr.mxu0 0.0
    %483 = vmatpush1.msra.mxu0 %v431
    %484 = vmatprep.subr.mxu0 0.0
    %485 = vmatpush1.msra.mxu0 %v432
    %486 = vmatprep.subr.mxu0 0.0
    %487 = vmatpush1.msra.mxu0 %v433
    %488 = vmatprep.subr.mxu0 0.0
    %489 = vmatpush1.msra.mxu0 %v434
    %490 = vmatprep.subr.mxu0 0.0
    %491 = vmatpush1.msra.mxu0 %v435
    %492 = vmatprep.subr.mxu0 0.0
    %493 = vmatpush1.msra.mxu0 %v436
    %494 = vmatprep.subr.mxu0 0.0
    %495 = vmatpush1.msra.mxu0 %v437
    %496 = vmatprep.subr.mxu0 0.0
    %497 = vmatpush1.msra.mxu0 %v438
    %498 = vmatprep.subr.mxu0 0.0
    %499 = vmatpush1.msra.mxu0 %v439
    %500 = vmatprep.subr.mxu0 0.0
    %501 = vmatpush1.msra.mxu0 %v440
    %502 = vmatprep.subr.mxu0 0.0
    %503 = vmatpush1.msra.mxu0 %v441
    %504 = vmatprep.subr.mxu0 0.0
    %505 = vmatpush1.msra.mxu0 %v442
    %506 = vmatprep.subr.mxu0 0.0
    %507 = vmatpush1.msra.mxu0 %v443
    %508 = vmatprep.subr.mxu0 0.0
    %509 = vmatpush1.msra.mxu0 %v444
    %510 = vmatprep.subr.mxu0 0.0
    %511 = vmatpush1.msra.mxu0 %v445
    %512 = vmatprep.subr.mxu0 0.0
    %513 = vmatpush1.msra.mxu0 %v446
    %514 = vmatprep.subr.mxu0 0.0
    %515 = vmatpush1.msra.mxu0 %v447
    %516 = vmatprep.subr.mxu0 0.0
    %517 = vmatpush1.msra.mxu0 %v448
    %518 = vmatprep.subr.mxu0 0.0
    %519 = vmatpush1.msra.mxu0 %v449
    %520 = vmatprep.subr.mxu0 0.0
    %521 = vmatpush1.msra.mxu0 %v450
    %522 = vmatprep.subr.mxu0 0.0
    %523 = vmatpush1.msra.mxu0 %v451
    %524 = vmatprep.subr.mxu0 0.0
    %525 = vmatpush1.msra.mxu0 %v452
    %526 = vmatprep.subr.mxu0 0.0
    %527 = vmatpush1.msra.mxu0 %v453
    %528 = vmatprep.subr.mxu0 0.0
    %529 = vmatpush1.msra.mxu0 %v454
    %530 = vmatprep.subr.mxu0 0.0
    %531 = vmatpush1.msra.mxu0 %v455
    %532 = vmatprep.subr.mxu0 0.0
    %533 = vmatpush1.msra.mxu0 %v456
    %534 = vmatprep.subr.mxu0 0.0
    %535 = vmatpush1.msra.mxu0 %v457
    %536 = vmatprep.subr.mxu0 0.0
    %537 = vmatpush1.msra.mxu0 %v458
    %538 = vmatprep.subr.mxu0 0.0
    %539 = vmatpush1.msra.mxu0 %v459
    %540 = vmatprep.mubr.f32.mxu0 %v426
    %541 = vmatmul.mubr.f32.gmra.mrb[0].mxu0 %v425
    %v542 = vpop.f32.mrb[0].mxu0
    %v543 = vadd.f32 0.0, %v542
    %v544 = vpop.f32.mrb[0].mxu0
    %545 = vdwg.mxu0
    %546 = vmatprep.subr.mxu0 0.0
    %547 = vmatpush1.msra.mxu0 %v460
    %548 = vmatprep.subr.mxu0 0.0
    %549 = vmatpush1.msra.mxu0 %v461
    %550 = vmatprep.subr.mxu0 0.0
    %551 = vmatpush1.msra.mxu0 %v462
    %552 = vmatprep.subr.mxu0 0.0
    %553 = vmatpush1.msra.mxu0 %v463
    %554 = vmatprep.subr.mxu0 0.0
    %555 = vmatpush1.msra.mxu0 %v464
    %556 = vmatprep.subr.mxu0 0.0
    %557 = vmatpush1.msra.mxu0 %v465
    %558 = vmatprep.subr.mxu0 0.0
    %559 = vmatpush1.msra.mxu0 %v466
    %560 = vmatprep.subr.mxu0 0.0
    %561 = vmatpush1.msra.mxu0 %v467
    %562 = vmatprep.subr.mxu0 0.0
    %563 = vmatpush1.msra.mxu0 %v468
    %564 = vmatprep.subr.mxu0 0.0
    %565 = vmatpush1.msra.mxu0 %v469
    %566 = vmatprep.subr.mxu0 0.0
    %567 = vmatpush1.msra.mxu0 %v470
    %568 = vmatprep.subr.mxu0 0.0
    %569 = vmatpush1.msra.mxu0 %v471
    %570 = vmatprep.subr.mxu0 0.0
    %571 = vmatpush1.msra.mxu0 %v472
    %572 = vmatprep.subr.mxu0 0.0
    %573 = vmatpush1.msra.mxu0 %v473
    %574 = vmatprep.subr.mxu0 0.0
    %575 = vmatpush1.msra.mxu0 %v474
    %576 = vmatprep.subr.mxu0 0.0
    %577 = vmatpush1.msra.mxu0 %v475
    %578 = vmatprep.subr.mxu0 0.0
    %579 = vmatpush1.msra.mxu0 0.0
    %580 = vmatprep.subr.mxu0 0.0
    %581 = vmatpush1.msra.mxu0 0.0
    %582 = vmatprep.subr.mxu0 0.0
    %583 = vmatpush1.msra.mxu0 0.0
    %584 = vmatprep.subr.mxu0 0.0
    %585 = vmatpush1.msra.mxu0 0.0
    %586 = vmatprep.subr.mxu0 0.0
    %587 = vmatpush1.msra.mxu0 0.0
    %588 = vmatprep.subr.mxu0 0.0
    %589 = vmatpush1.msra.mxu0 0.0
    %590 = vmatprep.subr.mxu0 0.0
    %591 = vmatpush1.msra.mxu0 0.0
    %592 = vmatprep.subr.mxu0 0.0
    %593 = vmatpush1.msra.mxu0 0.0
    %594 = vmatprep.subr.mxu0 0.0
    %595 = vmatpush1.msra.mxu0 0.0
    %596 = vmatprep.subr.mxu0 0.0
    %597 = vmatpush1.msra.mxu0 0.0
    %598 = vmatprep.subr.mxu0 0.0
    %599 = vmatpush1.msra.mxu0 0.0
    %600 = vmatprep.subr.mxu0 0.0
    %601 = vmatpush1.msra.mxu0 0.0
    %602 = vmatprep.subr.mxu0 0.0
    %603 = vmatpush1.msra.mxu0 0.0
    %604 = vmatprep.subr.mxu0 0.0
    %605 = vmatpush1.msra.mxu0 0.0
    %606 = vmatprep.subr.mxu0 0.0
    %607 = vmatpush1.msra.mxu0 0.0
    %608 = vmatprep.subr.mxu0 0.0
    %609 = vmatpush1.msra.mxu0 0.0
    %610 = vmatprep.mubr.f32.mxu0 0.0
    %611 = vmatmul.mubr.f32.gmra.mrb[0].mxu0 %v427
    %v612 = vpop.f32.mrb[0].mxu0
    %v613 = vadd.f32 %v543, %v612
    %v614 = vpop.f32.mrb[0].mxu0
    %615 = vdwg.mxu0
    %v616 = vadd.f32 %v407, %v613
    %s617 = scalar_lea.hbm %s5, 12288
    // Predicated region
    $region38: #{tpu_custom_call.1} parent=1 // pred_check
      _
    $region39: #{tpu_custom_call.1} parent=1 // pred_check_branch
      %619 = sbr.rel target = $region41
    $region40: #{tpu_custom_call.1} parent=1 // pred_region
      %620 = sst [smem:[#allocation13]] [#allocation18]
      %621 = sst [smem:[#allocation14]] [#allocation17]
    $region41: #{tpu_custom_call.1} parent=1 // pred_fallthru
      _
    %623 = shalt.err (0)
    %s625 = sshll.u32 [#allocation3], 4
    %s626 = int_to_ptr.vmem [resolvable:$true] %s625
    %628 = dma.hbm_to_vmem [thread:$0]  %s617, 6144, %s626, [#allocation4]
    %s629 = sshll.u32 %s422, 4
    %630 = dma.done %s410, %s629
    %v631 = vld [vmem:[#allocation5 + $0x18] sm:$0xff]
    %v632 = vld [vmem:[#allocation5 + $0x20] sm:$0xff]
    %v633 = vld [vmem:[#allocation5 + $0x28] sm:$0xff]
    %v634 = vld [vmem:[%s409] sm:$0xff]
    %v635 = vld [vmem:[%s409 + $0x8] sm:$0xff]
    %v636 = vld [vmem:[%s409 + $0x10] sm:$0xff]
    %v637 = vld [vmem:[%s409 + $0x18] sm:$0xff]
    %v638 = vld [vmem:[%s409 + $0x20] sm:$0xff]
    %v639 = vld [vmem:[%s409 + $0x28] sm:$0xff]
    %v640 = vld [vmem:[%s409 + $0x30] sm:$0xff]
    %v641 = vld [vmem:[%s409 + $0x38] sm:$0xff]
    %v642 = vld [vmem:[%s409 + $0x40] sm:$0xff]
    %v643 = vld [vmem:[%s409 + $0x48] sm:$0xff]
    %v644 = vld [vmem:[%s409 + $0x50] sm:$0xff]
    %v645 = vld [vmem:[%s409 + $0x58] sm:$0xff]
    %v646 = vld [vmem:[%s409 + $0x60] sm:$0xff]
    %v647 = vld [vmem:[%s409 + $0x68] sm:$0xff]
    %v648 = vld [vmem:[%s409 + $0x70] sm:$0xff]
    %v649 = vld [vmem:[%s409 + $0x78] sm:$0xff]
    %v650 = vld [vmem:[%s409 + $0x80] sm:$0xff]
    %v651 = vld [vmem:[%s409 + $0x88] sm:$0xff]
    %v652 = vld [vmem:[%s409 + $0x90] sm:$0xff]
    %v653 = vld [vmem:[%s409 + $0x98] sm:$0xff]
    %v654 = vld [vmem:[%s409 + $0xa0] sm:$0xff]
    %v655 = vld [vmem:[%s409 + $0xa8] sm:$0xff]
    %v656 = vld [vmem:[%s409 + $0xb0] sm:$0xff]
    %v657 = vld [vmem:[%s409 + $0xb8] sm:$0xff]
    %v658 = vld [vmem:[%s409 + $0xc0] sm:$0xff]
    %v659 = vld [vmem:[%s409 + $0xc8] sm:$0xff]
    %v660 = vld [vmem:[%s409 + $0xd0] sm:$0xff]
    %v661 = vld [vmem:[%s409 + $0xd8] sm:$0xff]
    %v662 = vld [vmem:[%s409 + $0xe0] sm:$0xff]
    %v663 = vld [vmem:[%s409 + $0xe8] sm:$0xff]
    %v664 = vld [vmem:[%s409 + $0xf0] sm:$0xff]
    %v665 = vld [vmem:[%s409 + $0xf8] sm:$0xff]
    %v666 = vld [vmem:[%s409 + $0x100] sm:$0xff]
    %v667 = vld [vmem:[%s409 + $0x108] sm:$0xff]
    %v668 = vld [vmem:[%s409 + $0x110] sm:$0xff]
    %v669 = vld [vmem:[%s409 + $0x118] sm:$0xff]
    %v670 = vld [vmem:[%s409 + $0x120] sm:$0xff]
    %v671 = vld [vmem:[%s409 + $0x128] sm:$0xff]
    %v672 = vld [vmem:[%s409 + $0x130] sm:$0xff]
    %v673 = vld [vmem:[%s409 + $0x138] sm:$0xff]
    %v674 = vld [vmem:[%s409 + $0x140] sm:$0xff]
    %v675 = vld [vmem:[%s409 + $0x148] sm:$0xff]
    %v676 = vld [vmem:[%s409 + $0x150] sm:$0xff]
    %v677 = vld [vmem:[%s409 + $0x158] sm:$0xff]
    %v678 = vld [vmem:[%s409 + $0x160] sm:$0xff]
    %v679 = vld [vmem:[%s409 + $0x168] sm:$0xff]
    %v680 = vld [vmem:[%s409 + $0x170] sm:$0xff]
    %v681 = vld [vmem:[%s409 + $0x178] sm:$0xff]
    %682 = vmatprep.subr.mxu0 0.0
    %683 = vmatpush1.msra.mxu0 %v634
    %684 = vmatprep.subr.mxu0 0.0
    %685 = vmatpush1.msra.mxu0 %v635
    %686 = vmatprep.subr.mxu0 0.0
    %687 = vmatpush1.msra.mxu0 %v636
    %688 = vmatprep.subr.mxu0 0.0
    %689 = vmatpush1.msra.mxu0 %v637
    %690 = vmatprep.subr.mxu0 0.0
    %691 = vmatpush1.msra.mxu0 %v638
    %692 = vmatprep.subr.mxu0 0.0
    %693 = vmatpush1.msra.mxu0 %v639
    %694 = vmatprep.subr.mxu0 0.0
    %695 = vmatpush1.msra.mxu0 %v640
    %696 = vmatprep.subr.mxu0 0.0
    %697 = vmatpush1.msra.mxu0 %v641
    %698 = vmatprep.subr.mxu0 0.0
    %699 = vmatpush1.msra.mxu0 %v642
    %700 = vmatprep.subr.mxu0 0.0
    %701 = vmatpush1.msra.mxu0 %v643
    %702 = vmatprep.subr.mxu0 0.0
    %703 = vmatpush1.msra.mxu0 %v644
    %704 = vmatprep.subr.mxu0 0.0
    %705 = vmatpush1.msra.mxu0 %v645
    %706 = vmatprep.subr.mxu0 0.0
    %707 = vmatpush1.msra.mxu0 %v646
    %708 = vmatprep.subr.mxu0 0.0
    %709 = vmatpush1.msra.mxu0 %v647
    %710 = vmatprep.subr.mxu0 0.0
    %711 = vmatpush1.msra.mxu0 %v648
    %712 = vmatprep.subr.mxu0 0.0
    %713 = vmatpush1.msra.mxu0 %v649
    %714 = vmatprep.subr.mxu0 0.0
    %715 = vmatpush1.msra.mxu0 %v650
    %716 = vmatprep.subr.mxu0 0.0
    %717 = vmatpush1.msra.mxu0 %v651
    %718 = vmatprep.subr.mxu0 0.0
    %719 = vmatpush1.msra.mxu0 %v652
    %720 = vmatprep.subr.mxu0 0.0
    %721 = vmatpush1.msra.mxu0 %v653
    %722 = vmatprep.subr.mxu0 0.0
    %723 = vmatpush1.msra.mxu0 %v654
    %724 = vmatprep.subr.mxu0 0.0
    %725 = vmatpush1.msra.mxu0 %v655
    %726 = vmatprep.subr.mxu0 0.0
    %727 = vmatpush1.msra.mxu0 %v656
    %728 = vmatprep.subr.mxu0 0.0
    %729 = vmatpush1.msra.mxu0 %v657
    %730 = vmatprep.subr.mxu0 0.0
    %731 = vmatpush1.msra.mxu0 %v658
    %732 = vmatprep.subr.mxu0 0.0
    %733 = vmatpush1.msra.mxu0 %v659
    %734 = vmatprep.subr.mxu0 0.0
    %735 = vmatpush1.msra.mxu0 %v660
    %736 = vmatprep.subr.mxu0 0.0
    %737 = vmatpush1.msra.mxu0 %v661
    %738 = vmatprep.subr.mxu0 0.0
    %739 = vmatpush1.msra.mxu0 %v662
    %740 = vmatprep.subr.mxu0 0.0
    %741 = vmatpush1.msra.mxu0 %v663
    %742 = vmatprep.subr.mxu0 0.0
    %743 = vmatpush1.msra.mxu0 %v664
    %744 = vmatprep.subr.mxu0 0.0
    %745 = vmatpush1.msra.mxu0 %v665
    %746 = vmatprep.mubr.f32.mxu0 %v632
    %747 = vmatmul.mubr.f32.gmra.mrb[0].mxu0 %v631
    %v748 = vpop.f32.mrb[0].mxu0
    %v749 = vadd.f32 0.0, %v748
    %v750 = vpop.f32.mrb[0].mxu0
    %751 = vdwg.mxu0
    %752 = vmatprep.subr.mxu0 0.0
    %753 = vmatpush1.msra.mxu0 %v666
    %754 = vmatprep.subr.mxu0 0.0
    %755 = vmatpush1.msra.mxu0 %v667
    %756 = vmatprep.subr.mxu0 0.0
    %757 = vmatpush1.msra.mxu0 %v668
    %758 = vmatprep.subr.mxu0 0.0
    %759 = vmatpush1.msra.mxu0 %v669
    %760 = vmatprep.subr.mxu0 0.0
    %761 = vmatpush1.msra.mxu0 %v670
    %762 = vmatprep.subr.mxu0 0.0
    %763 = vmatpush1.msra.mxu0 %v671
    %764 = vmatprep.subr.mxu0 0.0
    %765 = vmatpush1.msra.mxu0 %v672
    %766 = vmatprep.subr.mxu0 0.0
    %767 = vmatpush1.msra.mxu0 %v673
    %768 = vmatprep.subr.mxu0 0.0
    %769 = vmatpush1.msra.mxu0 %v674
    %770 = vmatprep.subr.mxu0 0.0
    %771 = vmatpush1.msra.mxu0 %v675
    %772 = vmatprep.subr.mxu0 0.0
    %773 = vmatpush1.msra.mxu0 %v676
    %774 = vmatprep.subr.mxu0 0.0
    %775 = vmatpush1.msra.mxu0 %v677
    %776 = vmatprep.subr.mxu0 0.0
    %777 = vmatpush1.msra.mxu0 %v678
    %778 = vmatprep.subr.mxu0 0.0
    %779 = vmatpush1.msra.mxu0 %v679
    %780 = vmatprep.subr.mxu0 0.0
    %781 = vmatpush1.msra.mxu0 %v680
    %782 = vmatprep.subr.mxu0 0.0
    %783 = vmatpush1.msra.mxu0 %v681
    %784 = vmatprep.subr.mxu0 0.0
    %785 = vmatpush1.msra.mxu0 0.0
    %786 = vmatprep.subr.mxu0 0.0
    %787 = vmatpush1.msra.mxu0 0.0
    %788 = vmatprep.subr.mxu0 0.0
    %789 = vmatpush1.msra.mxu0 0.0
    %790 = vmatprep.subr.mxu0 0.0
    %791 = vmatpush1.msra.mxu0 0.0
    %792 = vmatprep.subr.mxu0 0.0
    %793 = vmatpush1.msra.mxu0 0.0
    %794 = vmatprep.subr.mxu0 0.0
    %795 = vmatpush1.msra.mxu0 0.0
    %796 = vmatprep.subr.mxu0 0.0
    %797 = vmatpush1.msra.mxu0 0.0
    %798 = vmatprep.subr.mxu0 0.0
    %799 = vmatpush1.msra.mxu0 0.0
    %800 = vmatprep.subr.mxu0 0.0
    %801 = vmatpush1.msra.mxu0 0.0
    %802 = vmatprep.subr.mxu0 0.0
    %803 = vmatpush1.msra.mxu0 0.0
    %804 = vmatprep.subr.mxu0 0.0
    %805 = vmatpush1.msra.mxu0 0.0
    %806 = vmatprep.subr.mxu0 0.0
    %807 = vmatpush1.msra.mxu0 0.0
    %808 = vmatprep.subr.mxu0 0.0
    %809 = vmatpush1.msra.mxu0 0.0
    %810 = vmatprep.subr.mxu0 0.0
    %811 = vmatpush1.msra.mxu0 0.0
    %812 = vmatprep.subr.mxu0 0.0
    %813 = vmatpush1.msra.mxu0 0.0
    %814 = vmatprep.subr.mxu0 0.0
    %815 = vmatpush1.msra.mxu0 0.0
    %816 = vmatprep.mubr.f32.mxu0 0.0
    %817 = vmatmul.mubr.f32.gmra.mrb[0].mxu0 %v633
    %v818 = vpop.f32.mrb[0].mxu0
    %v819 = vadd.f32 %v749, %v818
    %v820 = vpop.f32.mrb[0].mxu0
    %821 = vdwg.mxu0
    %v822 = vadd.f32 %v616, %v819
    %s823 = scalar_lea.hbm %s5, 18432
    // Predicated region
    $region42: #{tpu_custom_call.1} parent=1 // pred_check
      _
    $region43: #{tpu_custom_call.1} parent=1 // pred_check_branch
      %825 = sbr.rel target = $region45
    $region44: #{tpu_custom_call.1} parent=1 // pred_region
      %826 = sst [smem:[#allocation13]] [#allocation20]
      %827 = sst [smem:[#allocation14]] [#allocation19]
    $region45: #{tpu_custom_call.1} parent=1 // pred_fallthru
      _
    %829 = shalt.err (0)
    %s831 = sshll.u32 %s409, 4
    %s832 = int_to_ptr.vmem [resolvable:$true] %s831
    %834 = dma.hbm_to_vmem [thread:$0]  %s823, 6144, %s832, %s410
    %s835 = sshll.u32 %s422, 4
    %836 = dma.done [#allocation4], %s835
    %v837 = vld [vmem:[#allocation5 + $0x30] sm:$0xff]
    %v838 = vld [vmem:[#allocation5 + $0x38] sm:$0xff]
    %v839 = vld [vmem:[#allocation5 + $0x40] sm:$0xff]
    %v840 = vld [vmem:[#allocation3] sm:$0xff]
    %v841 = vld [vmem:[#allocation3 + $0x8] sm:$0xff]
    %v842 = vld [vmem:[#allocation3 + $0x10] sm:$0xff]
    %v843 = vld [vmem:[#allocation3 + $0x18] sm:$0xff]
    %v844 = vld [vmem:[#allocation3 + $0x20] sm:$0xff]
    %v845 = vld [vmem:[#allocation3 + $0x28] sm:$0xff]
    %v846 = vld [vmem:[#allocation3 + $0x30] sm:$0xff]
    %v847 = vld [vmem:[#allocation3 + $0x38] sm:$0xff]
    %v848 = vld [vmem:[#allocation3 + $0x40] sm:$0xff]
    %v849 = vld [vmem:[#allocation3 + $0x48] sm:$0xff]
    %v850 = vld [vmem:[#allocation3 + $0x50] sm:$0xff]
    %v851 = vld [vmem:[#allocation3 + $0x58] sm:$0xff]
    %v852 = vld [vmem:[#allocation3 + $0x60] sm:$0xff]
    %v853 = vld [vmem:[#allocation3 + $0x68] sm:$0xff]
    %v854 = vld [vmem:[#allocation3 + $0x70] sm:$0xff]
    %v855 = vld [vmem:[#allocation3 + $0x78] sm:$0xff]
    %v856 = vld [vmem:[#allocation3 + $0x80] sm:$0xff]
    %v857 = vld [vmem:[#allocation3 + $0x88] sm:$0xff]
    %v858 = vld [vmem:[#allocation3 + $0x90] sm:$0xff]
    %v859 = vld [vmem:[#allocation3 + $0x98] sm:$0xff]
    %v860 = vld [vmem:[#allocation3 + $0xa0] sm:$0xff]
    %v861 = vld [vmem:[#allocation3 + $0xa8] sm:$0xff]
    %v862 = vld [vmem:[#allocation3 + $0xb0] sm:$0xff]
    %v863 = vld [vmem:[#allocation3 + $0xb8] sm:$0xff]
    %v864 = vld [vmem:[#allocation3 + $0xc0] sm:$0xff]
    %v865 = vld [vmem:[#allocation3 + $0xc8] sm:$0xff]
    %v866 = vld [vmem:[#allocation3 + $0xd0] sm:$0xff]
    %v867 = vld [vmem:[#allocation3 + $0xd8] sm:$0xff]
    %v868 = vld [vmem:[#allocation3 + $0xe0] sm:$0xff]
    %v869 = vld [vmem:[#allocation3 + $0xe8] sm:$0xff]
    %v870 = vld [vmem:[#allocation3 + $0xf0] sm:$0xff]
    %v871 = vld [vmem:[#allocation3 + $0xf8] sm:$0xff]
    %v872 = vld [vmem:[#allocation3 + $0x100] sm:$0xff]
    %v873 = vld [vmem:[#allocation3 + $0x108] sm:$0xff]
    %v874 = vld [vmem:[#allocation3 + $0x110] sm:$0xff]
    %v875 = vld [vmem:[#allocation3 + $0x118] sm:$0xff]
    %v876 = vld [vmem:[#allocation3 + $0x120] sm:$0xff]
    %v877 = vld [vmem:[#allocation3 + $0x128] sm:$0xff]
    %v878 = vld [vmem:[#allocation3 + $0x130] sm:$0xff]
    %v879 = vld [vmem:[#allocation3 + $0x138] sm:$0xff]
    %v880 = vld [vmem:[#allocation3 + $0x140] sm:$0xff]
    %v881 = vld [vmem:[#allocation3 + $0x148] sm:$0xff]
    %v882 = vld [vmem:[#allocation3 + $0x150] sm:$0xff]
    %v883 = vld [vmem:[#allocation3 + $0x158] sm:$0xff]
    %v884 = vld [vmem:[#allocation3 + $0x160] sm:$0xff]
    %v885 = vld [vmem:[#allocation3 + $0x168] sm:$0xff]
    %v886 = vld [vmem:[#allocation3 + $0x170] sm:$0xff]
    %v887 = vld [vmem:[#allocation3 + $0x178] sm:$0xff]
    %888 = vmatprep.subr.mxu0 0.0
    %889 = vmatpush1.msra.mxu0 %v840
    %890 = vmatprep.subr.mxu0 0.0
    %891 = vmatpush1.msra.mxu0 %v841
    %892 = vmatprep.subr.mxu0 0.0
    %893 = vmatpush1.msra.mxu0 %v842
    %894 = vmatprep.subr.mxu0 0.0
    %895 = vmatpush1.msra.mxu0 %v843
    %896 = vmatprep.subr.mxu0 0.0
    %897 = vmatpush1.msra.mxu0 %v844
    %898 = vmatprep.subr.mxu0 0.0
    %899 = vmatpush1.msra.mxu0 %v845
    %900 = vmatprep.subr.mxu0 0.0
    %901 = vmatpush1.msra.mxu0 %v846
    %902 = vmatprep.subr.mxu0 0.0
    %903 = vmatpush1.msra.mxu0 %v847
    %904 = vmatprep.subr.mxu0 0.0
    %905 = vmatpush1.msra.mxu0 %v848
    %906 = vmatprep.subr.mxu0 0.0
    %907 = vmatpush1.msra.mxu0 %v849
    %908 = vmatprep.subr.mxu0 0.0
    %909 = vmatpush1.msra.mxu0 %v850
    %910 = vmatprep.subr.mxu0 0.0
    %911 = vmatpush1.msra.mxu0 %v851
    %912 = vmatprep.subr.mxu0 0.0
    %913 = vmatpush1.msra.mxu0 %v852
    %914 = vmatprep.subr.mxu0 0.0
    %915 = vmatpush1.msra.mxu0 %v853
    %916 = vmatprep.subr.mxu0 0.0
    %917 = vmatpush1.msra.mxu0 %v854
    %918 = vmatprep.subr.mxu0 0.0
    %919 = vmatpush1.msra.mxu0 %v855
    %920 = vmatprep.subr.mxu0 0.0
    %921 = vmatpush1.msra.mxu0 %v856
    %922 = vmatprep.subr.mxu0 0.0
    %923 = vmatpush1.msra.mxu0 %v857
    %924 = vmatprep.subr.mxu0 0.0
    %925 = vmatpush1.msra.mxu0 %v858
    %926 = vmatprep.subr.mxu0 0.0
    %927 = vmatpush1.msra.mxu0 %v859
    %928 = vmatprep.subr.mxu0 0.0
    %929 = vmatpush1.msra.mxu0 %v860
    %930 = vmatprep.subr.mxu0 0.0
    %931 = vmatpush1.msra.mxu0 %v861
    %932 = vmatprep.subr.mxu0 0.0
    %933 = vmatpush1.msra.mxu0 %v862
    %934 = vmatprep.subr.mxu0 0.0
    %935 = vmatpush1.msra.mxu0 %v863
    %936 = vmatprep.subr.mxu0 0.0
    %937 = vmatpush1.msra.mxu0 %v864
    %938 = vmatprep.subr.mxu0 0.0
    %939 = vmatpush1.msra.mxu0 %v865
    %940 = vmatprep.subr.mxu0 0.0
    %941 = vmatpush1.msra.mxu0 %v866
    %942 = vmatprep.subr.mxu0 0.0
    %943 = vmatpush1.msra.mxu0 %v867
    %944 = vmatprep.subr.mxu0 0.0
    %945 = vmatpush1.msra.mxu0 %v868
    %946 = vmatprep.subr.mxu0 0.0
    %947 = vmatpush1.msra.mxu0 %v869
    %948 = vmatprep.subr.mxu0 0.0
    %949 = vmatpush1.msra.mxu0 %v870
    %950 = vmatprep.subr.mxu0 0.0
    %951 = vmatpush1.msra.mxu0 %v871
    %952 = vmatprep.mubr.f32.mxu0 %v838
    %953 = vmatmul.mubr.f32.gmra.mrb[0].mxu0 %v837
    %v954 = vpop.f32.mrb[0].mxu0
    %v955 = vadd.f32 0.0, %v954
    %v956 = vpop.f32.mrb[0].mxu0
    %957 = vdwg.mxu0
    %958 = vmatprep.subr.mxu0 0.0
    %959 = vmatpush1.msra.mxu0 %v872
    %960 = vmatprep.subr.mxu0 0.0
    %961 = vmatpush1.msra.mxu0 %v873
    %962 = vmatprep.subr.mxu0 0.0
    %963 = vmatpush1.msra.mxu0 %v874
    %964 = vmatprep.subr.mxu0 0.0
    %965 = vmatpush1.msra.mxu0 %v875
    %966 = vmatprep.subr.mxu0 0.0
    %967 = vmatpush1.msra.mxu0 %v876
    %968 = vmatprep.subr.mxu0 0.0
    %969 = vmatpush1.msra.mxu0 %v877
    %970 = vmatprep.subr.mxu0 0.0
    %971 = vmatpush1.msra.mxu0 %v878
    %972 = vmatprep.subr.mxu0 0.0
    %973 = vmatpush1.msra.mxu0 %v879
    %974 = vmatprep.subr.mxu0 0.0
    %975 = vmatpush1.msra.mxu0 %v880
    %976 = vmatprep.subr.mxu0 0.0
    %977 = vmatpush1.msra.mxu0 %v881
    %978 = vmatprep.subr.mxu0 0.0
    %979 = vmatpush1.msra.mxu0 %v882
    %980 = vmatprep.subr.mxu0 0.0
    %981 = vmatpush1.msra.mxu0 %v883
    %982 = vmatprep.subr.mxu0 0.0
    %983 = vmatpush1.msra.mxu0 %v884
    %984 = vmatprep.subr.mxu0 0.0
    %985 = vmatpush1.msra.mxu0 %v885
    %986 = vmatprep.subr.mxu0 0.0
    %987 = vmatpush1.msra.mxu0 %v886
    %988 = vmatprep.subr.mxu0 0.0
    %989 = vmatpush1.msra.mxu0 %v887
    %990 = vmatprep.subr.mxu0 0.0
    %991 = vmatpush1.msra.mxu0 0.0
    %992 = vmatprep.subr.mxu0 0.0
    %993 = vmatpush1.msra.mxu0 0.0
    %994 = vmatprep.subr.mxu0 0.0
    %995 = vmatpush1.msra.mxu0 0.0
    %996 = vmatprep.subr.mxu0 0.0
    %997 = vmatpush1.msra.mxu0 0.0
    %998 = vmatprep.subr.mxu0 0.0
    %999 = vmatpush1.msra.mxu0 0.0
    %1000 = vmatprep.subr.mxu0 0.0
    %1001 = vmatpush1.msra.mxu0 0.0
    %1002 = vmatprep.subr.mxu0 0.0
    %1003 = vmatpush1.msra.mxu0 0.0
    %1004 = vmatprep.subr.mxu0 0.0
    %1005 = vmatpush1.msra.mxu0 0.0
    %1006 = vmatprep.subr.mxu0 0.0
    %1007 = vmatpush1.msra.mxu0 0.0
    %1008 = vmatprep.subr.mxu0 0.0
    %1009 = vmatpush1.msra.mxu0 0.0
    %1010 = vmatprep.subr.mxu0 0.0
    %1011 = vmatpush1.msra.mxu0 0.0
    %1012 = vmatprep.subr.mxu0 0.0
    %1013 = vmatpush1.msra.mxu0 0.0
    %1014 = vmatprep.subr.mxu0 0.0
    %1015 = vmatpush1.msra.mxu0 0.0
    %1016 = vmatprep.subr.mxu0 0.0
    %1017 = vmatpush1.msra.mxu0 0.0
    %1018 = vmatprep.subr.mxu0 0.0
    %1019 = vmatpush1.msra.mxu0 0.0
    %1020 = vmatprep.subr.mxu0 0.0
    %1021 = vmatpush1.msra.mxu0 0.0
    %1022 = vmatprep.mubr.f32.mxu0 0.0
    %1023 = vmatmul.mubr.f32.gmra.mrb[0].mxu0 %v839
    %v1024 = vpop.f32.mrb[0].mxu0
    %v1025 = vadd.f32 %v955, %v1024
    %v1026 = vpop.f32.mrb[0].mxu0
    %1027 = vdwg.mxu0
    %v1028 = vadd.f32 %v822, %v1025
    %s1029 = sshll.u32 %s422, 4
    %1030 = dma.done %s410, %s1029
    %v1031 = vld [vmem:[#allocation5 + $0x48] sm:$0xff]
    %v1032 = vld [vmem:[#allocation5 + $0x50] sm:$0xff]
    %v1033 = vld [vmem:[#allocation5 + $0x58] sm:$0xff]
    %v1034 = vld [vmem:[%s409] sm:$0xff]
    %v1035 = vld [vmem:[%s409 + $0x8] sm:$0xff]
    %v1036 = vld [vmem:[%s409 + $0x10] sm:$0xff]
    %v1037 = vld [vmem:[%s409 + $0x18] sm:$0xff]
    %v1038 = vld [vmem:[%s409 + $0x20] sm:$0xff]
    %v1039 = vld [vmem:[%s409 + $0x28] sm:$0xff]
    %v1040 = vld [vmem:[%s409 + $0x30] sm:$0xff]
    %v1041 = vld [vmem:[%s409 + $0x38] sm:$0xff]
    %v1042 = vld [vmem:[%s409 + $0x40] sm:$0xff]
    %v1043 = vld [vmem:[%s409 + $0x48] sm:$0xff]
    %v1044 = vld [vmem:[%s409 + $0x50] sm:$0xff]
    %v1045 = vld [vmem:[%s409 + $0x58] sm:$0xff]
    %v1046 = vld [vmem:[%s409 + $0x60] sm:$0xff]
    %v1047 = vld [vmem:[%s409 + $0x68] sm:$0xff]
    %v1048 = vld [vmem:[%s409 + $0x70] sm:$0xff]
    %v1049 = vld [vmem:[%s409 + $0x78] sm:$0xff]
    %v1050 = vld [vmem:[%s409 + $0x80] sm:$0xff]
    %v1051 = vld [vmem:[%s409 + $0x88] sm:$0xff]
    %v1052 = vld [vmem:[%s409 + $0x90] sm:$0xff]
    %v1053 = vld [vmem:[%s409 + $0x98] sm:$0xff]
    %v1054 = vld [vmem:[%s409 + $0xa0] sm:$0xff]
    %v1055 = vld [vmem:[%s409 + $0xa8] sm:$0xff]
    %v1056 = vld [vmem:[%s409 + $0xb0] sm:$0xff]
    %v1057 = vld [vmem:[%s409 + $0xb8] sm:$0xff]
    %v1058 = vld [vmem:[%s409 + $0xc0] sm:$0xff]
    %v1059 = vld [vmem:[%s409 + $0xc8] sm:$0xff]
    %v1060 = vld [vmem:[%s409 + $0xd0] sm:$0xff]
    %v1061 = vld [vmem:[%s409 + $0xd8] sm:$0xff]
    %v1062 = vld [vmem:[%s409 + $0xe0] sm:$0xff]
    %v1063 = vld [vmem:[%s409 + $0xe8] sm:$0xff]
    %v1064 = vld [vmem:[%s409 + $0xf0] sm:$0xff]
    %v1065 = vld [vmem:[%s409 + $0xf8] sm:$0xff]
    %v1066 = vld [vmem:[%s409 + $0x100] sm:$0xff]
    %v1067 = vld [vmem:[%s409 + $0x108] sm:$0xff]
    %v1068 = vld [vmem:[%s409 + $0x110] sm:$0xff]
    %v1069 = vld [vmem:[%s409 + $0x118] sm:$0xff]
    %v1070 = vld [vmem:[%s409 + $0x120] sm:$0xff]
    %v1071 = vld [vmem:[%s409 + $0x128] sm:$0xff]
    %v1072 = vld [vmem:[%s409 + $0x130] sm:$0xff]
    %v1073 = vld [vmem:[%s409 + $0x138] sm:$0xff]
    %v1074 = vld [vmem:[%s409 + $0x140] sm:$0xff]
    %v1075 = vld [vmem:[%s409 + $0x148] sm:$0xff]
    %v1076 = vld [vmem:[%s409 + $0x150] sm:$0xff]
    %v1077 = vld [vmem:[%s409 + $0x158] sm:$0xff]
    %v1078 = vld [vmem:[%s409 + $0x160] sm:$0xff]
    %v1079 = vld [vmem:[%s409 + $0x168] sm:$0xff]
    %v1080 = vld [vmem:[%s409 + $0x170] sm:$0xff]
    %v1081 = vld [vmem:[%s409 + $0x178] sm:$0xff]
    %1082 = vmatprep.subr.mxu0 0.0
    %1083 = vmatpush1.msra.mxu0 %v1034
    %1084 = vmatprep.subr.mxu0 0.0
    %1085 = vmatpush1.msra.mxu0 %v1035
    %1086 = vmatprep.subr.mxu0 0.0
    %1087 = vmatpush1.msra.mxu0 %v1036
    %1088 = vmatprep.subr.mxu0 0.0
    %1089 = vmatpush1.msra.mxu0 %v1037
    %1090 = vmatprep.subr.mxu0 0.0
    %1091 = vmatpush1.msra.mxu0 %v1038
    %1092 = vmatprep.subr.mxu0 0.0
    %1093 = vmatpush1.msra.mxu0 %v1039
    %1094 = vmatprep.subr.mxu0 0.0
    %1095 = vmatpush1.msra.mxu0 %v1040
    %1096 = vmatprep.subr.mxu0 0.0
    %1097 = vmatpush1.msra.mxu0 %v1041
    %1098 = vmatprep.subr.mxu0 0.0
    %1099 = vmatpush1.msra.mxu0 %v1042
    %1100 = vmatprep.subr.mxu0 0.0
    %1101 = vmatpush1.msra.mxu0 %v1043
    %1102 = vmatprep.subr.mxu0 0.0
    %1103 = vmatpush1.msra.mxu0 %v1044
    %1104 = vmatprep.subr.mxu0 0.0
    %1105 = vmatpush1.msra.mxu0 %v1045
    %1106 = vmatprep.subr.mxu0 0.0
    %1107 = vmatpush1.msra.mxu0 %v1046
    %1108 = vmatprep.subr.mxu0 0.0
    %1109 = vmatpush1.msra.mxu0 %v1047
    %1110 = vmatprep.subr.mxu0 0.0
    %1111 = vmatpush1.msra.mxu0 %v1048
    %1112 = vmatprep.subr.mxu0 0.0
    %1113 = vmatpush1.msra.mxu0 %v1049
    %1114 = vmatprep.subr.mxu0 0.0
    %1115 = vmatpush1.msra.mxu0 %v1050
    %1116 = vmatprep.subr.mxu0 0.0
    %1117 = vmatpush1.msra.mxu0 %v1051
    %1118 = vmatprep.subr.mxu0 0.0
    %1119 = vmatpush1.msra.mxu0 %v1052
    %1120 = vmatprep.subr.mxu0 0.0
    %1121 = vmatpush1.msra.mxu0 %v1053
    %1122 = vmatprep.subr.mxu0 0.0
    %1123 = vmatpush1.msra.mxu0 %v1054
    %1124 = vmatprep.subr.mxu0 0.0
    %1125 = vmatpush1.msra.mxu0 %v1055
    %1126 = vmatprep.subr.mxu0 0.0
    %1127 = vmatpush1.msra.mxu0 %v1056
    %1128 = vmatprep.subr.mxu0 0.0
    %1129 = vmatpush1.msra.mxu0 %v1057
    %1130 = vmatprep.subr.mxu0 0.0
    %1131 = vmatpush1.msra.mxu0 %v1058
    %1132 = vmatprep.subr.mxu0 0.0
    %1133 = vmatpush1.msra.mxu0 %v1059
    %1134 = vmatprep.subr.mxu0 0.0
    %1135 = vmatpush1.msra.mxu0 %v1060
    %1136 = vmatprep.subr.mxu0 0.0
    %1137 = vmatpush1.msra.mxu0 %v1061
    %1138 = vmatprep.subr.mxu0 0.0
    %1139 = vmatpush1.msra.mxu0 %v1062
    %1140 = vmatprep.subr.mxu0 0.0
    %1141 = vmatpush1.msra.mxu0 %v1063
    %1142 = vmatprep.subr.mxu0 0.0
    %1143 = vmatpush1.msra.mxu0 %v1064
    %1144 = vmatprep.subr.mxu0 0.0
    %1145 = vmatpush1.msra.mxu0 %v1065
    %1146 = vmatprep.mubr.f32.mxu0 %v1032
    %1147 = vmatmul.mubr.f32.gmra.mrb[0].mxu0 %v1031
    %v1148 = vpop.f32.mrb[0].mxu0
    %v1149 = vadd.f32 0.0, %v1148
    %v1150 = vpop.f32.mrb[0].mxu0
    %1151 = vdwg.mxu0
    %1152 = vmatprep.subr.mxu0 0.0
    %1153 = vmatpush1.msra.mxu0 %v1066
    %1154 = vmatprep.subr.mxu0 0.0
    %1155 = vmatpush1.msra.mxu0 %v1067
    %1156 = vmatprep.subr.mxu0 0.0
    %1157 = vmatpush1.msra.mxu0 %v1068
    %1158 = vmatprep.subr.mxu0 0.0
    %1159 = vmatpush1.msra.mxu0 %v1069
    %1160 = vmatprep.subr.mxu0 0.0
    %1161 = vmatpush1.msra.mxu0 %v1070
    %1162 = vmatprep.subr.mxu0 0.0
    %1163 = vmatpush1.msra.mxu0 %v1071
    %1164 = vmatprep.subr.mxu0 0.0
    %1165 = vmatpush1.msra.mxu0 %v1072
    %1166 = vmatprep.subr.mxu0 0.0
    %1167 = vmatpush1.msra.mxu0 %v1073
    %1168 = vmatprep.subr.mxu0 0.0
    %1169 = vmatpush1.msra.mxu0 %v1074
    %1170 = vmatprep.subr.mxu0 0.0
    %1171 = vmatpush1.msra.mxu0 %v1075
    %1172 = vmatprep.subr.mxu0 0.0
    %1173 = vmatpush1.msra.mxu0 %v1076
    %1174 = vmatprep.subr.mxu0 0.0
    %1175 = vmatpush1.msra.mxu0 %v1077
    %1176 = vmatprep.subr.mxu0 0.0
    %1177 = vmatpush1.msra.mxu0 %v1078
    %1178 = vmatprep.subr.mxu0 0.0
    %1179 = vmatpush1.msra.mxu0 %v1079
    %1180 = vmatprep.subr.mxu0 0.0
    %1181 = vmatpush1.msra.mxu0 %v1080
    %1182 = vmatprep.subr.mxu0 0.0
    %1183 = vmatpush1.msra.mxu0 %v1081
    %1184 = vmatprep.subr.mxu0 0.0
    %1185 = vmatpush1.msra.mxu0 0.0
    %1186 = vmatprep.subr.mxu0 0.0
    %1187 = vmatpush1.msra.mxu0 0.0
    %1188 = vmatprep.subr.mxu0 0.0
    %1189 = vmatpush1.msra.mxu0 0.0
    %1190 = vmatprep.subr.mxu0 0.0
    %1191 = vmatpush1.msra.mxu0 0.0
    %1192 = vmatprep.subr.mxu0 0.0
    %1193 = vmatpush1.msra.mxu0 0.0
    %1194 = vmatprep.subr.mxu0 0.0
    %1195 = vmatpush1.msra.mxu0 0.0
    %1196 = vmatprep.subr.mxu0 0.0
    %1197 = vmatpush1.msra.mxu0 0.0
    %1198 = vmatprep.subr.mxu0 0.0
    %1199 = vmatpush1.msra.mxu0 0.0
    %1200 = vmatprep.subr.mxu0 0.0
    %1201 = vmatpush1.msra.mxu0 0.0
    %1202 = vmatprep.subr.mxu0 0.0
    %1203 = vmatpush1.msra.mxu0 0.0
    %1204 = vmatprep.subr.mxu0 0.0
    %1205 = vmatpush1.msra.mxu0 0.0
    %1206 = vmatprep.subr.mxu0 0.0
    %1207 = vmatpush1.msra.mxu0 0.0
    %1208 = vmatprep.subr.mxu0 0.0
    %1209 = vmatpush1.msra.mxu0 0.0
    %1210 = vmatprep.subr.mxu0 0.0
    %1211 = vmatpush1.msra.mxu0 0.0
    %1212 = vmatprep.subr.mxu0 0.0
    %1213 = vmatpush1.msra.mxu0 0.0
    %1214 = vmatprep.subr.mxu0 0.0
    %1215 = vmatpush1.msra.mxu0 0.0
    %1216 = vmatprep.mubr.f32.mxu0 0.0
    %1217 = vmatmul.mubr.f32.gmra.mrb[0].mxu0 %v1033
    %v1218 = vpop.f32.mrb[0].mxu0
    %v1219 = vadd.f32 %v1149, %v1218
    %v1220 = vpop.f32.mrb[0].mxu0
    %1221 = vdwg.mxu0
    %v1222 = vadd.f32 %v1028, %v1219
    %v1223 = vld [vmem:[#allocation8] sm:$0xff]
    %v1224 = vld [vmem:[#allocation8 + $0x8] sm:$0xff]
    %v1225 = vld [vmem:[#allocation8 + $0x10] sm:$0xff]
    %v1226 = vld [vmem:[#allocation8 + $0x18] sm:$0xff]
    %v1227 = vld [vmem:[#allocation8 + $0x28] sm:$0xff]
    %v1228 = vld [vmem:[#allocation8 + $0x30] sm:$0xff]
    %v1229 = vld [vmem:[#allocation8 + $0x38] sm:$0xff]
    %v1230 = vld [vmem:[#allocation8 + $0x40] sm:$0xff]
    %v1231 = vld [vmem:[#allocation8 + $0x50] sm:$0xff]
    %v1232 = vld [vmem:[#allocation8 + $0x58] sm:$0xff]
    %v1233 = vld [vmem:[#allocation8 + $0x60] sm:$0xff]
    %v1234 = vld [vmem:[#allocation8 + $0x68] sm:$0xff]
    %v1235 = vld [vmem:[#allocation8 + $0x78] sm:$0xff]
    %v1236 = vld [vmem:[#allocation8 + $0x80] sm:$0xff]
    %v1237 = vld [vmem:[#allocation8 + $0x88] sm:$0xff]
    %v1238 = vld [vmem:[#allocation8 + $0x90] sm:$0xff]
    %v1239 = vld [vmem:[#allocation8 + $0xa0] sm:$0xff]
    %v1240 = vld [vmem:[#allocation8 + $0xa8] sm:$0xff]
    %v1241 = vld [vmem:[#allocation8 + $0xb0] sm:$0xff]
    %v1242 = vld [vmem:[#allocation8 + $0xb8] sm:$0xff]
    %v1243 = vld [vmem:[#allocation8 + $0xc8] sm:$0xff]
    %v1244 = vld [vmem:[#allocation8 + $0xd0] sm:$0xff]
    %v1245 = vld [vmem:[#allocation8 + $0xd8] sm:$0xff]
    %v1246 = vld [vmem:[#allocation8 + $0xe0] sm:$0xff]
    %v1247 = vld [vmem:[#allocation8 + $0xf0] sm:$0xff]
    %v1248 = vld [vmem:[#allocation8 + $0xf8] sm:$0xff]
    %v1249 = vld [vmem:[#allocation8 + $0x100] sm:$0xff]
    %v1250 = vld [vmem:[#allocation8 + $0x108] sm:$0xff]
    %v1251 = vld [vmem:[#allocation8 + $0x118] sm:$0xff]
    %v1252 = vld [vmem:[#allocation8 + $0x120] sm:$0xff]
    %v1253 = vld [vmem:[#allocation8 + $0x128] sm:$0xff]
    %v1254 = vld [vmem:[#allocation8 + $0x130] sm:$0xff]
    %v1255 = vld [vmem:[#allocation8 + $0x140] sm:$0xff]
    %v1256 = vld [vmem:[#allocation8 + $0x148] sm:$0xff]
    %v1257 = vld [vmem:[#allocation8 + $0x150] sm:$0xff]
    %v1258 = vld [vmem:[#allocation8 + $0x158] sm:$0xff]
    %v1259 = vld [vmem:[#allocation8 + $0x168] sm:$0xff]
    %v1260 = vld [vmem:[#allocation8 + $0x170] sm:$0xff]
    %v1261 = vld [vmem:[#allocation8 + $0x178] sm:$0xff]
    %v1262 = vld [vmem:[#allocation8 + $0x180] sm:$0xff]
    %v1263 = vld [vmem:[#allocation8 + $0x190] sm:$0xff]
    %v1264 = vld [vmem:[#allocation8 + $0x198] sm:$0xff]
    %v1265 = vld [vmem:[#allocation8 + $0x1a0] sm:$0xff]
    %v1266 = vld [vmem:[#allocation8 + $0x1a8] sm:$0xff]
    %v1267 = vld [vmem:[#allocation8 + $0x1b8] sm:$0xff]
    %v1268 = vld [vmem:[#allocation8 + $0x1c0] sm:$0xff]
    %v1269 = vld [vmem:[#allocation8 + $0x1c8] sm:$0xff]
    %v1270 = vld [vmem:[#allocation8 + $0x1d0] sm:$0xff]
    %v1271 = vld [vmem:[#allocation8 + $0x1e0] sm:$0xff]
    %v1272 = vld [vmem:[#allocation8 + $0x1e8] sm:$0xff]
    %v1273 = vld [vmem:[#allocation8 + $0x1f0] sm:$0xff]
    %v1274 = vld [vmem:[#allocation8 + $0x1f8] sm:$0xff]
    %v1275 = vld [vmem:[#allocation8 + $0x208] sm:$0xff]
    %v1276 = vld [vmem:[#allocation8 + $0x210] sm:$0xff]
    %v1277 = vld [vmem:[#allocation8 + $0x218] sm:$0xff]
    %v1278 = vld [vmem:[#allocation8 + $0x220] sm:$0xff]
    %v1279 = vld [vmem:[#allocation8 + $0x230] sm:$0xff]
    %v1280 = vld [vmem:[#allocation8 + $0x238] sm:$0xff]
    %v1281 = vld [vmem:[#allocation8 + $0x240] sm:$0xff]
    %v1282 = vld [vmem:[#allocation8 + $0x248] sm:$0xff]
    %v1283 = vld [vmem:[#allocation8 + $0x258] sm:$0xff]
    %v1284 = vld [vmem:[#allocation8 + $0x260] sm:$0xff]
    %v1285 = vld [vmem:[#allocation8 + $0x268] sm:$0xff]
    %v1286 = vld [vmem:[#allocation8 + $0x270] sm:$0xff]
    %v1287 = vld [vmem:[#allocation2] sm:$0xff]
    %v1288 = vld [vmem:[#allocation2 + $0x8] sm:$0xff]
    %v1289 = vld [vmem:[#allocation2 + $0x10] sm:$0xff]
    %v1290 = vld [vmem:[#allocation2 + $0x18] sm:$0xff]
    %1291 = vmatprep.subr.mxu0 %v1224
    %1292 = vmatpush1.msra.mxu0 %v1223
    %1293 = vmatprep.subr.mxu0 %v1228
    %1294 = vmatpush1.msra.mxu0 %v1227
    %1295 = vmatprep.subr.mxu0 %v1232
    %1296 = vmatpush1.msra.mxu0 %v1231
    %1297 = vmatprep.subr.mxu0 %v1236
    %1298 = vmatpush1.msra.mxu0 %v1235
    %1299 = vmatprep.subr.mxu0 %v1240
    %1300 = vmatpush1.msra.mxu0 %v1239
    %1301 = vmatprep.subr.mxu0 %v1244
    %1302 = vmatpush1.msra.mxu0 %v1243
    %1303 = vmatprep.subr.mxu0 %v1248
    %1304 = vmatpush1.msra.mxu0 %v1247
    %1305 = vmatprep.subr.mxu0 %v1252
    %1306 = vmatpush1.msra.mxu0 %v1251
    %1307 = vmatprep.subr.mxu0 %v1256
    %1308 = vmatpush1.msra.mxu0 %v1255
    %1309 = vmatprep.subr.mxu0 %v1260
    %1310 = vmatpush1.msra.mxu0 %v1259
    %1311 = vmatprep.subr.mxu0 %v1264
    %1312 = vmatpush1.msra.mxu0 %v1263
    %1313 = vmatprep.subr.mxu0 %v1268
    %1314 = vmatpush1.msra.mxu0 %v1267
    %1315 = vmatprep.subr.mxu0 %v1272
    %1316 = vmatpush1.msra.mxu0 %v1271
    %1317 = vmatprep.subr.mxu0 %v1276
    %1318 = vmatpush1.msra.mxu0 %v1275
    %1319 = vmatprep.subr.mxu0 %v1280
    %1320 = vmatpush1.msra.mxu0 %v1279
    %1321 = vmatprep.subr.mxu0 %v1284
    %1322 = vmatpush1.msra.mxu0 %v1283
    %1323 = vmatprep.subr.mxu0 0.0
    %1324 = vmatpush1.msra.mxu0 0.0
    %1325 = vmatprep.subr.mxu0 0.0
    %1326 = vmatpush1.msra.mxu0 0.0
    %1327 = vmatprep.subr.mxu0 0.0
    %1328 = vmatpush1.msra.mxu0 0.0
    %1329 = vmatprep.subr.mxu0 0.0
    %1330 = vmatpush1.msra.mxu0 0.0
    %1331 = vmatprep.subr.mxu0 0.0
    %1332 = vmatpush1.msra.mxu0 0.0
    %1333 = vmatprep.subr.mxu0 0.0
    %1334 = vmatpush1.msra.mxu0 0.0
    %1335 = vmatprep.subr.mxu0 0.0
    %1336 = vmatpush1.msra.mxu0 0.0
    %1337 = vmatprep.subr.mxu0 0.0
    %1338 = vmatpush1.msra.mxu0 0.0
    %1339 = vmatprep.subr.mxu0 0.0
    %1340 = vmatpush1.msra.mxu0 0.0
    %1341 = vmatprep.subr.mxu0 0.0
    %1342 = vmatpush1.msra.mxu0 0.0
    %1343 = vmatprep.subr.mxu0 0.0
    %1344 = vmatpush1.msra.mxu0 0.0
    %1345 = vmatprep.subr.mxu0 0.0
    %1346 = vmatpush1.msra.mxu0 0.0
    %1347 = vmatprep.subr.mxu0 0.0
    %1348 = vmatpush1.msra.mxu0 0.0
    %1349 = vmatprep.subr.mxu0 0.0
    %1350 = vmatpush1.msra.mxu0 0.0
    %1351 = vmatprep.subr.mxu0 0.0
    %1352 = vmatpush1.msra.mxu0 0.0
    %1353 = vmatprep.subr.mxu0 0.0
    %1354 = vmatpush1.msra.mxu0 0.0
    %1355 = vmatprep.mubr.f32.mxu0 0.0
    %1356 = vmatmul.mubr.f32.gmra.mrb[0].mxu0 %v1222
    %v1357 = vpop.f32.mrb[0].mxu0
    %v1358 = vadd.f32 0.0, %v1357
    %v1359 = vpop.f32.mrb[0].mxu0
    %v1360 = vadd.f32 0.0, %v1359
    %1361 = vdwg.mxu0
    %1362 = vmatprep.subr.mxu0 %v1226
    %1363 = vmatpush1.msra.mxu0 %v1225
    %1364 = vmatprep.subr.mxu0 %v1230
    %1365 = vmatpush1.msra.mxu0 %v1229
    %1366 = vmatprep.subr.mxu0 %v1234
    %1367 = vmatpush1.msra.mxu0 %v1233
    %1368 = vmatprep.subr.mxu0 %v1238
    %1369 = vmatpush1.msra.mxu0 %v1237
    %1370 = vmatprep.subr.mxu0 %v1242
    %1371 = vmatpush1.msra.mxu0 %v1241
    %1372 = vmatprep.subr.mxu0 %v1246
    %1373 = vmatpush1.msra.mxu0 %v1245
    %1374 = vmatprep.subr.mxu0 %v1250
    %1375 = vmatpush1.msra.mxu0 %v1249
    %1376 = vmatprep.subr.mxu0 %v1254
    %1377 = vmatpush1.msra.mxu0 %v1253
    %1378 = vmatprep.subr.mxu0 %v1258
    %1379 = vmatpush1.msra.mxu0 %v1257
    %1380 = vmatprep.subr.mxu0 %v1262
    %1381 = vmatpush1.msra.mxu0 %v1261
    %1382 = vmatprep.subr.mxu0 %v1266
    %1383 = vmatpush1.msra.mxu0 %v1265
    %1384 = vmatprep.subr.mxu0 %v1270
    %1385 = vmatpush1.msra.mxu0 %v1269
    %1386 = vmatprep.subr.mxu0 %v1274
    %1387 = vmatpush1.msra.mxu0 %v1273
    %1388 = vmatprep.subr.mxu0 %v1278
    %1389 = vmatpush1.msra.mxu0 %v1277
    %1390 = vmatprep.subr.mxu0 %v1282
    %1391 = vmatpush1.msra.mxu0 %v1281
    %1392 = vmatprep.subr.mxu0 %v1286
    %1393 = vmatpush1.msra.mxu0 %v1285
    %1394 = vmatprep.subr.mxu0 0.0
    %1395 = vmatpush1.msra.mxu0 0.0
    %1396 = vmatprep.subr.mxu0 0.0
    %1397 = vmatpush1.msra.mxu0 0.0
    %1398 = vmatprep.subr.mxu0 0.0
    %1399 = vmatpush1.msra.mxu0 0.0
    %1400 = vmatprep.subr.mxu0 0.0
    %1401 = vmatpush1.msra.mxu0 0.0
    %1402 = vmatprep.subr.mxu0 0.0
    %1403 = vmatpush1.msra.mxu0 0.0
    %1404 = vmatprep.subr.mxu0 0.0
    %1405 = vmatpush1.msra.mxu0 0.0
    %1406 = vmatprep.subr.mxu0 0.0
    %1407 = vmatpush1.msra.mxu0 0.0
    %1408 = vmatprep.subr.mxu0 0.0
    %1409 = vmatpush1.msra.mxu0 0.0
    %1410 = vmatprep.subr.mxu0 0.0
    %1411 = vmatpush1.msra.mxu0 0.0
    %1412 = vmatprep.subr.mxu0 0.0
    %1413 = vmatpush1.msra.mxu0 0.0
    %1414 = vmatprep.subr.mxu0 0.0
    %1415 = vmatpush1.msra.mxu0 0.0
    %1416 = vmatprep.subr.mxu0 0.0
    %1417 = vmatpush1.msra.mxu0 0.0
    %1418 = vmatprep.subr.mxu0 0.0
    %1419 = vmatpush1.msra.mxu0 0.0
    %1420 = vmatprep.subr.mxu0 0.0
    %1421 = vmatpush1.msra.mxu0 0.0
    %1422 = vmatprep.subr.mxu0 0.0
    %1423 = vmatpush1.msra.mxu0 0.0
    %1424 = vmatprep.subr.mxu0 0.0
    %1425 = vmatpush1.msra.mxu0 0.0
    %1426 = vmatprep.mubr.f32.mxu0 0.0
    %1427 = vmatmul.mubr.f32.gmra.mrb[0].mxu0 %v1222
    %v1428 = vpop.f32.mrb[0].mxu0
    %v1429 = vadd.f32 0.0, %v1428
    %v1430 = vpop.f32.mrb[0].mxu0
    %v1431 = vadd.f32 0.0, %v1430
    %1432 = vdwg.mxu0
    %v1433 = vadd.f32 %v1287, %v1358
    %v1434 = vadd.f32 %v1288, %v1360
    %v1435 = vadd.f32 %v1289, %v1429
    %v1436 = vadd.f32 %v1290, %v1431
    %v1437 = vmul.f32 %v1433, 0.5
    %v1438 = vtanh.pop %v1437
    %v1439 = vmul.f32 %v1438, 0.5
    %v1440 = vadd.f32 %v1439, 0.5
    %v1441 = vmul.f32 %v1434, 0.5
    %v1442 = vtanh.pop %v1441
    %v1443 = vmul.f32 %v1442, 0.5
    %v1444 = vadd.f32 %v1443, 0.5
    %v1445 = vtanh.pop %v1435
    %v1446 = vmul.f32 %v1436, 0.5
    %v1447 = vtanh.pop %v1446
    %v1448 = vmul.f32 %v1447, 0.5
    %v1449 = vadd.f32 %v1448, 0.5
    %v1450 = vmul.f32 %v1444, 0.0
    %v1451 = vmul.f32 %v1440, %v1445
    %v1452 = vadd.f32 %v1450, %v1451
    %v1453 = vtanh.pop %v1452
    %v1454 = vmul.f32 %v1449, %v1453
    %v1455 = vld [vmem:[#allocation2 + $0x20] sm:$0xff]
    %v1456 = vld [vmem:[#allocation2 + $0x28] sm:$0xff]
    %v1457 = vld [vmem:[#allocation2 + $0x30] sm:$0xff]
    %v1458 = vld [vmem:[#allocation2 + $0x38] sm:$0xff]
    %1459 = vmatprep.subr.mxu0 %v1224
    %1460 = vmatpush1.msra.mxu0 %v1223
    %1461 = vmatprep.subr.mxu0 %v1228
    %1462 = vmatpush1.msra.mxu0 %v1227
    %1463 = vmatprep.subr.mxu0 %v1232
    %1464 = vmatpush1.msra.mxu0 %v1231
    %1465 = vmatprep.subr.mxu0 %v1236
    %1466 = vmatpush1.msra.mxu0 %v1235
    %1467 = vmatprep.subr.mxu0 %v1240
    %1468 = vmatpush1.msra.mxu0 %v1239
    %1469 = vmatprep.subr.mxu0 %v1244
    %1470 = vmatpush1.msra.mxu0 %v1243
    %1471 = vmatprep.subr.mxu0 %v1248
    %1472 = vmatpush1.msra.mxu0 %v1247
    %1473 = vmatprep.subr.mxu0 %v1252
    %1474 = vmatpush1.msra.mxu0 %v1251
    %1475 = vmatprep.subr.mxu0 %v1256
    %1476 = vmatpush1.msra.mxu0 %v1255
    %1477 = vmatprep.subr.mxu0 %v1260
    %1478 = vmatpush1.msra.mxu0 %v1259
    %1479 = vmatprep.subr.mxu0 %v1264
    %1480 = vmatpush1.msra.mxu0 %v1263
    %1481 = vmatprep.subr.mxu0 %v1268
    %1482 = vmatpush1.msra.mxu0 %v1267
    %1483 = vmatprep.subr.mxu0 %v1272
    %1484 = vmatpush1.msra.mxu0 %v1271
    %1485 = vmatprep.subr.mxu0 %v1276
    %1486 = vmatpush1.msra.mxu0 %v1275
    %1487 = vmatprep.subr.mxu0 %v1280
    %1488 = vmatpush1.msra.mxu0 %v1279
    %1489 = vmatprep.subr.mxu0 %v1284
    %1490 = vmatpush1.msra.mxu0 %v1283
    %1491 = vmatprep.subr.mxu0 0.0
    %1492 = vmatpush1.msra.mxu0 0.0
    %1493 = vmatprep.subr.mxu0 0.0
    %1494 = vmatpush1.msra.mxu0 0.0
    %1495 = vmatprep.subr.mxu0 0.0
    %1496 = vmatpush1.msra.mxu0 0.0
    %1497 = vmatprep.subr.mxu0 0.0
    %1498 = vmatpush1.msra.mxu0 0.0
    %1499 = vmatprep.subr.mxu0 0.0
    %1500 = vmatpush1.msra.mxu0 0.0
    %1501 = vmatprep.subr.mxu0 0.0
    %1502 = vmatpush1.msra.mxu0 0.0
    %1503 = vmatprep.subr.mxu0 0.0
    %1504 = vmatpush1.msra.mxu0 0.0
    %1505 = vmatprep.subr.mxu0 0.0
    %1506 = vmatpush1.msra.mxu0 0.0
    %1507 = vmatprep.subr.mxu0 0.0
    %1508 = vmatpush1.msra.mxu0 0.0
    %1509 = vmatprep.subr.mxu0 0.0
    %1510 = vmatpush1.msra.mxu0 0.0
    %1511 = vmatprep.subr.mxu0 0.0
    %1512 = vmatpush1.msra.mxu0 0.0
    %1513 = vmatprep.subr.mxu0 0.0
    %1514 = vmatpush1.msra.mxu0 0.0
    %1515 = vmatprep.subr.mxu0 0.0
    %1516 = vmatpush1.msra.mxu0 0.0
    %1517 = vmatprep.subr.mxu0 0.0
    %1518 = vmatpush1.msra.mxu0 0.0
    %1519 = vmatprep.subr.mxu0 0.0
    %1520 = vmatpush1.msra.mxu0 0.0
    %1521 = vmatprep.subr.mxu0 0.0
    %1522 = vmatpush1.msra.mxu0 0.0
    %1523 = vmatprep.mubr.f32.mxu0 0.0
    %1524 = vmatmul.mubr.f32.gmra.mrb[0].mxu0 %v1454
    %v1525 = vpop.f32.mrb[0].mxu0
    %v1526 = vadd.f32 0.0, %v1525
    %v1527 = vpop.f32.mrb[0].mxu0
    %v1528 = vadd.f32 0.0, %v1527
    %1529 = vdwg.mxu0
    %1530 = vmatprep.subr.mxu0 %v1226
    %1531 = vmatpush1.msra.mxu0 %v1225
    %1532 = vmatprep.subr.mxu0 %v1230
    %1533 = vmatpush1.msra.mxu0 %v1229
    %1534 = vmatprep.subr.mxu0 %v1234
    %1535 = vmatpush1.msra.mxu0 %v1233
    %1536 = vmatprep.subr.mxu0 %v1238
    %1537 = vmatpush1.msra.mxu0 %v1237
    %1538 = vmatprep.subr.mxu0 %v1242
    %1539 = vmatpush1.msra.mxu0 %v1241
    %1540 = vmatprep.subr.mxu0 %v1246
    %1541 = vmatpush1.msra.mxu0 %v1245
    %1542 = vmatprep.subr.mxu0 %v1250
    %1543 = vmatpush1.msra.mxu0 %v1249
    %1544 = vmatprep.subr.mxu0 %v1254
    %1545 = vmatpush1.msra.mxu0 %v1253
    %1546 = vmatprep.subr.mxu0 %v1258
    %1547 = vmatpush1.msra.mxu0 %v1257
    %1548 = vmatprep.subr.mxu0 %v1262
    %1549 = vmatpush1.msra.mxu0 %v1261
    %1550 = vmatprep.subr.mxu0 %v1266
    %1551 = vmatpush1.msra.mxu0 %v1265
    %1552 = vmatprep.subr.mxu0 %v1270
    %1553 = vmatpush1.msra.mxu0 %v1269
    %1554 = vmatprep.subr.mxu0 %v1274
    %1555 = vmatpush1.msra.mxu0 %v1273
    %1556 = vmatprep.subr.mxu0 %v1278
    %1557 = vmatpush1.msra.mxu0 %v1277
    %1558 = vmatprep.subr.mxu0 %v1282
    %1559 = vmatpush1.msra.mxu0 %v1281
    %1560 = vmatprep.subr.mxu0 %v1286
    %1561 = vmatpush1.msra.mxu0 %v1285
    %1562 = vmatprep.subr.mxu0 0.0
    %1563 = vmatpush1.msra.mxu0 0.0
    %1564 = vmatprep.subr.mxu0 0.0
    %1565 = vmatpush1.msra.mxu0 0.0
    %1566 = vmatprep.subr.mxu0 0.0
    %1567 = vmatpush1.msra.mxu0 0.0
    %1568 = vmatprep.subr.mxu0 0.0
    %1569 = vmatpush1.msra.mxu0 0.0
    %1570 = vmatprep.subr.mxu0 0.0
    %1571 = vmatpush1.msra.mxu0 0.0
    %1572 = vmatprep.subr.mxu0 0.0
    %1573 = vmatpush1.msra.mxu0 0.0
    %1574 = vmatprep.subr.mxu0 0.0
    %1575 = vmatpush1.msra.mxu0 0.0
    %1576 = vmatprep.subr.mxu0 0.0
    %1577 = vmatpush1.msra.mxu0 0.0
    %1578 = vmatprep.subr.mxu0 0.0
    %1579 = vmatpush1.msra.mxu0 0.0
    %1580 = vmatprep.subr.mxu0 0.0
    %1581 = vmatpush1.msra.mxu0 0.0
    %1582 = vmatprep.subr.mxu0 0.0
    %1583 = vmatpush1.msra.mxu0 0.0
    %1584 = vmatprep.subr.mxu0 0.0
    %1585 = vmatpush1.msra.mxu0 0.0
    %1586 = vmatprep.subr.mxu0 0.0
    %1587 = vmatpush1.msra.mxu0 0.0
    %1588 = vmatprep.subr.mxu0 0.0
    %1589 = vmatpush1.msra.mxu0 0.0
    %1590 = vmatprep.subr.mxu0 0.0
    %1591 = vmatpush1.msra.mxu0 0.0
    %1592 = vmatprep.subr.mxu0 0.0
    %1593 = vmatpush1.msra.mxu0 0.0
    %1594 = vmatprep.mubr.f32.mxu0 0.0
    %1595 = vmatmul.mubr.f32.gmra.mrb[0].mxu0 %v1454
    %v1596 = vpop.f32.mrb[0].mxu0
    %v1597 = vadd.f32 0.0, %v1596
    %v1598 = vpop.f32.mrb[0].mxu0
    %v1599 = vadd.f32 0.0, %v1598
    %1600 = vdwg.mxu0
    %v1601 = vadd.f32 %v1455, %v1526
    %v1602 = vadd.f32 %v1456, %v1528
    %v1603 = vadd.f32 %v1457, %v1597
    %v1604 = vadd.f32 %v1458, %v1599
    %v1605 = vmul.f32 %v1601, 0.5
    %v1606 = vtanh.pop %v1605
    %v1607 = vmul.f32 %v1606, 0.5
    %v1608 = vadd.f32 %v1607, 0.5
    %v1609 = vmul.f32 %v1602, 0.5
    %v1610 = vtanh.pop %v1609
    %v1611 = vmul.f32 %v1610, 0.5
    %v1612 = vadd.f32 %v1611, 0.5
    %v1613 = vtanh.pop %v1603
    %v1614 = vmul.f32 %v1604, 0.5
    %v1615 = vtanh.pop %v1614
    %v1616 = vmul.f32 %v1615, 0.5
    %v1617 = vadd.f32 %v1616, 0.5
    %v1618 = vmul.f32 %v1612, %v1452
    %v1619 = vmul.f32 %v1608, %v1613
    %v1620 = vadd.f32 %v1618, %v1619
    %v1621 = vtanh.pop %v1620
    %v1622 = vmul.f32 %v1617, %v1621
    %v1623 = vld [vmem:[#allocation2 + $0x40] sm:$0xff]
    %v1624 = vld [vmem:[#allocation2 + $0x48] sm:$0xff]
    %v1625 = vld [vmem:[#allocation2 + $0x50] sm:$0xff]
    %v1626 = vld [vmem:[#allocation2 + $0x58] sm:$0xff]
    %1627 = vmatprep.subr.mxu0 %v1224
    %1628 = vmatpush1.msra.mxu0 %v1223
    %1629 = vmatprep.subr.mxu0 %v1228
    %1630 = vmatpush1.msra.mxu0 %v1227
    %1631 = vmatprep.subr.mxu0 %v1232
    %1632 = vmatpush1.msra.mxu0 %v1231
    %1633 = vmatprep.subr.mxu0 %v1236
    %1634 = vmatpush1.msra.mxu0 %v1235
    %1635 = vmatprep.subr.mxu0 %v1240
    %1636 = vmatpush1.msra.mxu0 %v1239
    %1637 = vmatprep.subr.mxu0 %v1244
    %1638 = vmatpush1.msra.mxu0 %v1243
    %1639 = vmatprep.subr.mxu0 %v1248
    %1640 = vmatpush1.msra.mxu0 %v1247
    %1641 = vmatprep.subr.mxu0 %v1252
    %1642 = vmatpush1.msra.mxu0 %v1251
    %1643 = vmatprep.subr.mxu0 %v1256
    %1644 = vmatpush1.msra.mxu0 %v1255
    %1645 = vmatprep.subr.mxu0 %v1260
    %1646 = vmatpush1.msra.mxu0 %v1259
    %1647 = vmatprep.subr.mxu0 %v1264
    %1648 = vmatpush1.msra.mxu0 %v1263
    %1649 = vmatprep.subr.mxu0 %v1268
    %1650 = vmatpush1.msra.mxu0 %v1267
    %1651 = vmatprep.subr.mxu0 %v1272
    %1652 = vmatpush1.msra.mxu0 %v1271
    %1653 = vmatprep.subr.mxu0 %v1276
    %1654 = vmatpush1.msra.mxu0 %v1275
    %1655 = vmatprep.subr.mxu0 %v1280
    %1656 = vmatpush1.msra.mxu0 %v1279
    %1657 = vmatprep.subr.mxu0 %v1284
    %1658 = vmatpush1.msra.mxu0 %v1283
    %1659 = vmatprep.subr.mxu0 0.0
    %1660 = vmatpush1.msra.mxu0 0.0
    %1661 = vmatprep.subr.mxu0 0.0
    %1662 = vmatpush1.msra.mxu0 0.0
    %1663 = vmatprep.subr.mxu0 0.0
    %1664 = vmatpush1.msra.mxu0 0.0
    %1665 = vmatprep.subr.mxu0 0.0
    %1666 = vmatpush1.msra.mxu0 0.0
    %1667 = vmatprep.subr.mxu0 0.0
    %1668 = vmatpush1.msra.mxu0 0.0
    %1669 = vmatprep.subr.mxu0 0.0
    %1670 = vmatpush1.msra.mxu0 0.0
    %1671 = vmatprep.subr.mxu0 0.0
    %1672 = vmatpush1.msra.mxu0 0.0
    %1673 = vmatprep.subr.mxu0 0.0
    %1674 = vmatpush1.msra.mxu0 0.0
    %1675 = vmatprep.subr.mxu0 0.0
    %1676 = vmatpush1.msra.mxu0 0.0
    %1677 = vmatprep.subr.mxu0 0.0
    %1678 = vmatpush1.msra.mxu0 0.0
    %1679 = vmatprep.subr.mxu0 0.0
    %1680 = vmatpush1.msra.mxu0 0.0
    %1681 = vmatprep.subr.mxu0 0.0
    %1682 = vmatpush1.msra.mxu0 0.0
    %1683 = vmatprep.subr.mxu0 0.0
    %1684 = vmatpush1.msra.mxu0 0.0
    %1685 = vmatprep.subr.mxu0 0.0
    %1686 = vmatpush1.msra.mxu0 0.0
    %1687 = vmatprep.subr.mxu0 0.0
    %1688 = vmatpush1.msra.mxu0 0.0
    %1689 = vmatprep.subr.mxu0 0.0
    %1690 = vmatpush1.msra.mxu0 0.0
    %1691 = vmatprep.mubr.f32.mxu0 0.0
    %1692 = vmatmul.mubr.f32.gmra.mrb[0].mxu0 %v1622
    %v1693 = vpop.f32.mrb[0].mxu0
    %v1694 = vadd.f32 0.0, %v1693
    %v1695 = vpop.f32.mrb[0].mxu0
    %v1696 = vadd.f32 0.0, %v1695
    %1697 = vdwg.mxu0
    %1698 = vmatprep.subr.mxu0 %v1226
    %1699 = vmatpush1.msra.mxu0 %v1225
    %1700 = vmatprep.subr.mxu0 %v1230
    %1701 = vmatpush1.msra.mxu0 %v1229
    %1702 = vmatprep.subr.mxu0 %v1234
    %1703 = vmatpush1.msra.mxu0 %v1233
    %1704 = vmatprep.subr.mxu0 %v1238
    %1705 = vmatpush1.msra.mxu0 %v1237
    %1706 = vmatprep.subr.mxu0 %v1242
    %1707 = vmatpush1.msra.mxu0 %v1241
    %1708 = vmatprep.subr.mxu0 %v1246
    %1709 = vmatpush1.msra.mxu0 %v1245
    %1710 = vmatprep.subr.mxu0 %v1250
    %1711 = vmatpush1.msra.mxu0 %v1249
    %1712 = vmatprep.subr.mxu0 %v1254
    %1713 = vmatpush1.msra.mxu0 %v1253
    %1714 = vmatprep.subr.mxu0 %v1258
    %1715 = vmatpush1.msra.mxu0 %v1257
    %1716 = vmatprep.subr.mxu0 %v1262
    %1717 = vmatpush1.msra.mxu0 %v1261
    %1718 = vmatprep.subr.mxu0 %v1266
    %1719 = vmatpush1.msra.mxu0 %v1265
    %1720 = vmatprep.subr.mxu0 %v1270
    %1721 = vmatpush1.msra.mxu0 %v1269
    %1722 = vmatprep.subr.mxu0 %v1274
    %1723 = vmatpush1.msra.mxu0 %v1273
    %1724 = vmatprep.subr.mxu0 %v1278
    %1725 = vmatpush1.msra.mxu0 %v1277
    %1726 = vmatprep.subr.mxu0 %v1282
    %1727 = vmatpush1.msra.mxu0 %v1281
    %1728 = vmatprep.subr.mxu0 %v1286
    %1729 = vmatpush1.msra.mxu0 %v1285
    %1730 = vmatprep.subr.mxu0 0.0
    %1731 = vmatpush1.msra.mxu0 0.0
    %1732 = vmatprep.subr.mxu0 0.0
    %1733 = vmatpush1.msra.mxu0 0.0
    %1734 = vmatprep.subr.mxu0 0.0
    %1735 = vmatpush1.msra.mxu0 0.0
    %1736 = vmatprep.subr.mxu0 0.0
    %1737 = vmatpush1.msra.mxu0 0.0
    %1738 = vmatprep.subr.mxu0 0.0
    %1739 = vmatpush1.msra.mxu0 0.0
    %1740 = vmatprep.subr.mxu0 0.0
    %1741 = vmatpush1.msra.mxu0 0.0
    %1742 = vmatprep.subr.mxu0 0.0
    %1743 = vmatpush1.msra.mxu0 0.0
    %1744 = vmatprep.subr.mxu0 0.0
    %1745 = vmatpush1.msra.mxu0 0.0
    %1746 = vmatprep.subr.mxu0 0.0
    %1747 = vmatpush1.msra.mxu0 0.0
    %1748 = vmatprep.subr.mxu0 0.0
    %1749 = vmatpush1.msra.mxu0 0.0
    %1750 = vmatprep.subr.mxu0 0.0
    %1751 = vmatpush1.msra.mxu0 0.0
    %1752 = vmatprep.subr.mxu0 0.0
    %1753 = vmatpush1.msra.mxu0 0.0
    %1754 = vmatprep.subr.mxu0 0.0
    %1755 = vmatpush1.msra.mxu0 0.0
    %1756 = vmatprep.subr.mxu0 0.0
    %1757 = vmatpush1.msra.mxu0 0.0
    %1758 = vmatprep.subr.mxu0 0.0
    %1759 = vmatpush1.msra.mxu0 0.0
    %1760 = vmatprep.subr.mxu0 0.0
    %1761 = vmatpush1.msra.mxu0 0.0
    %1762 = vmatprep.mubr.f32.mxu0 0.0
    %1763 = vmatmul.mubr.f32.gmra.mrb[0].mxu0 %v1622
    %v1764 = vpop.f32.mrb[0].mxu0
    %v1765 = vadd.f32 0.0, %v1764
    %v1766 = vpop.f32.mrb[0].mxu0
    %v1767 = vadd.f32 0.0, %v1766
    %1768 = vdwg.mxu0
    %v1769 = vadd.f32 %v1623, %v1694
    %v1770 = vadd.f32 %v1624, %v1696
    %v1771 = vadd.f32 %v1625, %v1765
    %v1772 = vadd.f32 %v1626, %v1767
    %v1773 = vmul.f32 %v1769, 0.5
    %v1774 = vtanh.pop %v1773
    %v1775 = vmul.f32 %v1774, 0.5
    %v1776 = vadd.f32 %v1775, 0.5
    %v1777 = vmul.f32 %v1770, 0.5
    %v1778 = vtanh.pop %v1777
    %v1779 = vmul.f32 %v1778, 0.5
    %v1780 = vadd.f32 %v1779, 0.5
    %v1781 = vtanh.pop %v1771
    %v1782 = vmul.f32 %v1772, 0.5
    %v1783 = vtanh.pop %v1782
    %v1784 = vmul.f32 %v1783, 0.5
    %v1785 = vadd.f32 %v1784, 0.5
    %v1786 = vmul.f32 %v1780, %v1620
    %v1787 = vmul.f32 %v1776, %v1781
    %v1788 = vadd.f32 %v1786, %v1787
    %v1789 = vtanh.pop %v1788
    %v1790 = vmul.f32 %v1785, %v1789
    %v1791 = vld [vmem:[#allocation2 + $0x60] sm:$0xff]
    %v1792 = vld [vmem:[#allocation2 + $0x68] sm:$0xff]
    %v1793 = vld [vmem:[#allocation2 + $0x70] sm:$0xff]
    %v1794 = vld [vmem:[#allocation2 + $0x78] sm:$0xff]
    %1795 = vmatprep.subr.mxu0 %v1224
    %1796 = vmatpush1.msra.mxu0 %v1223
    %1797 = vmatprep.subr.mxu0 %v1228
    %1798 = vmatpush1.msra.mxu0 %v1227
    %1799 = vmatprep.subr.mxu0 %v1232
    %1800 = vmatpush1.msra.mxu0 %v1231
    %1801 = vmatprep.subr.mxu0 %v1236
    %1802 = vmatpush1.msra.mxu0 %v1235
    %1803 = vmatprep.subr.mxu0 %v1240
    %1804 = vmatpush1.msra.mxu0 %v1239
    %1805 = vmatprep.subr.mxu0 %v1244
    %1806 = vmatpush1.msra.mxu0 %v1243
    %1807 = vmatprep.subr.mxu0 %v1248
    %1808 = vmatpush1.msra.mxu0 %v1247
    %1809 = vmatprep.subr.mxu0 %v1252
    %1810 = vmatpush1.msra.mxu0 %v1251
    %1811 = vmatprep.subr.mxu0 %v1256
    %1812 = vmatpush1.msra.mxu0 %v1255
    %1813 = vmatprep.subr.mxu0 %v1260
    %1814 = vmatpush1.msra.mxu0 %v1259
    %1815 = vmatprep.subr.mxu0 %v1264
    %1816 = vmatpush1.msra.mxu0 %v1263
    %1817 = vmatprep.subr.mxu0 %v1268
    %1818 = vmatpush1.msra.mxu0 %v1267
    %1819 = vmatprep.subr.mxu0 %v1272
    %1820 = vmatpush1.msra.mxu0 %v1271
    %1821 = vmatprep.subr.mxu0 %v1276
    %1822 = vmatpush1.msra.mxu0 %v1275
    %1823 = vmatprep.subr.mxu0 %v1280
    %1824 = vmatpush1.msra.mxu0 %v1279
    %1825 = vmatprep.subr.mxu0 %v1284
    %1826 = vmatpush1.msra.mxu0 %v1283
    %1827 = vmatprep.subr.mxu0 0.0
    %1828 = vmatpush1.msra.mxu0 0.0
    %1829 = vmatprep.subr.mxu0 0.0
    %1830 = vmatpush1.msra.mxu0 0.0
    %1831 = vmatprep.subr.mxu0 0.0
    %1832 = vmatpush1.msra.mxu0 0.0
    %1833 = vmatprep.subr.mxu0 0.0
    %1834 = vmatpush1.msra.mxu0 0.0
    %1835 = vmatprep.subr.mxu0 0.0
    %1836 = vmatpush1.msra.mxu0 0.0
    %1837 = vmatprep.subr.mxu0 0.0
    %1838 = vmatpush1.msra.mxu0 0.0
    %1839 = vmatprep.subr.mxu0 0.0
    %1840 = vmatpush1.msra.mxu0 0.0
    %1841 = vmatprep.subr.mxu0 0.0
    %1842 = vmatpush1.msra.mxu0 0.0
    %1843 = vmatprep.subr.mxu0 0.0
    %1844 = vmatpush1.msra.mxu0 0.0
    %1845 = vmatprep.subr.mxu0 0.0
    %1846 = vmatpush1.msra.mxu0 0.0
    %1847 = vmatprep.subr.mxu0 0.0
    %1848 = vmatpush1.msra.mxu0 0.0
    %1849 = vmatprep.subr.mxu0 0.0
    %1850 = vmatpush1.msra.mxu0 0.0
    %1851 = vmatprep.subr.mxu0 0.0
    %1852 = vmatpush1.msra.mxu0 0.0
    %1853 = vmatprep.subr.mxu0 0.0
    %1854 = vmatpush1.msra.mxu0 0.0
    %1855 = vmatprep.subr.mxu0 0.0
    %1856 = vmatpush1.msra.mxu0 0.0
    %1857 = vmatprep.subr.mxu0 0.0
    %1858 = vmatpush1.msra.mxu0 0.0
    %1859 = vmatprep.mubr.f32.mxu0 0.0
    %1860 = vmatmul.mubr.f32.gmra.mrb[0].mxu0 %v1790
    %v1861 = vpop.f32.mrb[0].mxu0
    %v1862 = vadd.f32 0.0, %v1861
    %v1863 = vpop.f32.mrb[0].mxu0
    %v1864 = vadd.f32 0.0, %v1863
    %1865 = vdwg.mxu0
    %1866 = vmatprep.subr.mxu0 %v1226
    %1867 = vmatpush1.msra.mxu0 %v1225
    %1868 = vmatprep.subr.mxu0 %v1230
    %1869 = vmatpush1.msra.mxu0 %v1229
    %1870 = vmatprep.subr.mxu0 %v1234
    %1871 = vmatpush1.msra.mxu0 %v1233
    %1872 = vmatprep.subr.mxu0 %v1238
    %1873 = vmatpush1.msra.mxu0 %v1237
    %1874 = vmatprep.subr.mxu0 %v1242
    %1875 = vmatpush1.msra.mxu0 %v1241
    %1876 = vmatprep.subr.mxu0 %v1246
    %1877 = vmatpush1.msra.mxu0 %v1245
    %1878 = vmatprep.subr.mxu0 %v1250
    %1879 = vmatpush1.msra.mxu0 %v1249
    %1880 = vmatprep.subr.mxu0 %v1254
    %1881 = vmatpush1.msra.mxu0 %v1253
    %1882 = vmatprep.subr.mxu0 %v1258
    %1883 = vmatpush1.msra.mxu0 %v1257
    %1884 = vmatprep.subr.mxu0 %v1262
    %1885 = vmatpush1.msra.mxu0 %v1261
    %1886 = vmatprep.subr.mxu0 %v1266
    %1887 = vmatpush1.msra.mxu0 %v1265
    %1888 = vmatprep.subr.mxu0 %v1270
    %1889 = vmatpush1.msra.mxu0 %v1269
    %1890 = vmatprep.subr.mxu0 %v1274
    %1891 = vmatpush1.msra.mxu0 %v1273
    %1892 = vmatprep.subr.mxu0 %v1278
    %1893 = vmatpush1.msra.mxu0 %v1277
    %1894 = vmatprep.subr.mxu0 %v1282
    %1895 = vmatpush1.msra.mxu0 %v1281
    %1896 = vmatprep.subr.mxu0 %v1286
    %1897 = vmatpush1.msra.mxu0 %v1285
    %1898 = vmatprep.subr.mxu0 0.0
    %1899 = vmatpush1.msra.mxu0 0.0
    %1900 = vmatprep.subr.mxu0 0.0
    %1901 = vmatpush1.msra.mxu0 0.0
    %1902 = vmatprep.subr.mxu0 0.0
    %1903 = vmatpush1.msra.mxu0 0.0
    %1904 = vmatprep.subr.mxu0 0.0
    %1905 = vmatpush1.msra.mxu0 0.0
    %1906 = vmatprep.subr.mxu0 0.0
    %1907 = vmatpush1.msra.mxu0 0.0
    %1908 = vmatprep.subr.mxu0 0.0
    %1909 = vmatpush1.msra.mxu0 0.0
    %1910 = vmatprep.subr.mxu0 0.0
    %1911 = vmatpush1.msra.mxu0 0.0
    %1912 = vmatprep.subr.mxu0 0.0
    %1913 = vmatpush1.msra.mxu0 0.0
    %1914 = vmatprep.subr.mxu0 0.0
    %1915 = vmatpush1.msra.mxu0 0.0
    %1916 = vmatprep.subr.mxu0 0.0
    %1917 = vmatpush1.msra.mxu0 0.0
    %1918 = vmatprep.subr.mxu0 0.0
    %1919 = vmatpush1.msra.mxu0 0.0
    %1920 = vmatprep.subr.mxu0 0.0
    %1921 = vmatpush1.msra.mxu0 0.0
    %1922 = vmatprep.subr.mxu0 0.0
    %1923 = vmatpush1.msra.mxu0 0.0
    %1924 = vmatprep.subr.mxu0 0.0
    %1925 = vmatpush1.msra.mxu0 0.0
    %1926 = vmatprep.subr.mxu0 0.0
    %1927 = vmatpush1.msra.mxu0 0.0
    %1928 = vmatprep.subr.mxu0 0.0
    %1929 = vmatpush1.msra.mxu0 0.0
    %1930 = vmatprep.mubr.f32.mxu0 0.0
    %1931 = vmatmul.mubr.f32.gmra.mrb[0].mxu0 %v1790
    %v1932 = vpop.f32.mrb[0].mxu0
    %v1933 = vadd.f32 0.0, %v1932
    %v1934 = vpop.f32.mrb[0].mxu0
    %v1935 = vadd.f32 0.0, %v1934
    %1936 = vdwg.mxu0
    %v1937 = vadd.f32 %v1791, %v1862
    %v1938 = vadd.f32 %v1792, %v1864
    %v1939 = vadd.f32 %v1793, %v1933
    %v1940 = vadd.f32 %v1794, %v1935
    %v1941 = vmul.f32 %v1937, 0.5
    %v1942 = vtanh.pop %v1941
    %v1943 = vmul.f32 %v1942, 0.5
    %v1944 = vadd.f32 %v1943, 0.5
    %v1945 = vmul.f32 %v1938, 0.5
    %v1946 = vtanh.pop %v1945
    %v1947 = vmul.f32 %v1946, 0.5
    %v1948 = vadd.f32 %v1947, 0.5
    %v1949 = vtanh.pop %v1939
    %v1950 = vmul.f32 %v1940, 0.5
    %v1951 = vtanh.pop %v1950
    %v1952 = vmul.f32 %v1951, 0.5
    %v1953 = vadd.f32 %v1952, 0.5
    %v1954 = vmul.f32 %v1948, %v1788
    %v1955 = vmul.f32 %v1944, %v1949
    %v1956 = vadd.f32 %v1954, %v1955
    %v1957 = vtanh.pop %v1956
    %v1958 = vmul.f32 %v1953, %v1957
    %v1959 = vld [vmem:[#allocation2 + $0x80] sm:$0xff]
    %v1960 = vld [vmem:[#allocation2 + $0x88] sm:$0xff]
    %v1961 = vld [vmem:[#allocation2 + $0x90] sm:$0xff]
    %v1962 = vld [vmem:[#allocation2 + $0x98] sm:$0xff]
    %1963 = vmatprep.subr.mxu0 %v1224
    %1964 = vmatpush1.msra.mxu0 %v1223
    %1965 = vmatprep.subr.mxu0 %v1228
    %1966 = vmatpush1.msra.mxu0 %v1227
    %1967 = vmatprep.subr.mxu0 %v1232
    %1968 = vmatpush1.msra.mxu0 %v1231
    %1969 = vmatprep.subr.mxu0 %v1236
    %1970 = vmatpush1.msra.mxu0 %v1235
    %1971 = vmatprep.subr.mxu0 %v1240
    %1972 = vmatpush1.msra.mxu0 %v1239
    %1973 = vmatprep.subr.mxu0 %v1244
    %1974 = vmatpush1.msra.mxu0 %v1243
    %1975 = vmatprep.subr.mxu0 %v1248
    %1976 = vmatpush1.msra.mxu0 %v1247
    %1977 = vmatprep.subr.mxu0 %v1252
    %1978 = vmatpush1.msra.mxu0 %v1251
    %1979 = vmatprep.subr.mxu0 %v1256
    %1980 = vmatpush1.msra.mxu0 %v1255
    %1981 = vmatprep.subr.mxu0 %v1260
    %1982 = vmatpush1.msra.mxu0 %v1259
    %1983 = vmatprep.subr.mxu0 %v1264
    %1984 = vmatpush1.msra.mxu0 %v1263
    %1985 = vmatprep.subr.mxu0 %v1268
    %1986 = vmatpush1.msra.mxu0 %v1267
    %1987 = vmatprep.subr.mxu0 %v1272
    %1988 = vmatpush1.msra.mxu0 %v1271
    %1989 = vmatprep.subr.mxu0 %v1276
    %1990 = vmatpush1.msra.mxu0 %v1275
    %1991 = vmatprep.subr.mxu0 %v1280
    %1992 = vmatpush1.msra.mxu0 %v1279
    %1993 = vmatprep.subr.mxu0 %v1284
    %1994 = vmatpush1.msra.mxu0 %v1283
    %1995 = vmatprep.subr.mxu0 0.0
    %1996 = vmatpush1.msra.mxu0 0.0
    %1997 = vmatprep.subr.mxu0 0.0
    %1998 = vmatpush1.msra.mxu0 0.0
    %1999 = vmatprep.subr.mxu0 0.0
    %2000 = vmatpush1.msra.mxu0 0.0
    %2001 = vmatprep.subr.mxu0 0.0
    %2002 = vmatpush1.msra.mxu0 0.0
    %2003 = vmatprep.subr.mxu0 0.0
    %2004 = vmatpush1.msra.mxu0 0.0
    %2005 = vmatprep.subr.mxu0 0.0
    %2006 = vmatpush1.msra.mxu0 0.0
    %2007 = vmatprep.subr.mxu0 0.0
    %2008 = vmatpush1.msra.mxu0 0.0
    %2009 = vmatprep.subr.mxu0 0.0
    %2010 = vmatpush1.msra.mxu0 0.0
    %2011 = vmatprep.subr.mxu0 0.0
    %2012 = vmatpush1.msra.mxu0 0.0
    %2013 = vmatprep.subr.mxu0 0.0
    %2014 = vmatpush1.msra.mxu0 0.0
    %2015 = vmatprep.subr.mxu0 0.0
    %2016 = vmatpush1.msra.mxu0 0.0
    %2017 = vmatprep.subr.mxu0 0.0
    %2018 = vmatpush1.msra.mxu0 0.0
    %2019 = vmatprep.subr.mxu0 0.0
    %2020 = vmatpush1.msra.mxu0 0.0
    %2021 = vmatprep.subr.mxu0 0.0
    %2022 = vmatpush1.msra.mxu0 0.0
    %2023 = vmatprep.subr.mxu0 0.0
    %2024 = vmatpush1.msra.mxu0 0.0
    %2025 = vmatprep.subr.mxu0 0.0
    %2026 = vmatpush1.msra.mxu0 0.0
    %2027 = vmatprep.mubr.f32.mxu0 0.0
    %2028 = vmatmul.mubr.f32.gmra.mrb[0].mxu0 %v1958
    %v2029 = vpop.f32.mrb[0].mxu0
    %v2030 = vadd.f32 0.0, %v2029
    %v2031 = vpop.f32.mrb[0].mxu0
    %v2032 = vadd.f32 0.0, %v2031
    %2033 = vdwg.mxu0
    %2034 = vmatprep.subr.mxu0 %v1226
    %2035 = vmatpush1.msra.mxu0 %v1225
    %2036 = vmatprep.subr.mxu0 %v1230
    %2037 = vmatpush1.msra.mxu0 %v1229
    %2038 = vmatprep.subr.mxu0 %v1234
    %2039 = vmatpush1.msra.mxu0 %v1233
    %2040 = vmatprep.subr.mxu0 %v1238
    %2041 = vmatpush1.msra.mxu0 %v1237
    %2042 = vmatprep.subr.mxu0 %v1242
    %2043 = vmatpush1.msra.mxu0 %v1241
    %2044 = vmatprep.subr.mxu0 %v1246
    %2045 = vmatpush1.msra.mxu0 %v1245
    %2046 = vmatprep.subr.mxu0 %v1250
    %2047 = vmatpush1.msra.mxu0 %v1249
    %2048 = vmatprep.subr.mxu0 %v1254
    %2049 = vmatpush1.msra.mxu0 %v1253
    %2050 = vmatprep.subr.mxu0 %v1258
    %2051 = vmatpush1.msra.mxu0 %v1257
    %2052 = vmatprep.subr.mxu0 %v1262
    %2053 = vmatpush1.msra.mxu0 %v1261
    %2054 = vmatprep.subr.mxu0 %v1266
    %2055 = vmatpush1.msra.mxu0 %v1265
    %2056 = vmatprep.subr.mxu0 %v1270
    %2057 = vmatpush1.msra.mxu0 %v1269
    %2058 = vmatprep.subr.mxu0 %v1274
    %2059 = vmatpush1.msra.mxu0 %v1273
    %2060 = vmatprep.subr.mxu0 %v1278
    %2061 = vmatpush1.msra.mxu0 %v1277
    %2062 = vmatprep.subr.mxu0 %v1282
    %2063 = vmatpush1.msra.mxu0 %v1281
    %2064 = vmatprep.subr.mxu0 %v1286
    %2065 = vmatpush1.msra.mxu0 %v1285
    %2066 = vmatprep.subr.mxu0 0.0
    %2067 = vmatpush1.msra.mxu0 0.0
    %2068 = vmatprep.subr.mxu0 0.0
    %2069 = vmatpush1.msra.mxu0 0.0
    %2070 = vmatprep.subr.mxu0 0.0
    %2071 = vmatpush1.msra.mxu0 0.0
    %2072 = vmatprep.subr.mxu0 0.0
    %2073 = vmatpush1.msra.mxu0 0.0
    %2074 = vmatprep.subr.mxu0 0.0
    %2075 = vmatpush1.msra.mxu0 0.0
    %2076 = vmatprep.subr.mxu0 0.0
    %2077 = vmatpush1.msra.mxu0 0.0
    %2078 = vmatprep.subr.mxu0 0.0
    %2079 = vmatpush1.msra.mxu0 0.0
    %2080 = vmatprep.subr.mxu0 0.0
    %2081 = vmatpush1.msra.mxu0 0.0
    %2082 = vmatprep.subr.mxu0 0.0
    %2083 = vmatpush1.msra.mxu0 0.0
    %2084 = vmatprep.subr.mxu0 0.0
    %2085 = vmatpush1.msra.mxu0 0.0
    %2086 = vmatprep.subr.mxu0 0.0
    %2087 = vmatpush1.msra.mxu0 0.0
    %2088 = vmatprep.subr.mxu0 0.0
    %2089 = vmatpush1.msra.mxu0 0.0
    %2090 = vmatprep.subr.mxu0 0.0
    %2091 = vmatpush1.msra.mxu0 0.0
    %2092 = vmatprep.subr.mxu0 0.0
    %2093 = vmatpush1.msra.mxu0 0.0
    %2094 = vmatprep.subr.mxu0 0.0
    %2095 = vmatpush1.msra.mxu0 0.0
    %2096 = vmatprep.subr.mxu0 0.0
    %2097 = vmatpush1.msra.mxu0 0.0
    %2098 = vmatprep.mubr.f32.mxu0 0.0
    %2099 = vmatmul.mubr.f32.gmra.mrb[0].mxu0 %v1958
    %v2100 = vpop.f32.mrb[0].mxu0
    %v2101 = vadd.f32 0.0, %v2100
    %v2102 = vpop.f32.mrb[0].mxu0
    %v2103 = vadd.f32 0.0, %v2102
    %2104 = vdwg.mxu0
    %v2105 = vadd.f32 %v1959, %v2030
    %v2106 = vadd.f32 %v1960, %v2032
    %v2107 = vadd.f32 %v1961, %v2101
    %v2108 = vadd.f32 %v1962, %v2103
    %v2109 = vmul.f32 %v2105, 0.5
    %v2110 = vtanh.pop %v2109
    %v2111 = vmul.f32 %v2110, 0.5
    %v2112 = vadd.f32 %v2111, 0.5
    %v2113 = vmul.f32 %v2106, 0.5
    %v2114 = vtanh.pop %v2113
    %v2115 = vmul.f32 %v2114, 0.5
    %v2116 = vadd.f32 %v2115, 0.5
    %v2117 = vtanh.pop %v2107
    %v2118 = vmul.f32 %v2108, 0.5
    %v2119 = vtanh.pop %v2118
    %v2120 = vmul.f32 %v2119, 0.5
    %v2121 = vadd.f32 %v2120, 0.5
    %v2122 = vmul.f32 %v2116, %v1956
    %v2123 = vmul.f32 %v2112, %v2117
    %v2124 = vadd.f32 %v2122, %v2123
    %v2125 = vtanh.pop %v2124
    %v2126 = vmul.f32 %v2121, %v2125
    %v2127 = vld [vmem:[#allocation2 + $0xa0] sm:$0xff]
    %v2128 = vld [vmem:[#allocation2 + $0xa8] sm:$0xff]
    %v2129 = vld [vmem:[#allocation2 + $0xb0] sm:$0xff]
    %v2130 = vld [vmem:[#allocation2 + $0xb8] sm:$0xff]
    %2131 = vmatprep.subr.mxu0 %v1224
    %2132 = vmatpush1.msra.mxu0 %v1223
    %2133 = vmatprep.subr.mxu0 %v1228
    %2134 = vmatpush1.msra.mxu0 %v1227
    %2135 = vmatprep.subr.mxu0 %v1232
    %2136 = vmatpush1.msra.mxu0 %v1231
    %2137 = vmatprep.subr.mxu0 %v1236
    %2138 = vmatpush1.msra.mxu0 %v1235
    %2139 = vmatprep.subr.mxu0 %v1240
    %2140 = vmatpush1.msra.mxu0 %v1239
    %2141 = vmatprep.subr.mxu0 %v1244
    %2142 = vmatpush1.msra.mxu0 %v1243
    %2143 = vmatprep.subr.mxu0 %v1248
    %2144 = vmatpush1.msra.mxu0 %v1247
    %2145 = vmatprep.subr.mxu0 %v1252
    %2146 = vmatpush1.msra.mxu0 %v1251
    %2147 = vmatprep.subr.mxu0 %v1256
    %2148 = vmatpush1.msra.mxu0 %v1255
    %2149 = vmatprep.subr.mxu0 %v1260
    %2150 = vmatpush1.msra.mxu0 %v1259
    %2151 = vmatprep.subr.mxu0 %v1264
    %2152 = vmatpush1.msra.mxu0 %v1263
    %2153 = vmatprep.subr.mxu0 %v1268
    %2154 = vmatpush1.msra.mxu0 %v1267
    %2155 = vmatprep.subr.mxu0 %v1272
    %2156 = vmatpush1.msra.mxu0 %v1271
    %2157 = vmatprep.subr.mxu0 %v1276
    %2158 = vmatpush1.msra.mxu0 %v1275
    %2159 = vmatprep.subr.mxu0 %v1280
    %2160 = vmatpush1.msra.mxu0 %v1279
    %2161 = vmatprep.subr.mxu0 %v1284
    %2162 = vmatpush1.msra.mxu0 %v1283
    %2163 = vmatprep.subr.mxu0 0.0
    %2164 = vmatpush1.msra.mxu0 0.0
    %2165 = vmatprep.subr.mxu0 0.0
    %2166 = vmatpush1.msra.mxu0 0.0
    %2167 = vmatprep.subr.mxu0 0.0
    %2168 = vmatpush1.msra.mxu0 0.0
    %2169 = vmatprep.subr.mxu0 0.0
    %2170 = vmatpush1.msra.mxu0 0.0
    %2171 = vmatprep.subr.mxu0 0.0
    %2172 = vmatpush1.msra.mxu0 0.0
    %2173 = vmatprep.subr.mxu0 0.0
    %2174 = vmatpush1.msra.mxu0 0.0
    %2175 = vmatprep.subr.mxu0 0.0
    %2176 = vmatpush1.msra.mxu0 0.0
    %2177 = vmatprep.subr.mxu0 0.0
    %2178 = vmatpush1.msra.mxu0 0.0
    %2179 = vmatprep.subr.mxu0 0.0
    %2180 = vmatpush1.msra.mxu0 0.0
    %2181 = vmatprep.subr.mxu0 0.0
    %2182 = vmatpush1.msra.mxu0 0.0
    %2183 = vmatprep.subr.mxu0 0.0
    %2184 = vmatpush1.msra.mxu0 0.0
    %2185 = vmatprep.subr.mxu0 0.0
    %2186 = vmatpush1.msra.mxu0 0.0
    %2187 = vmatprep.subr.mxu0 0.0
    %2188 = vmatpush1.msra.mxu0 0.0
    %2189 = vmatprep.subr.mxu0 0.0
    %2190 = vmatpush1.msra.mxu0 0.0
    %2191 = vmatprep.subr.mxu0 0.0
    %2192 = vmatpush1.msra.mxu0 0.0
    %2193 = vmatprep.subr.mxu0 0.0
    %2194 = vmatpush1.msra.mxu0 0.0
    %2195 = vmatprep.mubr.f32.mxu0 0.0
    %2196 = vmatmul.mubr.f32.gmra.mrb[0].mxu0 %v2126
    %v2197 = vpop.f32.mrb[0].mxu0
    %v2198 = vadd.f32 0.0, %v2197
    %v2199 = vpop.f32.mrb[0].mxu0
    %v2200 = vadd.f32 0.0, %v2199
    %2201 = vdwg.mxu0
    %2202 = vmatprep.subr.mxu0 %v1226
    %2203 = vmatpush1.msra.mxu0 %v1225
    %2204 = vmatprep.subr.mxu0 %v1230
    %2205 = vmatpush1.msra.mxu0 %v1229
    %2206 = vmatprep.subr.mxu0 %v1234
    %2207 = vmatpush1.msra.mxu0 %v1233
    %2208 = vmatprep.subr.mxu0 %v1238
    %2209 = vmatpush1.msra.mxu0 %v1237
    %2210 = vmatprep.subr.mxu0 %v1242
    %2211 = vmatpush1.msra.mxu0 %v1241
    %2212 = vmatprep.subr.mxu0 %v1246
    %2213 = vmatpush1.msra.mxu0 %v1245
    %2214 = vmatprep.subr.mxu0 %v1250
    %2215 = vmatpush1.msra.mxu0 %v1249
    %2216 = vmatprep.subr.mxu0 %v1254
    %2217 = vmatpush1.msra.mxu0 %v1253
    %2218 = vmatprep.subr.mxu0 %v1258
    %2219 = vmatpush1.msra.mxu0 %v1257
    %2220 = vmatprep.subr.mxu0 %v1262
    %2221 = vmatpush1.msra.mxu0 %v1261
    %2222 = vmatprep.subr.mxu0 %v1266
    %2223 = vmatpush1.msra.mxu0 %v1265
    %2224 = vmatprep.subr.mxu0 %v1270
    %2225 = vmatpush1.msra.mxu0 %v1269
    %2226 = vmatprep.subr.mxu0 %v1274
    %2227 = vmatpush1.msra.mxu0 %v1273
    %2228 = vmatprep.subr.mxu0 %v1278
    %2229 = vmatpush1.msra.mxu0 %v1277
    %2230 = vmatprep.subr.mxu0 %v1282
    %2231 = vmatpush1.msra.mxu0 %v1281
    %2232 = vmatprep.subr.mxu0 %v1286
    %2233 = vmatpush1.msra.mxu0 %v1285
    %2234 = vmatprep.subr.mxu0 0.0
    %2235 = vmatpush1.msra.mxu0 0.0
    %2236 = vmatprep.subr.mxu0 0.0
    %2237 = vmatpush1.msra.mxu0 0.0
    %2238 = vmatprep.subr.mxu0 0.0
    %2239 = vmatpush1.msra.mxu0 0.0
    %2240 = vmatprep.subr.mxu0 0.0
    %2241 = vmatpush1.msra.mxu0 0.0
    %2242 = vmatprep.subr.mxu0 0.0
    %2243 = vmatpush1.msra.mxu0 0.0
    %2244 = vmatprep.subr.mxu0 0.0
    %2245 = vmatpush1.msra.mxu0 0.0
    %2246 = vmatprep.subr.mxu0 0.0
    %2247 = vmatpush1.msra.mxu0 0.0
    %2248 = vmatprep.subr.mxu0 0.0
    %2249 = vmatpush1.msra.mxu0 0.0
    %2250 = vmatprep.subr.mxu0 0.0
    %2251 = vmatpush1.msra.mxu0 0.0
    %2252 = vmatprep.subr.mxu0 0.0
    %2253 = vmatpush1.msra.mxu0 0.0
    %2254 = vmatprep.subr.mxu0 0.0
    %2255 = vmatpush1.msra.mxu0 0.0
    %2256 = vmatprep.subr.mxu0 0.0
    %2257 = vmatpush1.msra.mxu0 0.0
    %2258 = vmatprep.subr.mxu0 0.0
    %2259 = vmatpush1.msra.mxu0 0.0
    %2260 = vmatprep.subr.mxu0 0.0
    %2261 = vmatpush1.msra.mxu0 0.0
    %2262 = vmatprep.subr.mxu0 0.0
    %2263 = vmatpush1.msra.mxu0 0.0
    %2264 = vmatprep.subr.mxu0 0.0
    %2265 = vmatpush1.msra.mxu0 0.0
    %2266 = vmatprep.mubr.f32.mxu0 0.0
    %2267 = vmatmul.mubr.f32.gmra.mrb[0].mxu0 %v2126
    %v2268 = vpop.f32.mrb[0].mxu0
    %v2269 = vadd.f32 0.0, %v2268
    %v2270 = vpop.f32.mrb[0].mxu0
    %v2271 = vadd.f32 0.0, %v2270
    %2272 = vdwg.mxu0
    %v2273 = vadd.f32 %v2127, %v2198
    %v2274 = vadd.f32 %v2128, %v2200
    %v2275 = vadd.f32 %v2129, %v2269
    %v2276 = vadd.f32 %v2130, %v2271
    %v2277 = vmul.f32 %v2273, 0.5
    %v2278 = vtanh.pop %v2277
    %v2279 = vmul.f32 %v2278, 0.5
    %v2280 = vadd.f32 %v2279, 0.5
    %v2281 = vmul.f32 %v2274, 0.5
    %v2282 = vtanh.pop %v2281
    %v2283 = vmul.f32 %v2282, 0.5
    %v2284 = vadd.f32 %v2283, 0.5
    %v2285 = vtanh.pop %v2275
    %v2286 = vmul.f32 %v2276, 0.5
    %v2287 = vtanh.pop %v2286
    %v2288 = vmul.f32 %v2287, 0.5
    %v2289 = vadd.f32 %v2288, 0.5
    %v2290 = vmul.f32 %v2284, %v2124
    %v2291 = vmul.f32 %v2280, %v2285
    %v2292 = vadd.f32 %v2290, %v2291
    %v2293 = vtanh.pop %v2292
    %v2294 = vmul.f32 %v2289, %v2293
    %v2295 = vld [vmem:[#allocation2 + $0xc0] sm:$0xff]
    %v2296 = vld [vmem:[#allocation2 + $0xc8] sm:$0xff]
    %v2297 = vld [vmem:[#allocation2 + $0xd0] sm:$0xff]
    %v2298 = vld [vmem:[#allocation2 + $0xd8] sm:$0xff]
    %2299 = vmatprep.subr.mxu0 %v1224
    %2300 = vmatpush1.msra.mxu0 %v1223
    %2301 = vmatprep.subr.mxu0 %v1228
    %2302 = vmatpush1.msra.mxu0 %v1227
    %2303 = vmatprep.subr.mxu0 %v1232
    %2304 = vmatpush1.msra.mxu0 %v1231
    %2305 = vmatprep.subr.mxu0 %v1236
    %2306 = vmatpush1.msra.mxu0 %v1235
    %2307 = vmatprep.subr.mxu0 %v1240
    %2308 = vmatpush1.msra.mxu0 %v1239
    %2309 = vmatprep.subr.mxu0 %v1244
    %2310 = vmatpush1.msra.mxu0 %v1243
    %2311 = vmatprep.subr.mxu0 %v1248
    %2312 = vmatpush1.msra.mxu0 %v1247
    %2313 = vmatprep.subr.mxu0 %v1252
    %2314 = vmatpush1.msra.mxu0 %v1251
    %2315 = vmatprep.subr.mxu0 %v1256
    %2316 = vmatpush1.msra.mxu0 %v1255
    %2317 = vmatprep.subr.mxu0 %v1260
    %2318 = vmatpush1.msra.mxu0 %v1259
    %2319 = vmatprep.subr.mxu0 %v1264
    %2320 = vmatpush1.msra.mxu0 %v1263
    %2321 = vmatprep.subr.mxu0 %v1268
    %2322 = vmatpush1.msra.mxu0 %v1267
    %2323 = vmatprep.subr.mxu0 %v1272
    %2324 = vmatpush1.msra.mxu0 %v1271
    %2325 = vmatprep.subr.mxu0 %v1276
    %2326 = vmatpush1.msra.mxu0 %v1275
    %2327 = vmatprep.subr.mxu0 %v1280
    %2328 = vmatpush1.msra.mxu0 %v1279
    %2329 = vmatprep.subr.mxu0 %v1284
    %2330 = vmatpush1.msra.mxu0 %v1283
    %2331 = vmatprep.subr.mxu0 0.0
    %2332 = vmatpush1.msra.mxu0 0.0
    %2333 = vmatprep.subr.mxu0 0.0
    %2334 = vmatpush1.msra.mxu0 0.0
    %2335 = vmatprep.subr.mxu0 0.0
    %2336 = vmatpush1.msra.mxu0 0.0
    %2337 = vmatprep.subr.mxu0 0.0
    %2338 = vmatpush1.msra.mxu0 0.0
    %2339 = vmatprep.subr.mxu0 0.0
    %2340 = vmatpush1.msra.mxu0 0.0
    %2341 = vmatprep.subr.mxu0 0.0
    %2342 = vmatpush1.msra.mxu0 0.0
    %2343 = vmatprep.subr.mxu0 0.0
    %2344 = vmatpush1.msra.mxu0 0.0
    %2345 = vmatprep.subr.mxu0 0.0
    %2346 = vmatpush1.msra.mxu0 0.0
    %2347 = vmatprep.subr.mxu0 0.0
    %2348 = vmatpush1.msra.mxu0 0.0
    %2349 = vmatprep.subr.mxu0 0.0
    %2350 = vmatpush1.msra.mxu0 0.0
    %2351 = vmatprep.subr.mxu0 0.0
    %2352 = vmatpush1.msra.mxu0 0.0
    %2353 = vmatprep.subr.mxu0 0.0
    %2354 = vmatpush1.msra.mxu0 0.0
    %2355 = vmatprep.subr.mxu0 0.0
    %2356 = vmatpush1.msra.mxu0 0.0
    %2357 = vmatprep.subr.mxu0 0.0
    %2358 = vmatpush1.msra.mxu0 0.0
    %2359 = vmatprep.subr.mxu0 0.0
    %2360 = vmatpush1.msra.mxu0 0.0
    %2361 = vmatprep.subr.mxu0 0.0
    %2362 = vmatpush1.msra.mxu0 0.0
    %2363 = vmatprep.mubr.f32.mxu0 0.0
    %2364 = vmatmul.mubr.f32.gmra.mrb[0].mxu0 %v2294
    %v2365 = vpop.f32.mrb[0].mxu0
    %v2366 = vadd.f32 0.0, %v2365
    %v2367 = vpop.f32.mrb[0].mxu0
    %v2368 = vadd.f32 0.0, %v2367
    %2369 = vdwg.mxu0
    %2370 = vmatprep.subr.mxu0 %v1226
    %2371 = vmatpush1.msra.mxu0 %v1225
    %2372 = vmatprep.subr.mxu0 %v1230
    %2373 = vmatpush1.msra.mxu0 %v1229
    %2374 = vmatprep.subr.mxu0 %v1234
    %2375 = vmatpush1.msra.mxu0 %v1233
    %2376 = vmatprep.subr.mxu0 %v1238
    %2377 = vmatpush1.msra.mxu0 %v1237
    %2378 = vmatprep.subr.mxu0 %v1242
    %2379 = vmatpush1.msra.mxu0 %v1241
    %2380 = vmatprep.subr.mxu0 %v1246
    %2381 = vmatpush1.msra.mxu0 %v1245
    %2382 = vmatprep.subr.mxu0 %v1250
    %2383 = vmatpush1.msra.mxu0 %v1249
    %2384 = vmatprep.subr.mxu0 %v1254
    %2385 = vmatpush1.msra.mxu0 %v1253
    %2386 = vmatprep.subr.mxu0 %v1258
    %2387 = vmatpush1.msra.mxu0 %v1257
    %2388 = vmatprep.subr.mxu0 %v1262
    %2389 = vmatpush1.msra.mxu0 %v1261
    %2390 = vmatprep.subr.mxu0 %v1266
    %2391 = vmatpush1.msra.mxu0 %v1265
    %2392 = vmatprep.subr.mxu0 %v1270
    %2393 = vmatpush1.msra.mxu0 %v1269
    %2394 = vmatprep.subr.mxu0 %v1274
    %2395 = vmatpush1.msra.mxu0 %v1273
    %2396 = vmatprep.subr.mxu0 %v1278
    %2397 = vmatpush1.msra.mxu0 %v1277
    %2398 = vmatprep.subr.mxu0 %v1282
    %2399 = vmatpush1.msra.mxu0 %v1281
    %2400 = vmatprep.subr.mxu0 %v1286
    %2401 = vmatpush1.msra.mxu0 %v1285
    %2402 = vmatprep.subr.mxu0 0.0
    %2403 = vmatpush1.msra.mxu0 0.0
    %2404 = vmatprep.subr.mxu0 0.0
    %2405 = vmatpush1.msra.mxu0 0.0
    %2406 = vmatprep.subr.mxu0 0.0
    %2407 = vmatpush1.msra.mxu0 0.0
    %2408 = vmatprep.subr.mxu0 0.0
    %2409 = vmatpush1.msra.mxu0 0.0
    %2410 = vmatprep.subr.mxu0 0.0
    %2411 = vmatpush1.msra.mxu0 0.0
    %2412 = vmatprep.subr.mxu0 0.0
    %2413 = vmatpush1.msra.mxu0 0.0
    %2414 = vmatprep.subr.mxu0 0.0
    %2415 = vmatpush1.msra.mxu0 0.0
    %2416 = vmatprep.subr.mxu0 0.0
    %2417 = vmatpush1.msra.mxu0 0.0
    %2418 = vmatprep.subr.mxu0 0.0
    %2419 = vmatpush1.msra.mxu0 0.0
    %2420 = vmatprep.subr.mxu0 0.0
    %2421 = vmatpush1.msra.mxu0 0.0
    %2422 = vmatprep.subr.mxu0 0.0
    %2423 = vmatpush1.msra.mxu0 0.0
    %2424 = vmatprep.subr.mxu0 0.0
    %2425 = vmatpush1.msra.mxu0 0.0
    %2426 = vmatprep.subr.mxu0 0.0
    %2427 = vmatpush1.msra.mxu0 0.0
    %2428 = vmatprep.subr.mxu0 0.0
    %2429 = vmatpush1.msra.mxu0 0.0
    %2430 = vmatprep.subr.mxu0 0.0
    %2431 = vmatpush1.msra.mxu0 0.0
    %2432 = vmatprep.subr.mxu0 0.0
    %2433 = vmatpush1.msra.mxu0 0.0
    %2434 = vmatprep.mubr.f32.mxu0 0.0
    %2435 = vmatmul.mubr.f32.gmra.mrb[0].mxu0 %v2294
    %v2436 = vpop.f32.mrb[0].mxu0
    %v2437 = vadd.f32 0.0, %v2436
    %v2438 = vpop.f32.mrb[0].mxu0
    %v2439 = vadd.f32 0.0, %v2438
    %2440 = vdwg.mxu0
    %v2441 = vadd.f32 %v2295, %v2366
    %v2442 = vadd.f32 %v2296, %v2368
    %v2443 = vadd.f32 %v2297, %v2437
    %v2444 = vadd.f32 %v2298, %v2439
    %v2445 = vmul.f32 %v2441, 0.5
    %v2446 = vtanh.pop %v2445
    %v2447 = vmul.f32 %v2446, 0.5
    %v2448 = vadd.f32 %v2447, 0.5
    %v2449 = vmul.f32 %v2442, 0.5
    %v2450 = vtanh.pop %v2449
    %v2451 = vmul.f32 %v2450, 0.5
    %v2452 = vadd.f32 %v2451, 0.5
    %v2453 = vtanh.pop %v2443
    %v2454 = vmul.f32 %v2444, 0.5
    %v2455 = vtanh.pop %v2454
    %v2456 = vmul.f32 %v2455, 0.5
    %v2457 = vadd.f32 %v2456, 0.5
    %v2458 = vmul.f32 %v2452, %v2292
    %v2459 = vmul.f32 %v2448, %v2453
    %v2460 = vadd.f32 %v2458, %v2459
    %v2461 = vtanh.pop %v2460
    %v2462 = vmul.f32 %v2457, %v2461
    %v2463 = vld [vmem:[#allocation2 + $0xe0] sm:$0xff]
    %v2464 = vld [vmem:[#allocation2 + $0xe8] sm:$0xff]
    %v2465 = vld [vmem:[#allocation2 + $0xf0] sm:$0xff]
    %v2466 = vld [vmem:[#allocation2 + $0xf8] sm:$0xff]
    %2467 = vmatprep.subr.mxu0 %v1224
    %2468 = vmatpush1.msra.mxu0 %v1223
    %2469 = vmatprep.subr.mxu0 %v1228
    %2470 = vmatpush1.msra.mxu0 %v1227
    %2471 = vmatprep.subr.mxu0 %v1232
    %2472 = vmatpush1.msra.mxu0 %v1231
    %2473 = vmatprep.subr.mxu0 %v1236
    %2474 = vmatpush1.msra.mxu0 %v1235
    %2475 = vmatprep.subr.mxu0 %v1240
    %2476 = vmatpush1.msra.mxu0 %v1239
    %2477 = vmatprep.subr.mxu0 %v1244
    %2478 = vmatpush1.msra.mxu0 %v1243
    %2479 = vmatprep.subr.mxu0 %v1248
    %2480 = vmatpush1.msra.mxu0 %v1247
    %2481 = vmatprep.subr.mxu0 %v1252
    %2482 = vmatpush1.msra.mxu0 %v1251
    %2483 = vmatprep.subr.mxu0 %v1256
    %2484 = vmatpush1.msra.mxu0 %v1255
    %2485 = vmatprep.subr.mxu0 %v1260
    %2486 = vmatpush1.msra.mxu0 %v1259
    %2487 = vmatprep.subr.mxu0 %v1264
    %2488 = vmatpush1.msra.mxu0 %v1263
    %2489 = vmatprep.subr.mxu0 %v1268
    %2490 = vmatpush1.msra.mxu0 %v1267
    %2491 = vmatprep.subr.mxu0 %v1272
    %2492 = vmatpush1.msra.mxu0 %v1271
    %2493 = vmatprep.subr.mxu0 %v1276
    %2494 = vmatpush1.msra.mxu0 %v1275
    %2495 = vmatprep.subr.mxu0 %v1280
    %2496 = vmatpush1.msra.mxu0 %v1279
    %2497 = vmatprep.subr.mxu0 %v1284
    %2498 = vmatpush1.msra.mxu0 %v1283
    %2499 = vmatprep.subr.mxu0 0.0
    %2500 = vmatpush1.msra.mxu0 0.0
    %2501 = vmatprep.subr.mxu0 0.0
    %2502 = vmatpush1.msra.mxu0 0.0
    %2503 = vmatprep.subr.mxu0 0.0
    %2504 = vmatpush1.msra.mxu0 0.0
    %2505 = vmatprep.subr.mxu0 0.0
    %2506 = vmatpush1.msra.mxu0 0.0
    %2507 = vmatprep.subr.mxu0 0.0
    %2508 = vmatpush1.msra.mxu0 0.0
    %2509 = vmatprep.subr.mxu0 0.0
    %2510 = vmatpush1.msra.mxu0 0.0
    %2511 = vmatprep.subr.mxu0 0.0
    %2512 = vmatpush1.msra.mxu0 0.0
    %2513 = vmatprep.subr.mxu0 0.0
    %2514 = vmatpush1.msra.mxu0 0.0
    %2515 = vmatprep.subr.mxu0 0.0
    %2516 = vmatpush1.msra.mxu0 0.0
    %2517 = vmatprep.subr.mxu0 0.0
    %2518 = vmatpush1.msra.mxu0 0.0
    %2519 = vmatprep.subr.mxu0 0.0
    %2520 = vmatpush1.msra.mxu0 0.0
    %2521 = vmatprep.subr.mxu0 0.0
    %2522 = vmatpush1.msra.mxu0 0.0
    %2523 = vmatprep.subr.mxu0 0.0
    %2524 = vmatpush1.msra.mxu0 0.0
    %2525 = vmatprep.subr.mxu0 0.0
    %2526 = vmatpush1.msra.mxu0 0.0
    %2527 = vmatprep.subr.mxu0 0.0
    %2528 = vmatpush1.msra.mxu0 0.0
    %2529 = vmatprep.subr.mxu0 0.0
    %2530 = vmatpush1.msra.mxu0 0.0
    %2531 = vmatprep.mubr.f32.mxu0 0.0
    %2532 = vmatmul.mubr.f32.gmra.mrb[0].mxu0 %v2462
    %v2533 = vpop.f32.mrb[0].mxu0
    %v2534 = vadd.f32 0.0, %v2533
    %v2535 = vpop.f32.mrb[0].mxu0
    %v2536 = vadd.f32 0.0, %v2535
    %2537 = vdwg.mxu0
    %2538 = vmatprep.subr.mxu0 %v1226
    %2539 = vmatpush1.msra.mxu0 %v1225
    %2540 = vmatprep.subr.mxu0 %v1230
    %2541 = vmatpush1.msra.mxu0 %v1229
    %2542 = vmatprep.subr.mxu0 %v1234
    %2543 = vmatpush1.msra.mxu0 %v1233
    %2544 = vmatprep.subr.mxu0 %v1238
    %2545 = vmatpush1.msra.mxu0 %v1237
    %2546 = vmatprep.subr.mxu0 %v1242
    %2547 = vmatpush1.msra.mxu0 %v1241
    %2548 = vmatprep.subr.mxu0 %v1246
    %2549 = vmatpush1.msra.mxu0 %v1245
    %2550 = vmatprep.subr.mxu0 %v1250
    %2551 = vmatpush1.msra.mxu0 %v1249
    %2552 = vmatprep.subr.mxu0 %v1254
    %2553 = vmatpush1.msra.mxu0 %v1253
    %2554 = vmatprep.subr.mxu0 %v1258
    %2555 = vmatpush1.msra.mxu0 %v1257
    %2556 = vmatprep.subr.mxu0 %v1262
    %2557 = vmatpush1.msra.mxu0 %v1261
    %2558 = vmatprep.subr.mxu0 %v1266
    %2559 = vmatpush1.msra.mxu0 %v1265
    %2560 = vmatprep.subr.mxu0 %v1270
    %2561 = vmatpush1.msra.mxu0 %v1269
    %2562 = vmatprep.subr.mxu0 %v1274
    %2563 = vmatpush1.msra.mxu0 %v1273
    %2564 = vmatprep.subr.mxu0 %v1278
    %2565 = vmatpush1.msra.mxu0 %v1277
    %2566 = vmatprep.subr.mxu0 %v1282
    %2567 = vmatpush1.msra.mxu0 %v1281
    %2568 = vmatprep.subr.mxu0 %v1286
    %2569 = vmatpush1.msra.mxu0 %v1285
    %2570 = vmatprep.subr.mxu0 0.0
    %2571 = vmatpush1.msra.mxu0 0.0
    %2572 = vmatprep.subr.mxu0 0.0
    %2573 = vmatpush1.msra.mxu0 0.0
    %2574 = vmatprep.subr.mxu0 0.0
    %2575 = vmatpush1.msra.mxu0 0.0
    %2576 = vmatprep.subr.mxu0 0.0
    %2577 = vmatpush1.msra.mxu0 0.0
    %2578 = vmatprep.subr.mxu0 0.0
    %2579 = vmatpush1.msra.mxu0 0.0
    %2580 = vmatprep.subr.mxu0 0.0
    %2581 = vmatpush1.msra.mxu0 0.0
    %2582 = vmatprep.subr.mxu0 0.0
    %2583 = vmatpush1.msra.mxu0 0.0
    %2584 = vmatprep.subr.mxu0 0.0
    %2585 = vmatpush1.msra.mxu0 0.0
    %2586 = vmatprep.subr.mxu0 0.0
    %2587 = vmatpush1.msra.mxu0 0.0
    %2588 = vmatprep.subr.mxu0 0.0
    %2589 = vmatpush1.msra.mxu0 0.0
    %2590 = vmatprep.subr.mxu0 0.0
    %2591 = vmatpush1.msra.mxu0 0.0
    %2592 = vmatprep.subr.mxu0 0.0
    %2593 = vmatpush1.msra.mxu0 0.0
    %2594 = vmatprep.subr.mxu0 0.0
    %2595 = vmatpush1.msra.mxu0 0.0
    %2596 = vmatprep.subr.mxu0 0.0
    %2597 = vmatpush1.msra.mxu0 0.0
    %2598 = vmatprep.subr.mxu0 0.0
    %2599 = vmatpush1.msra.mxu0 0.0
    %2600 = vmatprep.subr.mxu0 0.0
    %2601 = vmatpush1.msra.mxu0 0.0
    %2602 = vmatprep.mubr.f32.mxu0 0.0
    %2603 = vmatmul.mubr.f32.gmra.mrb[0].mxu0 %v2462
    %v2604 = vpop.f32.mrb[0].mxu0
    %v2605 = vadd.f32 0.0, %v2604
    %v2606 = vpop.f32.mrb[0].mxu0
    %v2607 = vadd.f32 0.0, %v2606
    %2608 = vdwg.mxu0
    %v2609 = vadd.f32 %v2463, %v2534
    %v2610 = vadd.f32 %v2464, %v2536
    %v2611 = vadd.f32 %v2465, %v2605
    %v2612 = vadd.f32 %v2466, %v2607
    %v2613 = vmul.f32 %v2609, 0.5
    %v2614 = vtanh.pop %v2613
    %v2615 = vmul.f32 %v2614, 0.5
    %v2616 = vadd.f32 %v2615, 0.5
    %v2617 = vmul.f32 %v2610, 0.5
    %v2618 = vtanh.pop %v2617
    %v2619 = vmul.f32 %v2618, 0.5
    %v2620 = vadd.f32 %v2619, 0.5
    %v2621 = vtanh.pop %v2611
    %v2622 = vmul.f32 %v2612, 0.5
    %v2623 = vtanh.pop %v2622
    %v2624 = vmul.f32 %v2623, 0.5
    %v2625 = vadd.f32 %v2624, 0.5
    %v2626 = vmul.f32 %v2620, %v2460
    %v2627 = vmul.f32 %v2616, %v2621
    %v2628 = vadd.f32 %v2626, %v2627
    %v2629 = vtanh.pop %v2628
    %v2630 = vmul.f32 %v2625, %v2629
    %v2631 = vld [vmem:[#allocation8 + $0x20] sm:$0xff]
    %v2632 = vld [vmem:[#allocation8 + $0x48] sm:$0xff]
    %v2633 = vld [vmem:[#allocation8 + $0x70] sm:$0xff]
    %v2634 = vld [vmem:[#allocation8 + $0x98] sm:$0xff]
    %v2635 = vld [vmem:[#allocation8 + $0xc0] sm:$0xff]
    %v2636 = vld [vmem:[#allocation8 + $0xe8] sm:$0xff]
    %v2637 = vld [vmem:[#allocation8 + $0x110] sm:$0xff]
    %v2638 = vld [vmem:[#allocation8 + $0x138] sm:$0xff]
    %v2639 = vld [vmem:[#allocation8 + $0x160] sm:$0xff]
    %v2640 = vld [vmem:[#allocation8 + $0x188] sm:$0xff]
    %v2641 = vld [vmem:[#allocation8 + $0x1b0] sm:$0xff]
    %v2642 = vld [vmem:[#allocation8 + $0x1d8] sm:$0xff]
    %v2643 = vld [vmem:[#allocation8 + $0x200] sm:$0xff]
    %v2644 = vld [vmem:[#allocation8 + $0x228] sm:$0xff]
    %v2645 = vld [vmem:[#allocation8 + $0x250] sm:$0xff]
    %v2646 = vld [vmem:[#allocation8 + $0x278] sm:$0xff]
    %v2647 = vld [vmem:[%s4 + $0x5] sm:$0x1]
    %v2649 = vlaneseq
    %v2650 = vshrl.u32 %v2649, 7
    %v2651 = vsub.s32 0, %v2650
    %v2652 = vrot.slane %v2647, %v2651
    %2654 = vmatprep.subr.mxu0 0.0
    %2655 = vmatpush1.msra.mxu0 %v2631
    %2656 = vmatprep.subr.mxu0 0.0
    %2657 = vmatpush1.msra.mxu0 %v2632
    %2658 = vmatprep.subr.mxu0 0.0
    %2659 = vmatpush1.msra.mxu0 %v2633
    %2660 = vmatprep.subr.mxu0 0.0
    %2661 = vmatpush1.msra.mxu0 %v2634
    %2662 = vmatprep.subr.mxu0 0.0
    %2663 = vmatpush1.msra.mxu0 %v2635
    %2664 = vmatprep.subr.mxu0 0.0
    %2665 = vmatpush1.msra.mxu0 %v2636
    %2666 = vmatprep.subr.mxu0 0.0
    %2667 = vmatpush1.msra.mxu0 %v2637
    %2668 = vmatprep.subr.mxu0 0.0
    %2669 = vmatpush1.msra.mxu0 %v2638
    %2670 = vmatprep.subr.mxu0 0.0
    %2671 = vmatpush1.msra.mxu0 %v2639
    %2672 = vmatprep.subr.mxu0 0.0
    %2673 = vmatpush1.msra.mxu0 %v2640
    %2674 = vmatprep.subr.mxu0 0.0
    %2675 = vmatpush1.msra.mxu0 %v2641
    %2676 = vmatprep.subr.mxu0 0.0
    %2677 = vmatpush1.msra.mxu0 %v2642
    %2678 = vmatprep.subr.mxu0 0.0
    %2679 = vmatpush1.msra.mxu0 %v2643
    %2680 = vmatprep.subr.mxu0 0.0
    %2681 = vmatpush1.msra.mxu0 %v2644
    %2682 = vmatprep.subr.mxu0 0.0
    %2683 = vmatpush1.msra.mxu0 %v2645
    %2684 = vmatprep.subr.mxu0 0.0
    %2685 = vmatpush1.msra.mxu0 %v2646
    %2686 = vmatprep.subr.mxu0 0.0
    %2687 = vmatpush1.msra.mxu0 0.0
    %2688 = vmatprep.subr.mxu0 0.0
    %2689 = vmatpush1.msra.mxu0 0.0
    %2690 = vmatprep.subr.mxu0 0.0
    %2691 = vmatpush1.msra.mxu0 0.0
    %2692 = vmatprep.subr.mxu0 0.0
    %2693 = vmatpush1.msra.mxu0 0.0
    %2694 = vmatprep.subr.mxu0 0.0
    %2695 = vmatpush1.msra.mxu0 0.0
    %2696 = vmatprep.subr.mxu0 0.0
    %2697 = vmatpush1.msra.mxu0 0.0
    %2698 = vmatprep.subr.mxu0 0.0
    %2699 = vmatpush1.msra.mxu0 0.0
    %2700 = vmatprep.subr.mxu0 0.0
    %2701 = vmatpush1.msra.mxu0 0.0
    %2702 = vmatprep.subr.mxu0 0.0
    %2703 = vmatpush1.msra.mxu0 0.0
    %2704 = vmatprep.subr.mxu0 0.0
    %2705 = vmatpush1.msra.mxu0 0.0
    %2706 = vmatprep.subr.mxu0 0.0
    %2707 = vmatpush1.msra.mxu0 0.0
    %2708 = vmatprep.subr.mxu0 0.0
    %2709 = vmatpush1.msra.mxu0 0.0
    %2710 = vmatprep.subr.mxu0 0.0
    %2711 = vmatpush1.msra.mxu0 0.0
    %2712 = vmatprep.subr.mxu0 0.0
    %2713 = vmatpush1.msra.mxu0 0.0
    %2714 = vmatprep.subr.mxu0 0.0
    %2715 = vmatpush1.msra.mxu0 0.0
    %2716 = vmatprep.subr.mxu0 0.0
    %2717 = vmatpush1.msra.mxu0 0.0
    %2718 = vmatprep.mubr.f32.mxu0 0.0
    %2719 = vmatmul.mubr.f32.gmra.mrb[0].mxu0 %v2630
    %v2720 = vpop.f32.mrb[0].mxu0
    %v2721 = vadd.f32 %v2652, %v2720
    %v2722 = vpop.f32.mrb[0].mxu0
    %2723 = vdwg.mxu0
    %2724 = vst [vmem:[#allocation10] sm:$0xff] %v2721
    // Predicated region
    $region46: #{tpu_custom_call.1} parent=1 // pred_check
      _
    $region47: #{tpu_custom_call.1} parent=1 // pred_check_branch
      %2726 = sbr.rel (0) target = $region49
    $region48: #{tpu_custom_call.1} parent=1 // pred_region
      %s2728 = ssub.s32 128, 128
      %2729 = vsyncadd [#allocation7], %s2728
      %s2731 = sshll.u32 [#allocation10], 4
      %s2732 = int_to_ptr.vmem [resolvable:$true] %s2731
      %2734 = dma.vmem_to_hbm [thread:$0]  %s2732, 128, %s6, [#allocation7]
    $region49: #{tpu_custom_call.1} parent=1 // pred_fallthru
      _
    // Predicated region
    $region50: #{tpu_custom_call.1} parent=1 // pred_check
      _
    $region51: #{tpu_custom_call.1} parent=1 // pred_check_branch
      %2736 = sbr.rel (0) target = $region53
    $region52: #{tpu_custom_call.1} parent=1 // pred_region
      %2737 = dma.done [#allocation7], 128
    $region53: #{tpu_custom_call.1} parent=1 // pred_fallthru
      _
    %2738 = vsyncpa [#allocation6], 1
    %2739 = vsyncpa [#allocation9], 1
    %2740 = vsyncpa [#allocation7], 1
  %2741 = vsyncmov [#allocation4]
  %s2742 = vpop.sfrf %2741
  %p2743 = scmp.eq.s32.totalorder %s2742, 0
  %p2744 = pneg %p2743
  %2746 = shalt.err (%p2744)
  %s2747 = scalar_lea.sflag [#allocation4], 1
  %2748 = vsyncmov %s2747
  %s2749 = vpop.sfrf %2748
  %p2750 = scmp.eq.s32.totalorder %s2749, 0
  %p2751 = pneg %p2750
  %2753 = shalt.err (%p2751)

</llo_original>
